<compile_context>
chip_gen: v7x
topology: tpu7x:2x2x1
jax: 0.10.0
libtpu: 0.0.40
codegen_flags: <defaults>
</compile_context>

<pallas_src>
import functools

import jax
import jax.numpy as jnp
from jax.experimental import pallas as pl
from jax.experimental.pallas import tpu as pltpu


def _silu(v):
    return v * jax.nn.sigmoid(v)


def mamba_kernel(x_ref, w_in_ref, conv_w_ref, conv_b_ref, w_proj_ref, b_dt_ref,
                 aT_ref, d_ref, w_out_ref,
                 o_ref,
                 xe_sc, h_sc, xs_sc, zg_sc, dA_sc, dBx_sc, c_sc, y_sc,
                 *, d_conv, time_unroll):
    Lc, Bblk, d_model = x_ref.shape          # time-major block
    d_inner = d_ref.shape[1]
    d_state = aT_ref.shape[0]
    N = Lc * Bblk
    halo = d_conv - 1

    l_idx = pl.program_id(1)

    # ---- reset carried state (SSM hidden state + conv halo) at chunk 0 ------
    @pl.when(l_idx == 0)
    def _():
        h_sc[...] = jnp.zeros_like(h_sc)
        xe_sc[pl.ds(0, halo)] = jnp.zeros((halo, Bblk, d_inner), jnp.float32)

    # ---- fused in_proj: ONE bf16 MXU pass, static x/z column split ----------
    xb = x_ref[...].reshape(N, d_model).astype(jnp.bfloat16)
    xz = jnp.dot(xb, w_in_ref[...], preferred_element_type=jnp.float32)   # (N, 2*d_inner)
    xc = xz[:, :d_inner]
    zg_sc[...] = _silu(xz[:, d_inner:])          # SiLU gate, stashed for post-scan

    # ---- causal depthwise conv1d: shifted MACs with carried halo ------------
    xe_sc[pl.ds(halo, Lc)] = xc.reshape(Lc, Bblk, d_inner)
    cw = conv_w_ref[...]                                                  # (d_conv, d_inner)
    conv = jnp.zeros((Lc, Bblk, d_inner), jnp.float32)
    for k in range(d_conv):                                               # tiny static loop
        conv = conv + cw[k][None, None, :] * xe_sc[pl.ds(k, Lc)]
    conv = conv + conv_b_ref[...]
    x_ssm = _silu(conv).reshape(N, d_inner)
    # carry the last (d_conv-1) time rows for the next L chunk (needs Lc >= halo,
    # asserted in the wrapper; the conv reads above are traced before this write)
    xe_sc[pl.ds(0, halo)] = xe_sc[pl.ds(Lc, halo)]
    xs_sc[...] = x_ssm

    # ---- fused x_proj (+ folded dt_proj): one lane-dense matmul -------------
    proj = jnp.dot(x_ssm.astype(jnp.bfloat16), w_proj_ref[...],
                   preferred_element_type=jnp.float32)        # (N, d_inner + 2*d_state)
    dt = jax.nn.softplus(proj[:, :d_inner] + b_dt_ref[...])   # (N, d_inner)
    Bm = proj[:, d_inner:d_inner + d_state]                   # (N, d_state)
    c_sc[...] = proj[:, d_inner + d_state:]                   # (N, d_state)

    # ---- precompute dA, dBx for the whole chunk (off the h critical path) ---
    aT = aT_ref[...]                                          # (d_state, d_inner) = -exp(A_log).T
    dA_sc[...] = jnp.exp(dt[:, None, :] * aT[None, :, :])     # (N, d_state, d_inner)
    dBx_sc[...] = (dt * x_ssm)[:, None, :] * Bm[:, :, None]   # (N, d_state, d_inner)

    # ---- selective scan: h carried in registers, unrolled time loop ---------
    def step(t, h):
        r0 = pl.multiple_of(t * Bblk, Bblk)
        h = dA_sc[pl.ds(r0, Bblk)] * h + dBx_sc[pl.ds(r0, Bblk)]
        c_t = c_sc[pl.ds(r0, Bblk), :]                        # (Bblk, d_state)
        y_sc[pl.ds(r0, Bblk), :] = jnp.sum(h * c_t[:, :, None], axis=1)
        return h

    if time_unroll > 1:
        h_last = jax.lax.fori_loop(0, Lc, step, h_sc[...], unroll=time_unroll)
    else:
        h_last = jax.lax.fori_loop(0, Lc, step, h_sc[...])
    h_sc[...] = h_last                                        # cross-chunk carry

    # ---- D skip, SiLU(z) gate, out_proj --------------------------------------
    y = (y_sc[...] + xs_sc[...] * d_ref[...]) * zg_sc[...]
    out = jnp.dot(y.astype(jnp.bfloat16), w_out_ref[...],
                  preferred_element_type=jnp.float32)
    o_ref[...] = out.reshape(Lc, Bblk, d_model).astype(o_ref.dtype)


def svd_mamba_forward(x, params, *, b_block=8, l_chunk=16):
    """Eval-mode SVDMamba.forward (use_cache=False) as a Pallas TPU kernel.

    Tuning: grow b_block first (v5e/v6e: b_block = B — single TensorCore;
    v7x: keep B // b_block >= 2 so both TensorCores get work), then l_chunk as
    VMEM allows (dA/dBx scratch scales with b_block * l_chunk * d_state * d_inner).
    """
    (w_in, conv_w, conv_b, w_xp, w_dt, b_dt, a_logT, d_vec, w_out) = params
    B, L, d_model = x.shape
    d_inner = w_dt.shape[1]
    d_state = a_logT.shape[0]
    dt_rank = w_dt.shape[0]
    d_conv = conv_w.shape[0]

    b_block = min(b_block, B)
    l_chunk = min(l_chunk, L)
    assert B % b_block == 0 and L % l_chunk == 0
    assert l_chunk >= d_conv - 1        # conv-halo self-copy must not overlap

    bf16, f32 = jnp.bfloat16, jnp.float32

    # --- weight prep (all hoisted out of the kernel) --------------------------
    w_in_b = w_in.astype(bf16)                                  # fused x/z in_proj
    # fold dt_proj into x_proj: f32 weight product, then a single bf16 cast
    w_dt_fold = jnp.dot(w_xp[:, :dt_rank].astype(f32), w_dt.astype(f32))
    w_proj_b = jnp.concatenate(
        [w_dt_fold, w_xp[:, dt_rank:].astype(f32)], axis=1).astype(bf16)
    w_out_b = w_out.astype(bf16)
    aT = (-jnp.exp(a_logT)).astype(f32)                         # A^T, hoisted
    conv_w_f = conv_w.astype(f32)
    conv_b_f = conv_b.astype(f32)
    b_dt_f = b_dt.astype(f32)
    d_vec_f = d_vec.astype(f32)

    # Time-major layout so per-timestep scan rows are contiguous aligned blocks.
    x_t = jnp.transpose(x, (1, 0, 2))                           # (L, B, d_model)

    grid = (B // b_block, L // l_chunk)
    N = l_chunk * b_block
    weights = (w_in_b, conv_w_f, conv_b_f, w_proj_b, b_dt_f, aT, d_vec_f, w_out_b)

    def build(single_buffer_weights, vmem_limit_bytes, time_unroll):
        kernel = functools.partial(mamba_kernel, d_conv=d_conv,
                                   time_unroll=time_unroll)

        def wspec(w):
            kw = {}
            if single_buffer_weights and hasattr(pl, "Buffered"):
                # grid-invariant weights: don't double-buffer them
                kw["pipeline_mode"] = pl.Buffered(1)
            nd = w.ndim
            return pl.BlockSpec(w.shape, lambda b, l, _nd=nd: (0,) * _nd, **kw)

        in_specs = [pl.BlockSpec((l_chunk, b_block, d_model), lambda b, l: (l, b, 0))]
        in_specs += [wspec(w) for w in weights]
        out_specs = pl.BlockSpec((l_chunk, b_block, d_model), lambda b, l: (l, b, 0))

        scratch_shapes = [
            pltpu.VMEM((l_chunk + d_conv - 1, b_block, d_inner), f32),  # conv in + halo
            pltpu.VMEM((b_block, d_state, d_inner), f32),               # h carry
            pltpu.VMEM((N, d_inner), f32),                              # x_ssm
            pltpu.VMEM((N, d_inner), f32),                              # silu(z) gate
            pltpu.VMEM((N, d_state, d_inner), f32),                     # dA (precomputed)
            pltpu.VMEM((N, d_state, d_inner), f32),                     # dBx (precomputed)
            pltpu.VMEM((N, d_state), f32),                              # C
            pltpu.VMEM((N, d_inner), f32),                              # y
        ]
        return pl.pallas_call(
            kernel,
            out_shape=jax.ShapeDtypeStruct((L, B, d_model), x.dtype),
            grid=grid,
            in_specs=in_specs,
            out_specs=out_specs,
            scratch_shapes=scratch_shapes,
            compiler_params=pltpu.CompilerParams(
                dimension_semantics=("parallel", "arbitrary"),
                vmem_limit_bytes=vmem_limit_bytes),
        )

    args = (x_t,) + weights
    unroll = 4 if l_chunk % 4 == 0 else (2 if l_chunk % 2 == 0 else 1)
    try:
        out_t = build(True, 64 * 1024 * 1024, unroll)(*args)
    except Exception:
        # Maximally-compatible fallback: double-buffered weights, default VMEM
        # limit, rolled time loop.
        out_t = build(False, None, 1)(*args)

    return jnp.transpose(out_t, (1, 0, 2))                      # (B, L, d_model)


def mamba_reference(x, params):
    """Pure-JAX reference with the same bf16-matmul / f32-elementwise precision."""
    (w_in, conv_w, conv_b, w_xp, w_dt, b_dt, a_logT, d_vec, w_out) = params
    B, L, _ = x.shape
    d_inner = w_dt.shape[1]
    d_state = a_logT.shape[0]
    dt_rank = w_dt.shape[0]
    d_conv = conv_w.shape[0]
    bf16, f32 = jnp.bfloat16, jnp.float32

    def mm(a, w):
        return jnp.dot(a.astype(bf16), w.astype(bf16), preferred_element_type=f32)

    xz = mm(x, w_in)
    xc, z = xz[..., :d_inner], xz[..., d_inner:]
    xp = jnp.pad(xc, ((0, 0), (d_conv - 1, 0), (0, 0)))
    conv = sum(conv_w[k][None, None, :] * xp[:, k:k + L, :] for k in range(d_conv))
    conv = conv + conv_b[None, :, :]
    x_ssm = conv * jax.nn.sigmoid(conv)

    dt_in = mm(x_ssm, w_xp[:, :dt_rank])
    Bm = mm(x_ssm, w_xp[:, dt_rank:dt_rank + d_state])
    Cm = mm(x_ssm, w_xp[:, dt_rank + d_state:])
    dt = jax.nn.softplus(mm(dt_in, w_dt) + b_dt[None, :, :])

    A_T = -jnp.exp(a_logT)                                # (d_state, d_inner)
    h = jnp.zeros((B, d_state, d_inner), f32)
    ys = []
    for t in range(L):
        dA = jnp.exp(dt[:, t, None, :] * A_T[None, :, :])
        dBx = (dt[:, t] * x_ssm[:, t])[:, None, :] * Bm[:, t, :, None]
        h = dA * h + dBx
        ys.append(jnp.sum(h * Cm[:, t, :, None], axis=1))
    y = jnp.stack(ys, axis=1) + x_ssm * d_vec[None, :, :]
    y = y * (z * jax.nn.sigmoid(z))
    return mm(y, w_out)


if __name__ == "__main__":
    # Mamba(d_model=32, d_state=8) defaults: expand=2, d_conv=4, dt_rank=ceil(d_model/16)
    d_model, d_state = 32, 8
    expand, d_conv = 2, 4
    d_inner = expand * d_model
    dt_rank = -(-d_model // 16)
    B, L = 16, 16

    key = jax.random.PRNGKey(0)
    ks = jax.random.split(key, 10)
    f32 = jnp.float32

    w_in = 0.1 * jax.random.normal(ks[0], (d_model, 2 * d_inner), f32)            # in_proj.weight.T
    conv_w = 0.2 * jax.random.normal(ks[1], (d_conv, d_inner), f32)               # conv1d.weight (taps, channels)
    conv_b = 0.1 * jax.random.normal(ks[2], (1, d_inner), f32)                    # conv1d.bias
    w_xp = 0.1 * jax.random.normal(ks[3], (d_inner, dt_rank + 2 * d_state), f32)  # x_proj.weight.T
    w_dt = 0.1 * jax.random.normal(ks[4], (dt_rank, d_inner), f32)                # dt_proj.weight.T
    b_dt = 0.1 * jax.random.normal(ks[5], (1, d_inner), f32)                      # dt_proj.bias
    a_logT = jnp.log(jnp.broadcast_to(
        jnp.arange(1, d_state + 1, dtype=f32)[:, None], (d_state, d_inner)))      # A_log.T
    d_vec = jnp.ones((1, d_inner), f32)                                           # D
    w_out = 0.1 * jax.random.normal(ks[6], (d_inner, d_model), f32)               # out_proj.weight.T
    params = (w_in, conv_w, conv_b, w_xp, w_dt, b_dt, a_logT, d_vec, w_out)

    x = jax.random.normal(ks[7], (B, L, d_model), f32)

    out = svd_mamba_forward(x, params, b_block=8, l_chunk=16)
    out = jax.block_until_ready(out)

    ref = mamba_reference(x, params)
    if not bool(jnp.allclose(out, ref, rtol=1e-2, atol=1e-2)):
        raise AssertionError(
            "kernel/reference mismatch, max abs err = %e"
            % float(jnp.max(jnp.abs(out - ref))))
    print("KERNEL_OK")
</pallas_src>

<mosaic_0001>
module attributes {stable_mosaic.version = 11 : i64} {
  func.func @mamba_kernel(%arg0: i32, %arg1: i32, %arg2: memref<16x8x32xf32, #tpu.memory_space<vmem>>, %arg3: memref<32x128xbf16, #tpu.memory_space<vmem>>, %arg4: memref<4x64xf32, #tpu.memory_space<vmem>>, %arg5: memref<1x64xf32, #tpu.memory_space<vmem>>, %arg6: memref<64x80xbf16, #tpu.memory_space<vmem>>, %arg7: memref<1x64xf32, #tpu.memory_space<vmem>>, %arg8: memref<8x64xf32, #tpu.memory_space<vmem>>, %arg9: memref<1x64xf32, #tpu.memory_space<vmem>>, %arg10: memref<64x32xbf16, #tpu.memory_space<vmem>>, %arg11: memref<16x8x32xf32, #tpu.memory_space<vmem>>, %arg12: memref<19x8x64xf32, #tpu.memory_space<vmem>>, %arg13: memref<8x8x64xf32, #tpu.memory_space<vmem>>, %arg14: memref<128x64xf32, #tpu.memory_space<vmem>>, %arg15: memref<128x64xf32, #tpu.memory_space<vmem>>, %arg16: memref<128x8x64xf32, #tpu.memory_space<vmem>>, %arg17: memref<128x8x64xf32, #tpu.memory_space<vmem>>, %arg18: memref<128x8xf32, #tpu.memory_space<vmem>>, %arg19: memref<128x64xf32, #tpu.memory_space<vmem>>) attributes {dimension_semantics = [#tpu.dimension_semantics<parallel>, #tpu.dimension_semantics<arbitrary>], iteration_bounds = array<i64: 2, 1>, scalar_prefetch = 0 : i64, scratch_operands = 8 : i64, tpu.core_type = #tpu.core_type<tc>, window_params = [{transform_indices = @transform_0, window_bounds = array<i64: 16, 8, 32>}, {pipeline_mode = #tpu.pipeline_mode<synchronous>, transform_indices = @transform_1, window_bounds = array<i64: 32, 128>}, {pipeline_mode = #tpu.pipeline_mode<synchronous>, transform_indices = @transform_2, window_bounds = array<i64: 4, 64>}, {pipeline_mode = #tpu.pipeline_mode<synchronous>, transform_indices = @transform_3, window_bounds = array<i64: 1, 64>}, {pipeline_mode = #tpu.pipeline_mode<synchronous>, transform_indices = @transform_4, window_bounds = array<i64: 64, 80>}, {pipeline_mode = #tpu.pipeline_mode<synchronous>, transform_indices = @transform_5, window_bounds = array<i64: 1, 64>}, {pipeline_mode = #tpu.pipeline_mode<synchronous>, transform_indices = @transform_6, window_bounds = array<i64: 8, 64>}, {pipeline_mode = #tpu.pipeline_mode<synchronous>, transform_indices = @transform_7, window_bounds = array<i64: 1, 64>}, {pipeline_mode = #tpu.pipeline_mode<synchronous>, transform_indices = @transform_8, window_bounds = array<i64: 64, 32>}, {transform_indices = @transform_9, window_bounds = array<i64: 16, 8, 32>}]} {
    %c0_i32 = arith.constant 0 : i32
    %0 = arith.cmpi eq, %arg1, %c0_i32 : i32
    %1 = arith.extui %0 : i1 to i32
    %c0_i32_0 = arith.constant 0 : i32
    %2 = arith.cmpi ne, %1, %c0_i32_0 : i32
    scf.if %2 {
      %cst_72 = arith.constant 0.000000e+00 : f32
      %119 = vector.broadcast %cst_72 : f32 to vector<8x8x64xf32>
      %c0_73 = arith.constant 0 : index
      %c0_74 = arith.constant 0 : index
      %c0_75 = arith.constant 0 : index
      %120 = vector.load %arg13[%c0_73, %c0_74, %c0_75] : memref<8x8x64xf32, #tpu.memory_space<vmem>>, vector<8x8x64xf32>
      tpu.vector_store %arg13[%c0_73, %c0_74, %c0_75], %119 {strides = array<i32>} : memref<8x8x64xf32, #tpu.memory_space<vmem>>, vector<8x8x64xf32>,
      %cst_76 = arith.constant 0.000000e+00 : f32
      %121 = vector.broadcast %cst_76 : f32 to vector<3x8x64xf32>
      %c0_77 = arith.constant 0 : index
      %c0_78 = arith.constant 0 : index
      %c0_79 = arith.constant 0 : index
      %122 = vector.load %arg12[%c0_77, %c0_78, %c0_79] : memref<19x8x64xf32, #tpu.memory_space<vmem>>, vector<3x8x64xf32>
      tpu.vector_store %arg12[%c0_77, %c0_78, %c0_79], %121 {strides = array<i32>} : memref<19x8x64xf32, #tpu.memory_space<vmem>>, vector<3x8x64xf32>,
    } else {
    }
    %c0 = arith.constant 0 : index
    %c0_1 = arith.constant 0 : index
    %c0_2 = arith.constant 0 : index
    %3 = vector.load %arg2[%c0, %c0_1, %c0_2] : memref<16x8x32xf32, #tpu.memory_space<vmem>>, vector<16x8x32xf32>
    %4 = vector.shape_cast %3 : vector<16x8x32xf32> to vector<128x32xf32>
    %5 = arith.truncf %4 : vector<128x32xf32> to vector<128x32xbf16>
    %c0_3 = arith.constant 0 : index
    %c0_4 = arith.constant 0 : index
    %6 = vector.load %arg3[%c0_3, %c0_4] : memref<32x128xbf16, #tpu.memory_space<vmem>>, vector<32x128xbf16>
    %cst = arith.constant dense<0.000000e+00> : vector<128x128xf32>
    %7 = tpu.matmul %5, %6, %cst {dimension_numbers = #tpu.dot_dimension_numbers<[1], [0], [0], [1], [0, 0, 1, 1], [], []>} : vector<128x32xbf16>, vector<32x128xbf16>, vector<128x128xf32> -> vector<128x128xf32>
    %8 = vector.extract_strided_slice %7 {offsets = [0, 0], sizes = [128, 64], strides = [1, 1]} : vector<128x128xf32> to vector<128x64xf32>
    %9 = vector.extract_strided_slice %7 {offsets = [0, 64], sizes = [128, 64], strides = [1, 1]} : vector<128x128xf32> to vector<128x64xf32>
    %10 = arith.negf %9 : vector<128x64xf32>
    %11 = math.exp %10 : vector<128x64xf32>
    %cst_5 = arith.constant 1.000000e+00 : f32
    %12 = vector.broadcast %cst_5 : f32 to vector<128x64xf32>
    %13 = arith.addf %12, %11 : vector<128x64xf32>
    %14 = arith.divf %12, %13 : vector<128x64xf32>
    %15 = arith.mulf %9, %14 : vector<128x64xf32>
    %c0_6 = arith.constant 0 : index
    %c0_7 = arith.constant 0 : index
    %16 = vector.load %arg15[%c0_6, %c0_7] : memref<128x64xf32, #tpu.memory_space<vmem>>, vector<128x64xf32>
    tpu.vector_store %arg15[%c0_6, %c0_7], %15 {strides = array<i32>} : memref<128x64xf32, #tpu.memory_space<vmem>>, vector<128x64xf32>,
    %17 = vector.shape_cast %8 : vector<128x64xf32> to vector<16x8x64xf32>
    %c3 = arith.constant 3 : index
    %c0_8 = arith.constant 0 : index
    %c0_9 = arith.constant 0 : index
    %18 = vector.load %arg12[%c3, %c0_8, %c0_9] : memref<19x8x64xf32, #tpu.memory_space<vmem>>, vector<16x8x64xf32>
    tpu.vector_store %arg12[%c3, %c0_8, %c0_9], %17 {strides = array<i32>} : memref<19x8x64xf32, #tpu.memory_space<vmem>>, vector<16x8x64xf32>,
    %c0_10 = arith.constant 0 : index
    %c0_11 = arith.constant 0 : index
    %19 = vector.load %arg4[%c0_10, %c0_11] : memref<4x64xf32, #tpu.memory_space<vmem>>, vector<4x64xf32>
    %cst_12 = arith.constant 0.000000e+00 : f32
    %20 = vector.broadcast %cst_12 : f32 to vector<16x8x64xf32>
    %21 = vector.extract_strided_slice %19 {offsets = [0, 0], sizes = [1, 64], strides = [1, 1]} : vector<4x64xf32> to vector<1x64xf32>
    %22 = vector.shape_cast %21 : vector<1x64xf32> to vector<64xf32>
    %23 = vector.shape_cast %22 : vector<64xf32> to vector<1x1x64xf32>
    %c0_13 = arith.constant 0 : index
    %c0_14 = arith.constant 0 : index
    %c0_15 = arith.constant 0 : index
    %24 = vector.load %arg12[%c0_13, %c0_14, %c0_15] : memref<19x8x64xf32, #tpu.memory_space<vmem>>, vector<16x8x64xf32>
    %25 = vector.broadcast %23 : vector<1x1x64xf32> to vector<16x8x64xf32>
    %26 = arith.mulf %25, %24 : vector<16x8x64xf32>
    %27 = arith.addf %20, %26 : vector<16x8x64xf32>
    %28 = vector.extract_strided_slice %19 {offsets = [1, 0], sizes = [1, 64], strides = [1, 1]} : vector<4x64xf32> to vector<1x64xf32>
    %29 = vector.shape_cast %28 : vector<1x64xf32> to vector<64xf32>
    %30 = vector.shape_cast %29 : vector<64xf32> to vector<1x1x64xf32>
    %c1 = arith.constant 1 : index
    %c0_16 = arith.constant 0 : index
    %c0_17 = arith.constant 0 : index
    %31 = vector.load %arg12[%c1, %c0_16, %c0_17] : memref<19x8x64xf32, #tpu.memory_space<vmem>>, vector<16x8x64xf32>
    %32 = vector.broadcast %30 : vector<1x1x64xf32> to vector<16x8x64xf32>
    %33 = arith.mulf %32, %31 : vector<16x8x64xf32>
    %34 = arith.addf %27, %33 : vector<16x8x64xf32>
    %35 = vector.extract_strided_slice %19 {offsets = [2, 0], sizes = [1, 64], strides = [1, 1]} : vector<4x64xf32> to vector<1x64xf32>
    %36 = vector.shape_cast %35 : vector<1x64xf32> to vector<64xf32>
    %37 = vector.shape_cast %36 : vector<64xf32> to vector<1x1x64xf32>
    %c2 = arith.constant 2 : index
    %c0_18 = arith.constant 0 : index
    %c0_19 = arith.constant 0 : index
    %38 = vector.load %arg12[%c2, %c0_18, %c0_19] : memref<19x8x64xf32, #tpu.memory_space<vmem>>, vector<16x8x64xf32>
    %39 = vector.broadcast %37 : vector<1x1x64xf32> to vector<16x8x64xf32>
    %40 = arith.mulf %39, %38 : vector<16x8x64xf32>
    %41 = arith.addf %34, %40 : vector<16x8x64xf32>
    %42 = vector.extract_strided_slice %19 {offsets = [3, 0], sizes = [1, 64], strides = [1, 1]} : vector<4x64xf32> to vector<1x64xf32>
    %43 = vector.shape_cast %42 : vector<1x64xf32> to vector<64xf32>
    %44 = vector.shape_cast %43 : vector<64xf32> to vector<1x1x64xf32>
    %c3_20 = arith.constant 3 : index
    %c0_21 = arith.constant 0 : index
    %c0_22 = arith.constant 0 : index
    %45 = vector.load %arg12[%c3_20, %c0_21, %c0_22] : memref<19x8x64xf32, #tpu.memory_space<vmem>>, vector<16x8x64xf32>
    %46 = vector.broadcast %44 : vector<1x1x64xf32> to vector<16x8x64xf32>
    %47 = arith.mulf %46, %45 : vector<16x8x64xf32>
    %48 = arith.addf %41, %47 : vector<16x8x64xf32>
    %c0_23 = arith.constant 0 : index
    %c0_24 = arith.constant 0 : index
    %49 = vector.load %arg5[%c0_23, %c0_24] : memref<1x64xf32, #tpu.memory_space<vmem>>, vector<1x64xf32>
    %50 = vector.shape_cast %49 : vector<1x64xf32> to vector<1x1x64xf32>
    %51 = vector.broadcast %50 : vector<1x1x64xf32> to vector<16x8x64xf32>
    %52 = arith.addf %48, %51 : vector<16x8x64xf32>
    %53 = arith.negf %52 : vector<16x8x64xf32>
    %54 = math.exp %53 : vector<16x8x64xf32>
    %cst_25 = arith.constant 1.000000e+00 : f32
    %55 = vector.broadcast %cst_25 : f32 to vector<16x8x64xf32>
    %56 = arith.addf %55, %54 : vector<16x8x64xf32>
    %57 = arith.divf %55, %56 : vector<16x8x64xf32>
    %58 = arith.mulf %52, %57 : vector<16x8x64xf32>
    %59 = vector.shape_cast %58 : vector<16x8x64xf32> to vector<128x64xf32>
    %c16 = arith.constant 16 : index
    %c0_26 = arith.constant 0 : index
    %c0_27 = arith.constant 0 : index
    %60 = vector.load %arg12[%c16, %c0_26, %c0_27] : memref<19x8x64xf32, #tpu.memory_space<vmem>>, vector<3x8x64xf32>
    %c0_28 = arith.constant 0 : index
    %c0_29 = arith.constant 0 : index
    %c0_30 = arith.constant 0 : index
    %61 = vector.load %arg12[%c0_28, %c0_29, %c0_30] : memref<19x8x64xf32, #tpu.memory_space<vmem>>, vector<3x8x64xf32>
    tpu.vector_store %arg12[%c0_28, %c0_29, %c0_30], %60 {strides = array<i32>} : memref<19x8x64xf32, #tpu.memory_space<vmem>>, vector<3x8x64xf32>,
    %c0_31 = arith.constant 0 : index
    %c0_32 = arith.constant 0 : index
    %62 = vector.load %arg14[%c0_31, %c0_32] : memref<128x64xf32, #tpu.memory_space<vmem>>, vector<128x64xf32>
    tpu.vector_store %arg14[%c0_31, %c0_32], %59 {strides = array<i32>} : memref<128x64xf32, #tpu.memory_space<vmem>>, vector<128x64xf32>,
    %63 = arith.truncf %59 : vector<128x64xf32> to vector<128x64xbf16>
    %c0_33 = arith.constant 0 : index
    %c0_34 = arith.constant 0 : index
    %64 = vector.load %arg6[%c0_33, %c0_34] : memref<64x80xbf16, #tpu.memory_space<vmem>>, vector<64x80xbf16>
    %cst_35 = arith.constant dense<0.000000e+00> : vector<128x80xf32>
    %65 = tpu.matmul %63, %64, %cst_35 {dimension_numbers = #tpu.dot_dimension_numbers<[1], [0], [0], [1], [0, 0, 1, 1], [], []>} : vector<128x64xbf16>, vector<64x80xbf16>, vector<128x80xf32> -> vector<128x80xf32>
    %66 = vector.extract_strided_slice %65 {offsets = [0, 0], sizes = [128, 64], strides = [1, 1]} : vector<128x80xf32> to vector<128x64xf32>
    %c0_36 = arith.constant 0 : index
    %c0_37 = arith.constant 0 : index
    %67 = vector.load %arg7[%c0_36, %c0_37] : memref<1x64xf32, #tpu.memory_space<vmem>>, vector<1x64xf32>
    %68 = vector.broadcast %67 : vector<1x64xf32> to vector<128x64xf32>
    %69 = arith.addf %66, %68 : vector<128x64xf32>
    %cst_38 = arith.constant 0.000000e+00 : f32
    %70 = vector.broadcast %cst_38 : f32 to vector<128x64xf32>
    %71 = arith.maximumf %69, %70 : vector<128x64xf32>
    %72 = vector.broadcast %cst_38 : f32 to vector<128x64xf32>
    %73 = arith.subf %69, %72 : vector<128x64xf32>
    %74 = arith.cmpf one, %73, %73 : vector<128x64xf32>
    %75 = vector.broadcast %cst_38 : f32 to vector<128x64xf32>
    %76 = arith.addf %69, %75 : vector<128x64xf32>
    %77 = math.absf %73 : vector<128x64xf32>
    %cst_39 = arith.constant 0.000000e+00 : f32
    %78 = vector.broadcast %cst_39 : f32 to vector<128x64xf32>
    %79 = arith.subf %78, %77 : vector<128x64xf32>
    %80 = math.exp %79 : vector<128x64xf32>
    %81 = math.log1p %80 : vector<128x64xf32>
    %82 = arith.addf %71, %81 : vector<128x64xf32>
    %83 = arith.select %74, %76, %82 : vector<128x64xi1>, vector<128x64xf32>
    %84 = vector.extract_strided_slice %65 {offsets = [0, 64], sizes = [128, 8], strides = [1, 1]} : vector<128x80xf32> to vector<128x8xf32>
    %85 = vector.extract_strided_slice %65 {offsets = [0, 72], sizes = [128, 8], strides = [1, 1]} : vector<128x80xf32> to vector<128x8xf32>
    %c0_40 = arith.constant 0 : index
    %c0_41 = arith.constant 0 : index
    %86 = vector.load %arg18[%c0_40, %c0_41] : memref<128x8xf32, #tpu.memory_space<vmem>>, vector<128x8xf32>
    tpu.vector_store %arg18[%c0_40, %c0_41], %85 {strides = array<i32>} : memref<128x8xf32, #tpu.memory_space<vmem>>, vector<128x8xf32>,
    %c0_42 = arith.constant 0 : index
    %c0_43 = arith.constant 0 : index
    %87 = vector.load %arg8[%c0_42, %c0_43] : memref<8x64xf32, #tpu.memory_space<vmem>>, vector<8x64xf32>
    %88 = vector.shape_cast %83 : vector<128x64xf32> to vector<128x1x64xf32>
    %89 = vector.shape_cast %87 : vector<8x64xf32> to vector<1x8x64xf32>
    %90 = vector.broadcast %88 : vector<128x1x64xf32> to vector<128x8x64xf32>
    %91 = vector.broadcast %89 : vector<1x8x64xf32> to vector<128x8x64xf32>
    %92 = arith.mulf %90, %91 : vector<128x8x64xf32>
    %93 = math.exp %92 : vector<128x8x64xf32>
    %c0_44 = arith.constant 0 : index
    %c0_45 = arith.constant 0 : index
    %c0_46 = arith.constant 0 : index
    %94 = vector.load %arg16[%c0_44, %c0_45, %c0_46] : memref<128x8x64xf32, #tpu.memory_space<vmem>>, vector<128x8x64xf32>
    tpu.vector_store %arg16[%c0_44, %c0_45, %c0_46], %93 {strides = array<i32>} : memref<128x8x64xf32, #tpu.memory_space<vmem>>, vector<128x8x64xf32>,
    %95 = arith.mulf %83, %59 : vector<128x64xf32>
    %96 = vector.shape_cast %95 : vector<128x64xf32> to vector<128x1x64xf32>
    %97 = vector.shape_cast %84 : vector<128x8xf32> to vector<128x8x1xf32>
    %98 = vector.broadcast %96 : vector<128x1x64xf32> to vector<128x8x64xf32>
    %99 = vector.broadcast %97 : vector<128x8x1xf32> to vector<128x8x64xf32>
    %100 = arith.mulf %98, %99 : vector<128x8x64xf32>
    %c0_47 = arith.constant 0 : index
    %c0_48 = arith.constant 0 : index
    %c0_49 = arith.constant 0 : index
    %101 = vector.load %arg17[%c0_47, %c0_48, %c0_49] : memref<128x8x64xf32, #tpu.memory_space<vmem>>, vector<128x8x64xf32>
    tpu.vector_store %arg17[%c0_47, %c0_48, %c0_49], %100 {strides = array<i32>} : memref<128x8x64xf32, #tpu.memory_space<vmem>>, vector<128x8x64xf32>,
    %c0_50 = arith.constant 0 : index
    %c0_51 = arith.constant 0 : index
    %c0_52 = arith.constant 0 : index
    %102 = vector.load %arg13[%c0_50, %c0_51, %c0_52] : memref<8x8x64xf32, #tpu.memory_space<vmem>>, vector<8x8x64xf32>
    %c0_i32_53 = arith.constant 0 : i32
    %c16_i32 = arith.constant 16 : i32
    %103 = arith.addi %c0_i32_53, %c16_i32 : i32
    %c1_i32 = arith.constant 1 : i32
    %104 = scf.for %arg20 = %c0_i32_53 to %103 step %c1_i32 iter_args(%arg21 = %102) -> (vector<8x8x64xf32>)  : i32 {
      %c8_i32 = arith.constant 8 : i32
      %119 = arith.muli %arg20, %c8_i32 : i32
      %120 = tpu.assume_multiple %119, 8 : i32
      %121 = arith.index_cast %120 : i32 to index
      %c0_72 = arith.constant 0 : index
      %c0_73 = arith.constant 0 : index
      %122 = vector.load %arg16[%121, %c0_72, %c0_73] : memref<128x8x64xf32, #tpu.memory_space<vmem>>, vector<8x8x64xf32>
      %123 = arith.mulf %122, %arg21 : vector<8x8x64xf32>
      %124 = arith.index_cast %120 : i32 to index
      %c0_74 = arith.constant 0 : index
      %c0_75 = arith.constant 0 : index
      %125 = vector.load %arg17[%124, %c0_74, %c0_75] : memref<128x8x64xf32, #tpu.memory_space<vmem>>, vector<8x8x64xf32>
      %126 = arith.addf %123, %125 : vector<8x8x64xf32>
      %127 = arith.index_cast %120 : i32 to index
      %c0_76 = arith.constant 0 : index
      %128 = vector.load %arg18[%127, %c0_76] : memref<128x8xf32, #tpu.memory_space<vmem>>, vector<8x8xf32>
      %129 = vector.shape_cast %128 : vector<8x8xf32> to vector<8x8x1xf32>
      %130 = vector.broadcast %129 : vector<8x8x1xf32> to vector<8x8x64xf32>
      %131 = arith.mulf %126, %130 : vector<8x8x64xf32>
      %cst_77 = arith.constant dense<0.000000e+00> : vector<8x64xf32>
      %132 = vector.multi_reduction <add>, %131, %cst_77 [1] : vector<8x8x64xf32> to vector<8x64xf32>
      %133 = arith.index_cast %120 : i32 to index
      %c0_78 = arith.constant 0 : index
      %134 = vector.load %arg19[%133, %c0_78] : memref<128x64xf32, #tpu.memory_space<vmem>>, vector<8x64xf32>
      tpu.vector_store %arg19[%133, %c0_78], %132 {strides = array<i32>} : memref<128x64xf32, #tpu.memory_space<vmem>>, vector<8x64xf32>,
      scf.yield %126 : vector<8x8x64xf32>
    }
    %c16_i32_54 = arith.constant 16 : i32
    %c0_55 = arith.constant 0 : index
    %c0_56 = arith.constant 0 : index
    %c0_57 = arith.constant 0 : index
    %105 = vector.load %arg13[%c0_55, %c0_56, %c0_57] : memref<8x8x64xf32, #tpu.memory_space<vmem>>, vector<8x8x64xf32>
    tpu.vector_store %arg13[%c0_55, %c0_56, %c0_57], %104 {strides = array<i32>} : memref<8x8x64xf32, #tpu.memory_space<vmem>>, vector<8x8x64xf32>,
    %c0_58 = arith.constant 0 : index
    %c0_59 = arith.constant 0 : index
    %106 = vector.load %arg19[%c0_58, %c0_59] : memref<128x64xf32, #tpu.memory_space<vmem>>, vector<128x64xf32>
    %c0_60 = arith.constant 0 : index
    %c0_61 = arith.constant 0 : index
    %107 = vector.load %arg14[%c0_60, %c0_61] : memref<128x64xf32, #tpu.memory_space<vmem>>, vector<128x64xf32>
    %c0_62 = arith.constant 0 : index
    %c0_63 = arith.constant 0 : index
    %108 = vector.load %arg9[%c0_62, %c0_63] : memref<1x64xf32, #tpu.memory_space<vmem>>, vector<1x64xf32>
    %109 = vector.broadcast %108 : vector<1x64xf32> to vector<128x64xf32>
    %110 = arith.mulf %107, %109 : vector<128x64xf32>
    %111 = arith.addf %106, %110 : vector<128x64xf32>
    %c0_64 = arith.constant 0 : index
    %c0_65 = arith.constant 0 : index
    %112 = vector.load %arg15[%c0_64, %c0_65] : memref<128x64xf32, #tpu.memory_space<vmem>>, vector<128x64xf32>
    %113 = arith.mulf %111, %112 : vector<128x64xf32>
    %114 = arith.truncf %113 : vector<128x64xf32> to vector<128x64xbf16>
    %c0_66 = arith.constant 0 : index
    %c0_67 = arith.constant 0 : index
    %115 = vector.load %arg10[%c0_66, %c0_67] : memref<64x32xbf16, #tpu.memory_space<vmem>>, vector<64x32xbf16>
    %cst_68 = arith.constant dense<0.000000e+00> : vector<128x32xf32>
    %116 = tpu.matmul %114, %115, %cst_68 {dimension_numbers = #tpu.dot_dimension_numbers<[1], [0], [0], [1], [0, 0, 1, 1], [], []>} : vector<128x64xbf16>, vector<64x32xbf16>, vector<128x32xf32> -> vector<128x32xf32>
    %117 = vector.shape_cast %116 : vector<128x32xf32> to vector<16x8x32xf32>
    %c0_69 = arith.constant 0 : index
    %c0_70 = arith.constant 0 : index
    %c0_71 = arith.constant 0 : index
    %118 = vector.load %arg11[%c0_69, %c0_70, %c0_71] : memref<16x8x32xf32, #tpu.memory_space<vmem>>, vector<16x8x32xf32>
    tpu.vector_store %arg11[%c0_69, %c0_70, %c0_71], %117 {strides = array<i32>} : memref<16x8x32xf32, #tpu.memory_space<vmem>>, vector<16x8x32xf32>,
    return
  }
  func.func @transform_0(%arg0: i32, %arg1: i32) -> (i32, i32, i32) {
    %c0_i32 = arith.constant 0 : i32
    %c0_i32_0 = arith.constant 0 : i32
    return %arg1, %arg0, %c0_i32 : i32, i32, i32
  }
  func.func @transform_1(%arg0: i32, %arg1: i32) -> (i32, i32) {
    %c0_i32 = arith.constant 0 : i32
    %c0_i32_0 = arith.constant 0 : i32
    %c0_i32_1 = arith.constant 0 : i32
    return %c0_i32, %c0_i32_0 : i32, i32
  }
  func.func @transform_2(%arg0: i32, %arg1: i32) -> (i32, i32) {
    %c0_i32 = arith.constant 0 : i32
    %c0_i32_0 = arith.constant 0 : i32
    %c0_i32_1 = arith.constant 0 : i32
    return %c0_i32, %c0_i32_0 : i32, i32
  }
  func.func @transform_3(%arg0: i32, %arg1: i32) -> (i32, i32) {
    %c0_i32 = arith.constant 0 : i32
    %c0_i32_0 = arith.constant 0 : i32
    %c0_i32_1 = arith.constant 0 : i32
    return %c0_i32, %c0_i32_0 : i32, i32
  }
  func.func @transform_4(%arg0: i32, %arg1: i32) -> (i32, i32) {
    %c0_i32 = arith.constant 0 : i32
    %c0_i32_0 = arith.constant 0 : i32
    %c0_i32_1 = arith.constant 0 : i32
    return %c0_i32, %c0_i32_0 : i32, i32
  }
  func.func @transform_5(%arg0: i32, %arg1: i32) -> (i32, i32) {
    %c0_i32 = arith.constant 0 : i32
    %c0_i32_0 = arith.constant 0 : i32
    %c0_i32_1 = arith.constant 0 : i32
    return %c0_i32, %c0_i32_0 : i32, i32
  }
  func.func @transform_6(%arg0: i32, %arg1: i32) -> (i32, i32) {
    %c0_i32 = arith.constant 0 : i32
    %c0_i32_0 = arith.constant 0 : i32
    %c0_i32_1 = arith.constant 0 : i32
    return %c0_i32, %c0_i32_0 : i32, i32
  }
  func.func @transform_7(%arg0: i32, %arg1: i32) -> (i32, i32) {
    %c0_i32 = arith.constant 0 : i32
    %c0_i32_0 = arith.constant 0 : i32
    %c0_i32_1 = arith.constant 0 : i32
    return %c0_i32, %c0_i32_0 : i32, i32
  }
  func.func @transform_8(%arg0: i32, %arg1: i32) -> (i32, i32) {
    %c0_i32 = arith.constant 0 : i32
    %c0_i32_0 = arith.constant 0 : i32
    %c0_i32_1 = arith.constant 0 : i32
    return %c0_i32, %c0_i32_0 : i32, i32
  }
  func.func @transform_9(%arg0: i32, %arg1: i32) -> (i32, i32, i32) {
    %c0_i32 = arith.constant 0 : i32
    %c0_i32_0 = arith.constant 0 : i32
    return %arg1, %arg0, %c0_i32 : i32, i32, i32
  }
}

</mosaic_0001>

<llo_original>
// kernel: tpu_custom_call.1
$region0: #{tpu_custom_call.1}
  #allocation0 [shape = 'u32[]', space=smem, size = 0x4, offset = 0x4, fixed_abs, tag = 'smem constant byte address 0x4 - core index']
  #allocation1 [shape = 'u32[144,128]{1,0:T(1,128)}', space=vmem, size = 0x12000, scoped, tag = 'internal scratch']
  #allocation2 [shape = 'f32[19,8,64]{2,1,0:T(8,128)}', space=vmem, size = 0x13000, scoped, tag = 'scratch operand']
  #allocation3 [shape = 'f32[8,8,64]{2,1,0:T(8,128)}', space=vmem, size = 0x8000, scoped, tag = 'scratch operand']
  #allocation4 [shape = 'f32[128,64]{1,0:T(8,128)}', space=vmem, size = 0x10000, scoped, tag = 'scratch operand']
  #allocation5 [shape = 'f32[128,64]{1,0:T(8,128)}', space=vmem, size = 0x10000, scoped, tag = 'scratch operand']
  #allocation6 [shape = 'f32[128,8,64]{2,1,0:T(8,128)}', space=vmem, size = 0x80000, scoped, tag = 'scratch operand']
  #allocation7 [shape = 'f32[128,8,64]{2,1,0:T(8,128)}', space=vmem, size = 0x80000, scoped, tag = 'scratch operand']
  #allocation8 [shape = 'f32[128,8]{1,0:T(8,128)}', space=vmem, size = 0x10000, scoped, tag = 'scratch operand']
  #allocation9 [shape = 'f32[128,64]{1,0:T(8,128)}', space=vmem, size = 0x10000, scoped, tag = 'scratch operand']
  %s0 = inlined_call_operand.hbm [shape: f32[16,16,32], index: 0, kind: input, shape index: {}]
  %s1 = inlined_call_operand.vmem [shape: bf16[32,128], index: 1, kind: input, shape index: {}]
  %s2 = inlined_call_operand.vmem [shape: f32[4,64], index: 2, kind: input, shape index: {}]
  %s3 = inlined_call_operand.vmem [shape: f32[1,64], index: 3, kind: input, shape index: {}]
  %s4 = inlined_call_operand.vmem [shape: bf16[64,80], index: 4, kind: input, shape index: {}]
  %s5 = inlined_call_operand.vmem [shape: f32[1,64], index: 5, kind: input, shape index: {}]
  %s6 = inlined_call_operand.vmem [shape: f32[8,64], index: 6, kind: input, shape index: {}]
  %s7 = inlined_call_operand.hbm [shape: f32[1,64], index: 7, kind: input, shape index: {}]
  %s8 = inlined_call_operand.vmem [shape: bf16[64,32], index: 8, kind: input, shape index: {}]
  %s9 = inlined_call_operand.hbm [shape: f32[16,16,32], index: 9, kind: output, shape index: {}]
  %s10 = sld [smem:[#allocation0]]
  $region88: #{tpu_custom_call.1} parent=0
    _
  %s12 = ssub.s32 1, %s10
  %s13 = scalar_select 0, %s12, %s10
  $region1: #{tpu_custom_call.1} parent=0
    #allocation10 [shape = 'u8[131072]{0}', space=vmem, size = 0x20000, scoped, tag = 'input window, operand 0']
    #allocation11 [shape = 's32[2]{0}', space=sflag, size = 0x8, scoped, tag = 'scoped memory for tpu_custom_call.1']
    #allocation12 [shape = 's32[2]{0}', space=sflag, size = 0x8, scoped, tag = 'scoped memory for tpu_custom_call.1']
    #allocation13 [shape = 'u8[512]{0}', space=vmem, size = 0x400, scoped, tag = 'input window, operand 7, single buffered']
    #allocation14 [shape = 's32[1]{0}', space=sflag, size = 0x4, scoped, tag = 'scoped memory for tpu_custom_call.1']
    #allocation15 [shape = 'u8[131072]{0}', space=vmem, size = 0x20000, scoped, tag = 'output window, operand 0']
    %14 = vsyncpa [#allocation11], 0
    %s15 = scalar_lea.sflag [#allocation11], 1
    %16 = vsyncpa %s15, 0
    %17 = vsyncpa [#allocation14], 0
    %18 = vsyncpa [#allocation12], 0
    %s19 = scalar_lea.sflag [#allocation12], 1
    %20 = vsyncpa %s19, 0
    loop: start=0, step=1, limit=4
    $region2: #{tpu_custom_call.1} parent=1 // loop_pre_header
      _
    $region3: #{tpu_custom_call.1} parent=1 // loop_header
      %s22 = sphi 0, %s26
      %p23 = scmp.ge.s32.totalorder %s22, 4
      %s29 = sphi 0, %s41
      %s30 = sphi 0, %s37
      %s31 = sphi 0, %s29
      %s32 = sphi 0, %s30
      %s33 = sphi 0, %s31
      %s34 = sphi 0, %s32
      %s46 = sphi 0, %s48
      %s49 = sphi 0, %s46
      %s50 = sphi 0, %s49
      %s66 = sphi 0, %s50
      %s70 = sphi 0, %s70
      %s72 = sphi 0, %s70
      %s73 = sphi 0, %s72
      %s87 = sphi 0, %s73
      %s91 = sphi 0, %s91
      %s93 = sphi 0, %s91
      %s94 = sphi 0, %s93
      %s108 = sphi 0, %s94
      %s112 = sphi 0, %s112
      %s114 = sphi 0, %s112
      %s115 = sphi 0, %s114
      %s129 = sphi 0, %s115
      %s133 = sphi 0, %s133
      %s135 = sphi 0, %s133
      %s136 = sphi 0, %s135
      %s150 = sphi 0, %s136
      %s154 = sphi 0, %s154
      %s156 = sphi 0, %s154
      %s157 = sphi 0, %s156
      %s171 = sphi 0, %s157
      %s175 = sphi 0, %s175
      %s177 = sphi 0, %s175
      %s178 = sphi 0, %s177
      %s192 = sphi 0, %s178
      %s196 = sphi 0, %s196
      %s198 = sphi 0, %s196
      %s199 = sphi 0, %s198
      %s213 = sphi 0, %s199
      %s217 = sphi 0, %s217
      %s219 = sphi 0, %s217
      %s220 = sphi 0, %s219
      %s234 = sphi 0, %s220
      %s242 = sphi 0, %s244
      %s245 = sphi 0, %s242
      %s246 = sphi 0, %s245
      %s262 = sphi 0, %s246
    $region4: #{tpu_custom_call.1} parent=1 // loop_header_branch
      %25 = sbr.rel (%p23) target = $region8
    $region5: #{tpu_custom_call.1} parent=1 // loop_body
      %s27 = ssub.s32 %s22, 1
      %s28 = ssub.s32 %s22, 2
      %s35 = sadd.s32 1, %s30
      %p36 = scmp.ge.s32.totalorder %s35, 1
      %s37 = scalar_select %p36, 0, %s35
      %s38 = sadd.s32 1, %s29
      %s39 = scalar_select %p36, %s38, %s29
      %p40 = scmp.ge.s32.totalorder %s39, 2
      %s41 = scalar_select %p40, 0, %s39
      %s42 = ssub.s32 %s30, %s37
      %s43 = ssub.s32 %s29, %s41
      %s44 = sor.u32 %s42, %s43
      %p45 = scmp.eq.s32.totalorder %s44, 0
      %s47 = sadd.s32 %s46, 1
      %s48 = scalar_select %p45, %s46, %s47
      %p51 = pneg %p45
      %p52 = scmp.eq.s32.totalorder %s22, 1
      %p53 = por %p51, %p52
      %p54 = scmp.ne.s32.totalorder %s46, %s49
      %p55 = scmp.eq.s32.totalorder %s22, 0
      %p56 = por %p54, %p55
      %p57 = scmp.ne.s32.totalorder %s46, %s49
      %p58 = scmp.eq.s32.totalorder %s27, 1
      %p59 = por %p57, %p58
      %p60 = scmp.ne.s32.totalorder %s49, %s50
      %p61 = scmp.eq.s32.totalorder %s27, 0
      %p62 = por %p60, %p61
      %p63 = scmp.ne.s32.totalorder %s49, %s50
      %p64 = scmp.eq.s32.totalorder %s28, 1
      %p65 = por %p63, %p64
      %p67 = scmp.ne.s32.totalorder %s50, %s66
      %p68 = scmp.eq.s32.totalorder %s28, 0
      %p69 = por %p67, %p68
      %s71 = sadd.s32 %s70, 1
      %p74 = scmp.eq.s32.totalorder %s22, 1
      %p75 = scmp.ne.s32.totalorder %s70, %s72
      %p76 = scmp.eq.s32.totalorder %s22, 0
      %p77 = por %p75, %p76
      %p78 = scmp.ne.s32.totalorder %s70, %s72
      %p79 = scmp.eq.s32.totalorder %s27, 1
      %p80 = por %p78, %p79
      %p81 = scmp.ne.s32.totalorder %s72, %s73
      %p82 = scmp.eq.s32.totalorder %s27, 0
      %p83 = por %p81, %p82
      %p84 = scmp.ne.s32.totalorder %s72, %s73
      %p85 = scmp.eq.s32.totalorder %s28, 1
      %p86 = por %p84, %p85
      %p88 = scmp.ne.s32.totalorder %s73, %s87
      %p89 = scmp.eq.s32.totalorder %s28, 0
      %p90 = por %p88, %p89
      %s92 = sadd.s32 %s91, 1
      %p95 = scmp.eq.s32.totalorder %s22, 1
      %p96 = scmp.ne.s32.totalorder %s91, %s93
      %p97 = scmp.eq.s32.totalorder %s22, 0
      %p98 = por %p96, %p97
      %p99 = scmp.ne.s32.totalorder %s91, %s93
      %p100 = scmp.eq.s32.totalorder %s27, 1
      %p101 = por %p99, %p100
      %p102 = scmp.ne.s32.totalorder %s93, %s94
      %p103 = scmp.eq.s32.totalorder %s27, 0
      %p104 = por %p102, %p103
      %p105 = scmp.ne.s32.totalorder %s93, %s94
      %p106 = scmp.eq.s32.totalorder %s28, 1
      %p107 = por %p105, %p106
      %p109 = scmp.ne.s32.totalorder %s94, %s108
      %p110 = scmp.eq.s32.totalorder %s28, 0
      %p111 = por %p109, %p110
      %s113 = sadd.s32 %s112, 1
      %p116 = scmp.eq.s32.totalorder %s22, 1
      %p117 = scmp.ne.s32.totalorder %s112, %s114
      %p118 = scmp.eq.s32.totalorder %s22, 0
      %p119 = por %p117, %p118
      %p120 = scmp.ne.s32.totalorder %s112, %s114
      %p121 = scmp.eq.s32.totalorder %s27, 1
      %p122 = por %p120, %p121
      %p123 = scmp.ne.s32.totalorder %s114, %s115
      %p124 = scmp.eq.s32.totalorder %s27, 0
      %p125 = por %p123, %p124
      %p126 = scmp.ne.s32.totalorder %s114, %s115
      %p127 = scmp.eq.s32.totalorder %s28, 1
      %p128 = por %p126, %p127
      %p130 = scmp.ne.s32.totalorder %s115, %s129
      %p131 = scmp.eq.s32.totalorder %s28, 0
      %p132 = por %p130, %p131
      %s134 = sadd.s32 %s133, 1
      %p137 = scmp.eq.s32.totalorder %s22, 1
      %p138 = scmp.ne.s32.totalorder %s133, %s135
      %p139 = scmp.eq.s32.totalorder %s22, 0
      %p140 = por %p138, %p139
      %p141 = scmp.ne.s32.totalorder %s133, %s135
      %p142 = scmp.eq.s32.totalorder %s27, 1
      %p143 = por %p141, %p142
      %p144 = scmp.ne.s32.totalorder %s135, %s136
      %p145 = scmp.eq.s32.totalorder %s27, 0
      %p146 = por %p144, %p145
      %p147 = scmp.ne.s32.totalorder %s135, %s136
      %p148 = scmp.eq.s32.totalorder %s28, 1
      %p149 = por %p147, %p148
      %p151 = scmp.ne.s32.totalorder %s136, %s150
      %p152 = scmp.eq.s32.totalorder %s28, 0
      %p153 = por %p151, %p152
      %s155 = sadd.s32 %s154, 1
      %p158 = scmp.eq.s32.totalorder %s22, 1
      %p159 = scmp.ne.s32.totalorder %s154, %s156
      %p160 = scmp.eq.s32.totalorder %s22, 0
      %p161 = por %p159, %p160
      %p162 = scmp.ne.s32.totalorder %s154, %s156
      %p163 = scmp.eq.s32.totalorder %s27, 1
      %p164 = por %p162, %p163
      %p165 = scmp.ne.s32.totalorder %s156, %s157
      %p166 = scmp.eq.s32.totalorder %s27, 0
      %p167 = por %p165, %p166
      %p168 = scmp.ne.s32.totalorder %s156, %s157
      %p169 = scmp.eq.s32.totalorder %s28, 1
      %p170 = por %p168, %p169
      %p172 = scmp.ne.s32.totalorder %s157, %s171
      %p173 = scmp.eq.s32.totalorder %s28, 0
      %p174 = por %p172, %p173
      %s176 = sadd.s32 %s175, 1
      %p179 = scmp.eq.s32.totalorder %s22, 1
      %p180 = scmp.ne.s32.totalorder %s175, %s177
      %p181 = scmp.eq.s32.totalorder %s22, 0
      %p182 = por %p180, %p181
      %p183 = scmp.ne.s32.totalorder %s175, %s177
      %p184 = scmp.eq.s32.totalorder %s27, 1
      %p185 = por %p183, %p184
      %p186 = scmp.ne.s32.totalorder %s177, %s178
      %p187 = scmp.eq.s32.totalorder %s27, 0
      %p188 = por %p186, %p187
      %p189 = scmp.ne.s32.totalorder %s177, %s178
      %p190 = scmp.eq.s32.totalorder %s28, 1
      %p191 = por %p189, %p190
      %p193 = scmp.ne.s32.totalorder %s178, %s192
      %p194 = scmp.eq.s32.totalorder %s28, 0
      %p195 = por %p193, %p194
      %s197 = sadd.s32 %s196, 1
      %p200 = scmp.eq.s32.totalorder %s22, 1
      %p201 = scmp.ne.s32.totalorder %s196, %s198
      %p202 = scmp.eq.s32.totalorder %s22, 0
      %p203 = por %p201, %p202
      %p204 = scmp.ne.s32.totalorder %s196, %s198
      %p205 = scmp.eq.s32.totalorder %s27, 1
      %p206 = por %p204, %p205
      %p207 = scmp.ne.s32.totalorder %s198, %s199
      %p208 = scmp.eq.s32.totalorder %s27, 0
      %p209 = por %p207, %p208
      %p210 = scmp.ne.s32.totalorder %s198, %s199
      %p211 = scmp.eq.s32.totalorder %s28, 1
      %p212 = por %p210, %p211
      %p214 = scmp.ne.s32.totalorder %s199, %s213
      %p215 = scmp.eq.s32.totalorder %s28, 0
      %p216 = por %p214, %p215
      %s218 = sadd.s32 %s217, 1
      %p221 = scmp.eq.s32.totalorder %s22, 1
      %p222 = scmp.ne.s32.totalorder %s217, %s219
      %p223 = scmp.eq.s32.totalorder %s22, 0
      %p224 = por %p222, %p223
      %p225 = scmp.ne.s32.totalorder %s217, %s219
      %p226 = scmp.eq.s32.totalorder %s27, 1
      %p227 = por %p225, %p226
      %p228 = scmp.ne.s32.totalorder %s219, %s220
      %p229 = scmp.eq.s32.totalorder %s27, 0
      %p230 = por %p228, %p229
      %p231 = scmp.ne.s32.totalorder %s219, %s220
      %p232 = scmp.eq.s32.totalorder %s28, 1
      %p233 = por %p231, %p232
      %p235 = scmp.ne.s32.totalorder %s220, %s234
      %p236 = scmp.eq.s32.totalorder %s28, 0
      %p237 = por %p235, %p236
      %s238 = ssub.s32 %s30, %s37
      %s239 = ssub.s32 %s29, %s41
      %s240 = sor.u32 %s238, %s239
      %p241 = scmp.eq.s32.totalorder %s240, 0
      %s243 = sadd.s32 %s242, 1
      %s244 = scalar_select %p241, %s242, %s243
      %p247 = pneg %p241
      %p248 = scmp.eq.s32.totalorder %s22, 1
      %p249 = por %p247, %p248
      %p250 = scmp.ne.s32.totalorder %s242, %s245
      %p251 = scmp.eq.s32.totalorder %s22, 0
      %p252 = por %p250, %p251
      %p253 = scmp.ne.s32.totalorder %s242, %s245
      %p254 = scmp.eq.s32.totalorder %s27, 1
      %p255 = por %p253, %p254
      %p256 = scmp.ne.s32.totalorder %s245, %s246
      %p257 = scmp.eq.s32.totalorder %s27, 0
      %p258 = por %p256, %p257
      %p259 = scmp.ne.s32.totalorder %s245, %s246
      %p260 = scmp.eq.s32.totalorder %s28, 1
      %p261 = por %p259, %p260
      %p263 = scmp.ne.s32.totalorder %s246, %s262
      %p264 = scmp.eq.s32.totalorder %s28, 0
      %p265 = por %p263, %p264
      %p266 = scmp.le.s32.totalorder 1, %s22
      %p267 = scmp.lt.s32.totalorder %s22, 3
      %p268 = pnand %p266, %p267
      %p269 = pneg %p268
      // Predicated region
      $region9: #{tpu_custom_call.1} parent=5 // pred_check
        _
      $region10: #{tpu_custom_call.1} parent=5 // pred_check_branch
        %271 = sbr.rel (%p268) target = $region12
      $region11: #{tpu_custom_call.1} parent=5 // pred_region
        %s272 = ssub.s32 %s22, 1
        // Predicated region
        $region13: #{tpu_custom_call.1} parent=11 // pred_check
          %p273 = pneg %p83
        $region14: #{tpu_custom_call.1} parent=11 // pred_check_branch
          %275 = sbr.rel (%p273) target = $region16
        $region15: #{tpu_custom_call.1} parent=11 // pred_region
          _
        $region16: #{tpu_custom_call.1} parent=11 // pred_fallthru
          _
        // Predicated region
        $region17: #{tpu_custom_call.1} parent=11 // pred_check
          %p276 = pneg %p104
        $region18: #{tpu_custom_call.1} parent=11 // pred_check_branch
          %278 = sbr.rel (%p276) target = $region20
        $region19: #{tpu_custom_call.1} parent=11 // pred_region
          _
        $region20: #{tpu_custom_call.1} parent=11 // pred_fallthru
          _
        // Predicated region
        $region21: #{tpu_custom_call.1} parent=11 // pred_check
          %p279 = pneg %p125
        $region22: #{tpu_custom_call.1} parent=11 // pred_check_branch
          %281 = sbr.rel (%p279) target = $region24
        $region23: #{tpu_custom_call.1} parent=11 // pred_region
          _
        $region24: #{tpu_custom_call.1} parent=11 // pred_fallthru
          _
        // Predicated region
        $region25: #{tpu_custom_call.1} parent=11 // pred_check
          %p282 = pneg %p146
        $region26: #{tpu_custom_call.1} parent=11 // pred_check_branch
          %284 = sbr.rel (%p282) target = $region28
        $region27: #{tpu_custom_call.1} parent=11 // pred_region
          _
        $region28: #{tpu_custom_call.1} parent=11 // pred_fallthru
          _
        // Predicated region
        $region29: #{tpu_custom_call.1} parent=11 // pred_check
          %p285 = pneg %p167
        $region30: #{tpu_custom_call.1} parent=11 // pred_check_branch
          %287 = sbr.rel (%p285) target = $region32
        $region31: #{tpu_custom_call.1} parent=11 // pred_region
          _
        $region32: #{tpu_custom_call.1} parent=11 // pred_fallthru
          _
        // Predicated region
        $region33: #{tpu_custom_call.1} parent=11 // pred_check
          %p288 = pneg %p188
        $region34: #{tpu_custom_call.1} parent=11 // pred_check_branch
          %290 = sbr.rel (%p288) target = $region36
        $region35: #{tpu_custom_call.1} parent=11 // pred_region
          _
        $region36: #{tpu_custom_call.1} parent=11 // pred_fallthru
          _
        // Predicated region
        $region37: #{tpu_custom_call.1} parent=11 // pred_check
          %p291 = pneg %p209
        $region38: #{tpu_custom_call.1} parent=11 // pred_check_branch
          %293 = sbr.rel (%p291) target = $region40
        $region39: #{tpu_custom_call.1} parent=11 // pred_region
          %s295 = ssub.s32 16, 16
          %296 = vsyncadd [#allocation14], %s295
          %s298 = sshll.u32 [#allocation13], 4
          %s299 = int_to_ptr.vmem [resolvable:$true] %s298
          %301 = dma.hbm_to_vmem [thread:$0]  %s7, 16, %s299, [#allocation14]
        $region40: #{tpu_custom_call.1} parent=11 // pred_fallthru
          _
        // Predicated region
        $region41: #{tpu_custom_call.1} parent=11 // pred_check
          %p302 = pneg %p230
        $region42: #{tpu_custom_call.1} parent=11 // pred_check_branch
          %304 = sbr.rel (%p302) target = $region44
        $region43: #{tpu_custom_call.1} parent=11 // pred_region
          _
        $region44: #{tpu_custom_call.1} parent=11 // pred_fallthru
          _
      $region12: #{tpu_custom_call.1} parent=5 // pred_fallthru
        _
      %p305 = scmp.lt.s32.totalorder %s22, 2
      // Predicated region
      $region45: #{tpu_custom_call.1} parent=5 // pred_check
        %p306 = pneg %p305
      $region46: #{tpu_custom_call.1} parent=5 // pred_check_branch
        %308 = sbr.rel (%p306) target = $region48
      $region47: #{tpu_custom_call.1} parent=5 // pred_region
        // Predicated region
        $region49: #{tpu_custom_call.1} parent=47 // pred_check
          %p309 = pneg %p56
        $region50: #{tpu_custom_call.1} parent=47 // pred_check_branch
          %311 = sbr.rel (%p309) target = $region52
        $region51: #{tpu_custom_call.1} parent=47 // pred_region
          %s312 = sand.u32 %s46, 1
          %s313 = scalar_lea.sflag [#allocation11], %s312
          %s314 = sand.u32 %s46, 1
          %s315 = smul.addr %s314, 128
          %s316 = scalar_lea.vmem [#allocation10], %s315
          %s317 = smul.u32 16, %s30
          %s319 = ssub.s32 2048, 2048
          %320 = vsyncadd %s313, %s319
          %s321 = smul.addr %s317, 2
          %s322 = sadd.s32 %s29, %s321
          %s323 = smul.addr %s322, 128
          %s324 = scalar_lea.hbm %s0, %s323
          %s325 = sshll.u32 %s316, 4
          %s326 = int_to_ptr.vmem [resolvable:$true] %s325
          %331 = dma.hbm_to_vmem [thread:$0]  %s324, 2048, %s326, %s313, 256, 128, 8
        $region52: #{tpu_custom_call.1} parent=47 // pred_fallthru
          _
      $region48: #{tpu_custom_call.1} parent=5 // pred_fallthru
        _
      %p332 = scmp.le.s32.totalorder 1, %s22
      %p333 = scmp.lt.s32.totalorder %s22, 3
      %p334 = pnand %p332, %p333
      %p335 = pneg %p334
      // Predicated region
      $region53: #{tpu_custom_call.1} parent=5 // pred_check
        _
      $region54: #{tpu_custom_call.1} parent=5 // pred_check_branch
        %337 = sbr.rel (%p334) target = $region56
      $region55: #{tpu_custom_call.1} parent=5 // pred_region
        %s338 = ssub.s32 %s22, 1
        %s339 = sand.u32 %s49, 1
        %s340 = scalar_lea.sflag [#allocation11], %s339
        %s341 = sand.u32 %s49, 1
        %s342 = smul.addr %s341, 128
        %s343 = scalar_lea.vmem [#allocation10], %s342
        // Predicated region
        $region57: #{tpu_custom_call.1} parent=55 // pred_check
          %p344 = pneg %p62
        $region58: #{tpu_custom_call.1} parent=55 // pred_check_branch
          %346 = sbr.rel (%p344) target = $region60
        $region59: #{tpu_custom_call.1} parent=55 // pred_region
          %347 = dma.done %s340, 2048
        $region60: #{tpu_custom_call.1} parent=55 // pred_fallthru
          _
        // Predicated region
        $region61: #{tpu_custom_call.1} parent=55 // pred_check
          %p348 = pneg %p209
        $region62: #{tpu_custom_call.1} parent=55 // pred_check_branch
          %350 = sbr.rel (%p348) target = $region64
        $region63: #{tpu_custom_call.1} parent=55 // pred_region
          %351 = dma.done [#allocation14], 16
        $region64: #{tpu_custom_call.1} parent=55 // pred_fallthru
          _
        %s352 = sand.u32 %s49, 1
        %s353 = scalar_lea.sflag [#allocation11], %s352
        %s354 = sand.u32 %s49, 1
        %s355 = smul.addr %s354, 128
        %s356 = scalar_lea.vmem [#allocation10], %s355
        %p357 = pneg %p62
        %p358 = pneg %p59
        %p359 = pneg %p83
        %p360 = pneg %p80
        %p361 = pneg %p104
        %p362 = pneg %p101
        %p363 = pneg %p125
        %p364 = pneg %p122
        %p365 = pneg %p146
        %p366 = pneg %p143
        %p367 = pneg %p167
        %p368 = pneg %p164
        %p369 = pneg %p188
        %p370 = pneg %p185
        %p371 = pneg %p209
        %p372 = pneg %p206
        %p373 = pneg %p230
        %p374 = pneg %p227
        %p375 = pneg %p258
        %p376 = pneg %p255
        %s377 = sand.u32 %s245, 1
        %s378 = scalar_lea.sflag [#allocation12], %s377
        %s379 = sand.u32 %s245, 1
        %s380 = smul.addr %s379, 128
        %s381 = scalar_lea.vmem [#allocation15], %s380
        %s382 = smul.u32 16, %s32
        %s383 = smul.u32 16, %s32
        %p385 = scmp.eq.s32.totalorder %s32, 0
        // Predicated region
        $region65: #{tpu_custom_call.1} parent=55 // pred_check
          %p386 = pneg %p385
        $region66: #{tpu_custom_call.1} parent=55 // pred_check_branch
          %388 = sbr.rel (%p386) target = $region68
        $region67: #{tpu_custom_call.1} parent=55 // pred_region
          %vm389 = vcmask 523264
          %390 = vst.msk [vmem:[#allocation3] sm:$0xff] %vm389, 0.0
          %391 = vst.msk [vmem:[#allocation3 + $0x8] sm:$0xff] %vm389, 0.0
          %392 = vst.msk [vmem:[#allocation3 + $0x10] sm:$0xff] %vm389, 0.0
          %393 = vst.msk [vmem:[#allocation3 + $0x18] sm:$0xff] %vm389, 0.0
          %394 = vst.msk [vmem:[#allocation3 + $0x20] sm:$0xff] %vm389, 0.0
          %395 = vst.msk [vmem:[#allocation3 + $0x28] sm:$0xff] %vm389, 0.0
          %396 = vst.msk [vmem:[#allocation3 + $0x30] sm:$0xff] %vm389, 0.0
          %397 = vst.msk [vmem:[#allocation3 + $0x38] sm:$0xff] %vm389, 0.0
          %398 = vst.msk [vmem:[#allocation2] sm:$0xff] %vm389, 0.0
          %399 = vst.msk [vmem:[#allocation2 + $0x8] sm:$0xff] %vm389, 0.0
          %400 = vst.msk [vmem:[#allocation2 + $0x10] sm:$0xff] %vm389, 0.0
        $region68: #{tpu_custom_call.1} parent=55 // pred_fallthru
          _
        %v401 = vld [vmem:[%s343] sm:$0xff]
        %v402 = vld [vmem:[%s343 + $0x8] sm:$0xff]
        %v403 = vld [vmem:[%s343 + $0x10] sm:$0xff]
        %v404 = vld [vmem:[%s343 + $0x18] sm:$0xff]
        %v405 = vld [vmem:[%s343 + $0x20] sm:$0xff]
        %v406 = vld [vmem:[%s343 + $0x28] sm:$0xff]
        %v407 = vld [vmem:[%s343 + $0x30] sm:$0xff]
        %v408 = vld [vmem:[%s343 + $0x38] sm:$0xff]
        %v409 = vld [vmem:[%s343 + $0x40] sm:$0xff]
        %v410 = vld [vmem:[%s343 + $0x48] sm:$0xff]
        %v411 = vld [vmem:[%s343 + $0x50] sm:$0xff]
        %v412 = vld [vmem:[%s343 + $0x58] sm:$0xff]
        %v413 = vld [vmem:[%s343 + $0x60] sm:$0xff]
        %v414 = vld [vmem:[%s343 + $0x68] sm:$0xff]
        %v415 = vld [vmem:[%s343 + $0x70] sm:$0xff]
        %v416 = vld [vmem:[%s343 + $0x78] sm:$0xff]
        %v417 = vpack.c.bf16 %v402, %v401
        %v418 = vpack.c.bf16 %v404, %v403
        %v419 = vpack.c.bf16 %v406, %v405
        %v420 = vpack.c.bf16 %v408, %v407
        %v421 = vpack.c.bf16 %v410, %v409
        %v422 = vpack.c.bf16 %v412, %v411
        %v423 = vpack.c.bf16 %v414, %v413
        %v424 = vpack.c.bf16 %v416, %v415
        %v425 = vld [vmem:[%s1] sm:$0xf]
        %v426 = vld [vmem:[%s1 + $0x4] sm:$0xf]
        %v427 = vld [vmem:[%s1 + $0x8] sm:$0xf]
        %v428 = vld [vmem:[%s1 + $0xc] sm:$0xf]
        %v433 = vunpack.c.l.b16 %v425
        %v434 = vunpack.c.l.b16 %v426
        %v435 = vunpack.c.l.b16 %v427
        %v436 = vunpack.c.l.b16 %v428
        %v437 = vpack.c.b16 %v434, %v433
        %v438 = vpack.c.b16 %v436, %v435
        %vm441 = vcmask 261120
        %v443 = vsel %vm441, %v417, 0
        %v446 = vsel %vm441, %v418, 0
        %v449 = vsel %vm441, %v419, 0
        %v452 = vsel %vm441, %v420, 0
        %v455 = vsel %vm441, %v421, 0
        %v458 = vsel %vm441, %v422, 0
        %v461 = vsel %vm441, %v423, 0
        %v464 = vsel %vm441, %v424, 0
        %466 = vmatprep.subr.bf16.mxu0 0
        %467 = vmatpush1.bf16.msra.mxu0 %v437
        %468 = vmatprep.subr.bf16.mxu0 0
        %469 = vmatpush1.bf16.msra.mxu0 %v438
        %470 = vmatprep.subr.bf16.mxu0 0
        %471 = vmatpush1.bf16.msra.mxu0 0
        %472 = vmatprep.subr.bf16.mxu0 0
        %473 = vmatpush1.bf16.msra.mxu0 0
        %474 = vmatprep.subr.bf16.mxu0 0
        %475 = vmatpush1.bf16.msra.mxu0 0
        %476 = vmatprep.subr.bf16.mxu0 0
        %477 = vmatpush1.bf16.msra.mxu0 0
        %478 = vmatprep.subr.bf16.mxu0 0
        %479 = vmatpush1.bf16.msra.mxu0 0
        %480 = vmatprep.subr.bf16.mxu0 0
        %481 = vmatpush1.bf16.msra.mxu0 0
        %482 = vmatprep.subr.bf16.mxu0 0
        %483 = vmatpush1.bf16.msra.mxu0 0
        %484 = vmatprep.subr.bf16.mxu0 0
        %485 = vmatpush1.bf16.msra.mxu0 0
        %486 = vmatprep.subr.bf16.mxu0 0
        %487 = vmatpush1.bf16.msra.mxu0 0
        %488 = vmatprep.subr.bf16.mxu0 0
        %489 = vmatpush1.bf16.msra.mxu0 0
        %490 = vmatprep.subr.bf16.mxu0 0
        %491 = vmatpush1.bf16.msra.mxu0 0
        %492 = vmatprep.subr.bf16.mxu0 0
        %493 = vmatpush1.bf16.msra.mxu0 0
        %494 = vmatprep.subr.bf16.mxu0 0
        %495 = vmatpush1.bf16.msra.mxu0 0
        %496 = vmatprep.subr.bf16.mxu0 0
        %497 = vmatpush1.bf16.msra.mxu0 0
        %498 = vmatprep.mubr.bf16.mxu0 0
        %499 = vmatmul.mubr.bf16.gmra.mrb[0].mxu0 %v443
        %v500 = vpop.f32.mrb[0].mxu0
        %v501 = vadd.f32 0.0, %v500
        %v502 = vpop.f32.mrb[0].mxu0
        %v503 = vpop.f32.mrb[0].mxu0
        %v504 = vadd.f32 0.0, %v503
        %v505 = vpop.f32.mrb[0].mxu0
        %506 = vmatprep.mubr.bf16.mxu0 0
        %507 = vmatmul.mubr.bf16.gmra.mrb[0].mxu0 %v446
        %v508 = vpop.f32.mrb[0].mxu0
        %v509 = vadd.f32 0.0, %v508
        %v510 = vpop.f32.mrb[0].mxu0
        %v511 = vpop.f32.mrb[0].mxu0
        %v512 = vadd.f32 0.0, %v511
        %v513 = vpop.f32.mrb[0].mxu0
        %514 = vmatprep.mubr.bf16.mxu0 0
        %515 = vmatmul.mubr.bf16.gmra.mrb[0].mxu0 %v449
        %v516 = vpop.f32.mrb[0].mxu0
        %v517 = vadd.f32 0.0, %v516
        %v518 = vpop.f32.mrb[0].mxu0
        %v519 = vpop.f32.mrb[0].mxu0
        %v520 = vadd.f32 0.0, %v519
        %v521 = vpop.f32.mrb[0].mxu0
        %522 = vmatprep.mubr.bf16.mxu0 0
        %523 = vmatmul.mubr.bf16.gmra.mrb[0].mxu0 %v452
        %v524 = vpop.f32.mrb[0].mxu0
        %v525 = vadd.f32 0.0, %v524
        %v526 = vpop.f32.mrb[0].mxu0
        %v527 = vpop.f32.mrb[0].mxu0
        %v528 = vadd.f32 0.0, %v527
        %v529 = vpop.f32.mrb[0].mxu0
        %530 = vmatprep.mubr.bf16.mxu0 0
        %531 = vmatmul.mubr.bf16.gmra.mrb[0].mxu0 %v455
        %v532 = vpop.f32.mrb[0].mxu0
        %v533 = vadd.f32 0.0, %v532
        %v534 = vpop.f32.mrb[0].mxu0
        %v535 = vpop.f32.mrb[0].mxu0
        %v536 = vadd.f32 0.0, %v535
        %v537 = vpop.f32.mrb[0].mxu0
        %538 = vmatprep.mubr.bf16.mxu0 0
        %539 = vmatmul.mubr.bf16.gmra.mrb[0].mxu0 %v458
        %v540 = vpop.f32.mrb[0].mxu0
        %v541 = vadd.f32 0.0, %v540
        %v542 = vpop.f32.mrb[0].mxu0
        %v543 = vpop.f32.mrb[0].mxu0
        %v544 = vadd.f32 0.0, %v543
        %v545 = vpop.f32.mrb[0].mxu0
        %546 = vmatprep.mubr.bf16.mxu0 0
        %547 = vmatmul.mubr.bf16.gmra.mrb[0].mxu0 %v461
        %v548 = vpop.f32.mrb[0].mxu0
        %v549 = vadd.f32 0.0, %v548
        %v550 = vpop.f32.mrb[0].mxu0
        %v551 = vpop.f32.mrb[0].mxu0
        %v552 = vadd.f32 0.0, %v551
        %v553 = vpop.f32.mrb[0].mxu0
        %554 = vmatprep.mubr.bf16.mxu0 0
        %555 = vmatmul.mubr.bf16.gmra.mrb[0].mxu0 %v464
        %v556 = vpop.f32.mrb[0].mxu0
        %v557 = vadd.f32 0.0, %v556
        %v558 = vpop.f32.mrb[0].mxu0
        %v559 = vpop.f32.mrb[0].mxu0
        %v560 = vadd.f32 0.0, %v559
        %v561 = vpop.f32.mrb[0].mxu0
        %562 = vdwg.mxu0
        %v563 = vxor.u32 %v501, 2147483648
        %v564 = vxor.u32 %v504, 2147483648
        %v565 = vxor.u32 %v509, 2147483648
        %v566 = vxor.u32 %v512, 2147483648
        %v567 = vxor.u32 %v517, 2147483648
        %v568 = vxor.u32 %v520, 2147483648
        %v569 = vxor.u32 %v525, 2147483648
        %v570 = vxor.u32 %v528, 2147483648
        %v571 = vxor.u32 %v533, 2147483648
        %v572 = vxor.u32 %v536, 2147483648
        %v573 = vxor.u32 %v541, 2147483648
        %v574 = vxor.u32 %v544, 2147483648
        %v575 = vxor.u32 %v549, 2147483648
        %v576 = vxor.u32 %v552, 2147483648
        %v577 = vxor.u32 %v557, 2147483648
        %v578 = vxor.u32 %v560, 2147483648
        %v579 = vmul.f32 %v563, 1.442695
        %v580 = vpow.pop %v579
        %v581 = vmul.f32 %v564, 1.442695
        %v582 = vpow.pop %v581
        %v583 = vmul.f32 %v565, 1.442695
        %v584 = vpow.pop %v583
        %v585 = vmul.f32 %v566, 1.442695
        %v586 = vpow.pop %v585
        %v587 = vmul.f32 %v567, 1.442695
        %v588 = vpow.pop %v587
        %v589 = vmul.f32 %v568, 1.442695
        %v590 = vpow.pop %v589
        %v591 = vmul.f32 %v569, 1.442695
        %v592 = vpow.pop %v591
        %v593 = vmul.f32 %v570, 1.442695
        %v594 = vpow.pop %v593
        %v595 = vmul.f32 %v571, 1.442695
        %v596 = vpow.pop %v595
        %v597 = vmul.f32 %v572, 1.442695
        %v598 = vpow.pop %v597
        %v599 = vmul.f32 %v573, 1.442695
        %v600 = vpow.pop %v599
        %v601 = vmul.f32 %v574, 1.442695
        %v602 = vpow.pop %v601
        %v603 = vmul.f32 %v575, 1.442695
        %v604 = vpow.pop %v603
        %v605 = vmul.f32 %v576, 1.442695
        %v606 = vpow.pop %v605
        %v607 = vmul.f32 %v577, 1.442695
        %v608 = vpow.pop %v607
        %v609 = vmul.f32 %v578, 1.442695
        %v610 = vpow.pop %v609
        %v611 = vadd.f32 %v580, 1.0
        %v612 = vadd.f32 %v582, 1.0
        %v613 = vadd.f32 %v584, 1.0
        %v614 = vadd.f32 %v586, 1.0
        %v615 = vadd.f32 %v588, 1.0
        %v616 = vadd.f32 %v590, 1.0
        %v617 = vadd.f32 %v592, 1.0
        %v618 = vadd.f32 %v594, 1.0
        %v619 = vadd.f32 %v596, 1.0
        %v620 = vadd.f32 %v598, 1.0
        %v621 = vadd.f32 %v600, 1.0
        %v622 = vadd.f32 %v602, 1.0
        %v623 = vadd.f32 %v604, 1.0
        %v624 = vadd.f32 %v606, 1.0
        %v625 = vadd.f32 %v608, 1.0
        %v626 = vadd.f32 %v610, 1.0
        %v627 = vrcp.pop %v611
        %v628 = vmul.f32 1.0, %v627
        %v629 = vrcp.pop %v612
        %v630 = vmul.f32 1.0, %v629
        %v631 = vrcp.pop %v613
        %v632 = vmul.f32 1.0, %v631
        %v633 = vrcp.pop %v614
        %v634 = vmul.f32 1.0, %v633
        %v635 = vrcp.pop %v615
        %v636 = vmul.f32 1.0, %v635
        %v637 = vrcp.pop %v616
        %v638 = vmul.f32 1.0, %v637
        %v639 = vrcp.pop %v617
        %v640 = vmul.f32 1.0, %v639
        %v641 = vrcp.pop %v618
        %v642 = vmul.f32 1.0, %v641
        %v643 = vrcp.pop %v619
        %v644 = vmul.f32 1.0, %v643
        %v645 = vrcp.pop %v620
        %v646 = vmul.f32 1.0, %v645
        %v647 = vrcp.pop %v621
        %v648 = vmul.f32 1.0, %v647
        %v649 = vrcp.pop %v622
        %v650 = vmul.f32 1.0, %v649
        %v651 = vrcp.pop %v623
        %v652 = vmul.f32 1.0, %v651
        %v653 = vrcp.pop %v624
        %v654 = vmul.f32 1.0, %v653
        %v655 = vrcp.pop %v625
        %v656 = vmul.f32 1.0, %v655
        %v657 = vrcp.pop %v626
        %v658 = vmul.f32 1.0, %v657
        %v659 = vmul.f32 %v501, %v628
        %v660 = vmul.f32 %v504, %v630
        %v661 = vmul.f32 %v509, %v632
        %v662 = vmul.f32 %v512, %v634
        %v663 = vmul.f32 %v517, %v636
        %v664 = vmul.f32 %v520, %v638
        %v665 = vmul.f32 %v525, %v640
        %v666 = vmul.f32 %v528, %v642
        %v667 = vmul.f32 %v533, %v644
        %v668 = vmul.f32 %v536, %v646
        %v669 = vmul.f32 %v541, %v648
        %v670 = vmul.f32 %v544, %v650
        %v671 = vmul.f32 %v549, %v652
        %v672 = vmul.f32 %v552, %v654
        %v673 = vmul.f32 %v557, %v656
        %v674 = vmul.f32 %v560, %v658
        %691 = vrot.lane.b32.xlu0 %v659, 64
        %v692 = vpop.permute.xlu0 %691
        %693 = vrot.lane.b32.xlu0 %v660, 64
        %v694 = vpop.permute.xlu0 %693
        %695 = vrot.lane.b32.xlu0 %v661, 64
        %v696 = vpop.permute.xlu0 %695
        %697 = vrot.lane.b32.xlu0 %v662, 64
        %v698 = vpop.permute.xlu0 %697
        %699 = vrot.lane.b32.xlu0 %v663, 64
        %v700 = vpop.permute.xlu0 %699
        %701 = vrot.lane.b32.xlu0 %v664, 64
        %v702 = vpop.permute.xlu0 %701
        %703 = vrot.lane.b32.xlu0 %v665, 64
        %v704 = vpop.permute.xlu0 %703
        %705 = vrot.lane.b32.xlu0 %v666, 64
        %v706 = vpop.permute.xlu0 %705
        %707 = vrot.lane.b32.xlu0 %v667, 64
        %v708 = vpop.permute.xlu0 %707
        %709 = vrot.lane.b32.xlu0 %v668, 64
        %v710 = vpop.permute.xlu0 %709
        %711 = vrot.lane.b32.xlu0 %v669, 64
        %v712 = vpop.permute.xlu0 %711
        %713 = vrot.lane.b32.xlu0 %v670, 64
        %v714 = vpop.permute.xlu0 %713
        %715 = vrot.lane.b32.xlu0 %v671, 64
        %v716 = vpop.permute.xlu0 %715
        %717 = vrot.lane.b32.xlu0 %v672, 64
        %v718 = vpop.permute.xlu0 %717
        %719 = vrot.lane.b32.xlu0 %v673, 64
        %v720 = vpop.permute.xlu0 %719
        %721 = vrot.lane.b32.xlu0 %v674, 64
        %v722 = vpop.permute.xlu0 %721
        %vm739 = vcmask 523264
        %740 = vst.msk [vmem:[#allocation5] sm:$0xff] %vm739, %v692
        %741 = vst.msk [vmem:[#allocation5 + $0x8] sm:$0xff] %vm739, %v694
        %742 = vst.msk [vmem:[#allocation5 + $0x10] sm:$0xff] %vm739, %v696
        %743 = vst.msk [vmem:[#allocation5 + $0x18] sm:$0xff] %vm739, %v698
        %744 = vst.msk [vmem:[#allocation5 + $0x20] sm:$0xff] %vm739, %v700
        %745 = vst.msk [vmem:[#allocation5 + $0x28] sm:$0xff] %vm739, %v702
        %746 = vst.msk [vmem:[#allocation5 + $0x30] sm:$0xff] %vm739, %v704
        %747 = vst.msk [vmem:[#allocation5 + $0x38] sm:$0xff] %vm739, %v706
        %748 = vst.msk [vmem:[#allocation5 + $0x40] sm:$0xff] %vm739, %v708
        %749 = vst.msk [vmem:[#allocation5 + $0x48] sm:$0xff] %vm739, %v710
        %750 = vst.msk [vmem:[#allocation5 + $0x50] sm:$0xff] %vm739, %v712
        %751 = vst.msk [vmem:[#allocation5 + $0x58] sm:$0xff] %vm739, %v714
        %752 = vst.msk [vmem:[#allocation5 + $0x60] sm:$0xff] %vm739, %v716
        %753 = vst.msk [vmem:[#allocation5 + $0x68] sm:$0xff] %vm739, %v718
        %754 = vst.msk [vmem:[#allocation5 + $0x70] sm:$0xff] %vm739, %v720
        %755 = vst.msk [vmem:[#allocation5 + $0x78] sm:$0xff] %vm739, %v722
        %s756 = scalar_lea.vmem [#allocation2], 24
        %757 = vst.msk [vmem:[%s756] sm:$0xff] %vm739, %v501
        %758 = vst.msk [vmem:[%s756 + $0x8] sm:$0xff] %vm739, %v504
        %759 = vst.msk [vmem:[%s756 + $0x10] sm:$0xff] %vm739, %v509
        %760 = vst.msk [vmem:[%s756 + $0x18] sm:$0xff] %vm739, %v512
        %761 = vst.msk [vmem:[%s756 + $0x20] sm:$0xff] %vm739, %v517
        %762 = vst.msk [vmem:[%s756 + $0x28] sm:$0xff] %vm739, %v520
        %763 = vst.msk [vmem:[%s756 + $0x30] sm:$0xff] %vm739, %v525
        %764 = vst.msk [vmem:[%s756 + $0x38] sm:$0xff] %vm739, %v528
        %765 = vst.msk [vmem:[%s756 + $0x40] sm:$0xff] %vm739, %v533
        %766 = vst.msk [vmem:[%s756 + $0x48] sm:$0xff] %vm739, %v536
        %767 = vst.msk [vmem:[%s756 + $0x50] sm:$0xff] %vm739, %v541
        %768 = vst.msk [vmem:[%s756 + $0x58] sm:$0xff] %vm739, %v544
        %769 = vst.msk [vmem:[%s756 + $0x60] sm:$0xff] %vm739, %v549
        %770 = vst.msk [vmem:[%s756 + $0x68] sm:$0xff] %vm739, %v552
        %771 = vst.msk [vmem:[%s756 + $0x70] sm:$0xff] %vm739, %v557
        %772 = vst.msk [vmem:[%s756 + $0x78] sm:$0xff] %vm739, %v560
        %v773 = vld [vmem:[%s2] sm:$0xf]
        %v774 = vld [vmem:[#allocation2] sm:$0xff]
        %v775 = vld [vmem:[#allocation2 + $0x8] sm:$0xff]
        %v776 = vld [vmem:[#allocation2 + $0x10] sm:$0xff]
        %v777 = vld [vmem:[#allocation2 + $0x18] sm:$0xff]
        %v778 = vld [vmem:[#allocation2 + $0x20] sm:$0xff]
        %v779 = vld [vmem:[#allocation2 + $0x28] sm:$0xff]
        %v780 = vld [vmem:[#allocation2 + $0x30] sm:$0xff]
        %v781 = vld [vmem:[#allocation2 + $0x38] sm:$0xff]
        %v782 = vld [vmem:[#allocation2 + $0x40] sm:$0xff]
        %v783 = vld [vmem:[#allocation2 + $0x48] sm:$0xff]
        %v784 = vld [vmem:[#allocation2 + $0x50] sm:$0xff]
        %v785 = vld [vmem:[#allocation2 + $0x58] sm:$0xff]
        %v786 = vld [vmem:[#allocation2 + $0x60] sm:$0xff]
        %v787 = vld [vmem:[#allocation2 + $0x68] sm:$0xff]
        %v788 = vld [vmem:[#allocation2 + $0x70] sm:$0xff]
        %v789 = vld [vmem:[#allocation2 + $0x78] sm:$0xff]
        %v790 = vlaneseq
        %v791 = vshrl.u32 %v790, 7
        %v792 = vsub.s32 0, %v791
        %v793 = vrot.slane %v773, %v792
        %v794 = vmul.f32 %v793, %v774
        %v795 = vmul.f32 %v793, %v775
        %v796 = vmul.f32 %v793, %v776
        %v797 = vmul.f32 %v793, %v777
        %v798 = vmul.f32 %v793, %v778
        %v799 = vmul.f32 %v793, %v779
        %v800 = vmul.f32 %v793, %v780
        %v801 = vmul.f32 %v793, %v781
        %v802 = vmul.f32 %v793, %v782
        %v803 = vmul.f32 %v793, %v783
        %v804 = vmul.f32 %v793, %v784
        %v805 = vmul.f32 %v793, %v785
        %v806 = vmul.f32 %v793, %v786
        %v807 = vmul.f32 %v793, %v787
        %v808 = vmul.f32 %v793, %v788
        %v809 = vmul.f32 %v793, %v789
        %v810 = vadd.f32 %v794, 0.0
        %v811 = vadd.f32 %v795, 0.0
        %v812 = vadd.f32 %v796, 0.0
        %v813 = vadd.f32 %v797, 0.0
        %v814 = vadd.f32 %v798, 0.0
        %v815 = vadd.f32 %v799, 0.0
        %v816 = vadd.f32 %v800, 0.0
        %v817 = vadd.f32 %v801, 0.0
        %v818 = vadd.f32 %v802, 0.0
        %v819 = vadd.f32 %v803, 0.0
        %v820 = vadd.f32 %v804, 0.0
        %v821 = vadd.f32 %v805, 0.0
        %v822 = vadd.f32 %v806, 0.0
        %v823 = vadd.f32 %v807, 0.0
        %v824 = vadd.f32 %v808, 0.0
        %v825 = vadd.f32 %v809, 0.0
        %s826 = scalar_lea.vmem [#allocation2], 8
        %v827 = vld [vmem:[%s826] sm:$0xff]
        %v828 = vld [vmem:[%s826 + $0x8] sm:$0xff]
        %v829 = vld [vmem:[%s826 + $0x10] sm:$0xff]
        %v830 = vld [vmem:[%s826 + $0x18] sm:$0xff]
        %v831 = vld [vmem:[%s826 + $0x20] sm:$0xff]
        %v832 = vld [vmem:[%s826 + $0x28] sm:$0xff]
        %v833 = vld [vmem:[%s826 + $0x30] sm:$0xff]
        %v834 = vld [vmem:[%s826 + $0x38] sm:$0xff]
        %v835 = vld [vmem:[%s826 + $0x40] sm:$0xff]
        %v836 = vld [vmem:[%s826 + $0x48] sm:$0xff]
        %v837 = vld [vmem:[%s826 + $0x50] sm:$0xff]
        %v838 = vld [vmem:[%s826 + $0x58] sm:$0xff]
        %v839 = vld [vmem:[%s826 + $0x60] sm:$0xff]
        %v840 = vld [vmem:[%s826 + $0x68] sm:$0xff]
        %v841 = vld [vmem:[%s826 + $0x70] sm:$0xff]
        %v842 = vld [vmem:[%s826 + $0x78] sm:$0xff]
        %v843 = vlaneseq
        %v844 = vshrl.u32 %v843, 7
        %v845 = vsub.s32 1, %v844
        %v846 = vrot.slane %v773, %v845
        %v847 = vmul.f32 %v846, %v827
        %v848 = vmul.f32 %v846, %v828
        %v849 = vmul.f32 %v846, %v829
        %v850 = vmul.f32 %v846, %v830
        %v851 = vmul.f32 %v846, %v831
        %v852 = vmul.f32 %v846, %v832
        %v853 = vmul.f32 %v846, %v833
        %v854 = vmul.f32 %v846, %v834
        %v855 = vmul.f32 %v846, %v835
        %v856 = vmul.f32 %v846, %v836
        %v857 = vmul.f32 %v846, %v837
        %v858 = vmul.f32 %v846, %v838
        %v859 = vmul.f32 %v846, %v839
        %v860 = vmul.f32 %v846, %v840
        %v861 = vmul.f32 %v846, %v841
        %v862 = vmul.f32 %v846, %v842
        %v863 = vadd.f32 %v810, %v847
        %v864 = vadd.f32 %v811, %v848
        %v865 = vadd.f32 %v812, %v849
        %v866 = vadd.f32 %v813, %v850
        %v867 = vadd.f32 %v814, %v851
        %v868 = vadd.f32 %v815, %v852
        %v869 = vadd.f32 %v816, %v853
        %v870 = vadd.f32 %v817, %v854
        %v871 = vadd.f32 %v818, %v855
        %v872 = vadd.f32 %v819, %v856
        %v873 = vadd.f32 %v820, %v857
        %v874 = vadd.f32 %v821, %v858
        %v875 = vadd.f32 %v822, %v859
        %v876 = vadd.f32 %v823, %v860
        %v877 = vadd.f32 %v824, %v861
        %v878 = vadd.f32 %v825, %v862
        %s879 = scalar_lea.vmem [#allocation2], 16
        %v880 = vld [vmem:[%s879] sm:$0xff]
        %v881 = vld [vmem:[%s879 + $0x8] sm:$0xff]
        %v882 = vld [vmem:[%s879 + $0x10] sm:$0xff]
        %v883 = vld [vmem:[%s879 + $0x18] sm:$0xff]
        %v884 = vld [vmem:[%s879 + $0x20] sm:$0xff]
        %v885 = vld [vmem:[%s879 + $0x28] sm:$0xff]
        %v886 = vld [vmem:[%s879 + $0x30] sm:$0xff]
        %v887 = vld [vmem:[%s879 + $0x38] sm:$0xff]
        %v888 = vld [vmem:[%s879 + $0x40] sm:$0xff]
        %v889 = vld [vmem:[%s879 + $0x48] sm:$0xff]
        %v890 = vld [vmem:[%s879 + $0x50] sm:$0xff]
        %v891 = vld [vmem:[%s879 + $0x58] sm:$0xff]
        %v892 = vld [vmem:[%s879 + $0x60] sm:$0xff]
        %v893 = vld [vmem:[%s879 + $0x68] sm:$0xff]
        %v894 = vld [vmem:[%s879 + $0x70] sm:$0xff]
        %v895 = vld [vmem:[%s879 + $0x78] sm:$0xff]
        %v896 = vlaneseq
        %v897 = vshrl.u32 %v896, 7
        %v898 = vsub.s32 2, %v897
        %v899 = vrot.slane %v773, %v898
        %v900 = vmul.f32 %v899, %v880
        %v901 = vmul.f32 %v899, %v881
        %v902 = vmul.f32 %v899, %v882
        %v903 = vmul.f32 %v899, %v883
        %v904 = vmul.f32 %v899, %v884
        %v905 = vmul.f32 %v899, %v885
        %v906 = vmul.f32 %v899, %v886
        %v907 = vmul.f32 %v899, %v887
        %v908 = vmul.f32 %v899, %v888
        %v909 = vmul.f32 %v899, %v889
        %v910 = vmul.f32 %v899, %v890
        %v911 = vmul.f32 %v899, %v891
        %v912 = vmul.f32 %v899, %v892
        %v913 = vmul.f32 %v899, %v893
        %v914 = vmul.f32 %v899, %v894
        %v915 = vmul.f32 %v899, %v895
        %v916 = vadd.f32 %v863, %v900
        %v917 = vadd.f32 %v864, %v901
        %v918 = vadd.f32 %v865, %v902
        %v919 = vadd.f32 %v866, %v903
        %v920 = vadd.f32 %v867, %v904
        %v921 = vadd.f32 %v868, %v905
        %v922 = vadd.f32 %v869, %v906
        %v923 = vadd.f32 %v870, %v907
        %v924 = vadd.f32 %v871, %v908
        %v925 = vadd.f32 %v872, %v909
        %v926 = vadd.f32 %v873, %v910
        %v927 = vadd.f32 %v874, %v911
        %v928 = vadd.f32 %v875, %v912
        %v929 = vadd.f32 %v876, %v913
        %v930 = vadd.f32 %v877, %v914
        %v931 = vadd.f32 %v878, %v915
        %v932 = vld [vmem:[%s756] sm:$0xff]
        %v933 = vld [vmem:[%s756 + $0x8] sm:$0xff]
        %v934 = vld [vmem:[%s756 + $0x10] sm:$0xff]
        %v935 = vld [vmem:[%s756 + $0x18] sm:$0xff]
        %v936 = vld [vmem:[%s756 + $0x20] sm:$0xff]
        %v937 = vld [vmem:[%s756 + $0x28] sm:$0xff]
        %v938 = vld [vmem:[%s756 + $0x30] sm:$0xff]
        %v939 = vld [vmem:[%s756 + $0x38] sm:$0xff]
        %v940 = vld [vmem:[%s756 + $0x40] sm:$0xff]
        %v941 = vld [vmem:[%s756 + $0x48] sm:$0xff]
        %v942 = vld [vmem:[%s756 + $0x50] sm:$0xff]
        %v943 = vld [vmem:[%s756 + $0x58] sm:$0xff]
        %v944 = vld [vmem:[%s756 + $0x60] sm:$0xff]
        %v945 = vld [vmem:[%s756 + $0x68] sm:$0xff]
        %v946 = vld [vmem:[%s756 + $0x70] sm:$0xff]
        %v947 = vld [vmem:[%s756 + $0x78] sm:$0xff]
        %v948 = vlaneseq
        %v949 = vshrl.u32 %v948, 7
        %v950 = vsub.s32 3, %v949
        %v951 = vrot.slane %v773, %v950
        %v952 = vmul.f32 %v951, %v932
        %v953 = vmul.f32 %v951, %v933
        %v954 = vmul.f32 %v951, %v934
        %v955 = vmul.f32 %v951, %v935
        %v956 = vmul.f32 %v951, %v936
        %v957 = vmul.f32 %v951, %v937
        %v958 = vmul.f32 %v951, %v938
        %v959 = vmul.f32 %v951, %v939
        %v960 = vmul.f32 %v951, %v940
        %v961 = vmul.f32 %v951, %v941
        %v962 = vmul.f32 %v951, %v942
        %v963 = vmul.f32 %v951, %v943
        %v964 = vmul.f32 %v951, %v944
        %v965 = vmul.f32 %v951, %v945
        %v966 = vmul.f32 %v951, %v946
        %v967 = vmul.f32 %v951, %v947
        %v968 = vadd.f32 %v916, %v952
        %v969 = vadd.f32 %v917, %v953
        %v970 = vadd.f32 %v918, %v954
        %v971 = vadd.f32 %v919, %v955
        %v972 = vadd.f32 %v920, %v956
        %v973 = vadd.f32 %v921, %v957
        %v974 = vadd.f32 %v922, %v958
        %v975 = vadd.f32 %v923, %v959
        %v976 = vadd.f32 %v924, %v960
        %v977 = vadd.f32 %v925, %v961
        %v978 = vadd.f32 %v926, %v962
        %v979 = vadd.f32 %v927, %v963
        %v980 = vadd.f32 %v928, %v964
        %v981 = vadd.f32 %v929, %v965
        %v982 = vadd.f32 %v930, %v966
        %v983 = vadd.f32 %v931, %v967
        %v984 = vld [vmem:[%s3] sm:$0x1]
        %v986 = vlaneseq
        %v987 = vshrl.u32 %v986, 7
        %v988 = vsub.s32 0, %v987
        %v989 = vrot.slane %v984, %v988
        %v991 = vadd.f32 %v968, %v989
        %v992 = vadd.f32 %v969, %v989
        %v993 = vadd.f32 %v970, %v989
        %v994 = vadd.f32 %v971, %v989
        %v995 = vadd.f32 %v972, %v989
        %v996 = vadd.f32 %v973, %v989
        %v997 = vadd.f32 %v974, %v989
        %v998 = vadd.f32 %v975, %v989
        %v999 = vadd.f32 %v976, %v989
        %v1000 = vadd.f32 %v977, %v989
        %v1001 = vadd.f32 %v978, %v989
        %v1002 = vadd.f32 %v979, %v989
        %v1003 = vadd.f32 %v980, %v989
        %v1004 = vadd.f32 %v981, %v989
        %v1005 = vadd.f32 %v982, %v989
        %v1006 = vadd.f32 %v983, %v989
        %v1007 = vxor.u32 %v991, 2147483648
        %v1008 = vxor.u32 %v992, 2147483648
        %v1009 = vxor.u32 %v993, 2147483648
        %v1010 = vxor.u32 %v994, 2147483648
        %v1011 = vxor.u32 %v995, 2147483648
        %v1012 = vxor.u32 %v996, 2147483648
        %v1013 = vxor.u32 %v997, 2147483648
        %v1014 = vxor.u32 %v998, 2147483648
        %v1015 = vxor.u32 %v999, 2147483648
        %v1016 = vxor.u32 %v1000, 2147483648
        %v1017 = vxor.u32 %v1001, 2147483648
        %v1018 = vxor.u32 %v1002, 2147483648
        %v1019 = vxor.u32 %v1003, 2147483648
        %v1020 = vxor.u32 %v1004, 2147483648
        %v1021 = vxor.u32 %v1005, 2147483648
        %v1022 = vxor.u32 %v1006, 2147483648
        %v1023 = vmul.f32 %v1007, 1.442695
        %v1024 = vpow.pop %v1023
        %v1025 = vmul.f32 %v1008, 1.442695
        %v1026 = vpow.pop %v1025
        %v1027 = vmul.f32 %v1009, 1.442695
        %v1028 = vpow.pop %v1027
        %v1029 = vmul.f32 %v1010, 1.442695
        %v1030 = vpow.pop %v1029
        %v1031 = vmul.f32 %v1011, 1.442695
        %v1032 = vpow.pop %v1031
        %v1033 = vmul.f32 %v1012, 1.442695
        %v1034 = vpow.pop %v1033
        %v1035 = vmul.f32 %v1013, 1.442695
        %v1036 = vpow.pop %v1035
        %v1037 = vmul.f32 %v1014, 1.442695
        %v1038 = vpow.pop %v1037
        %v1039 = vmul.f32 %v1015, 1.442695
        %v1040 = vpow.pop %v1039
        %v1041 = vmul.f32 %v1016, 1.442695
        %v1042 = vpow.pop %v1041
        %v1043 = vmul.f32 %v1017, 1.442695
        %v1044 = vpow.pop %v1043
        %v1045 = vmul.f32 %v1018, 1.442695
        %v1046 = vpow.pop %v1045
        %v1047 = vmul.f32 %v1019, 1.442695
        %v1048 = vpow.pop %v1047
        %v1049 = vmul.f32 %v1020, 1.442695
        %v1050 = vpow.pop %v1049
        %v1051 = vmul.f32 %v1021, 1.442695
        %v1052 = vpow.pop %v1051
        %v1053 = vmul.f32 %v1022, 1.442695
        %v1054 = vpow.pop %v1053
        %v1055 = vadd.f32 %v1024, 1.0
        %v1056 = vadd.f32 %v1026, 1.0
        %v1057 = vadd.f32 %v1028, 1.0
        %v1058 = vadd.f32 %v1030, 1.0
        %v1059 = vadd.f32 %v1032, 1.0
        %v1060 = vadd.f32 %v1034, 1.0
        %v1061 = vadd.f32 %v1036, 1.0
        %v1062 = vadd.f32 %v1038, 1.0
        %v1063 = vadd.f32 %v1040, 1.0
        %v1064 = vadd.f32 %v1042, 1.0
        %v1065 = vadd.f32 %v1044, 1.0
        %v1066 = vadd.f32 %v1046, 1.0
        %v1067 = vadd.f32 %v1048, 1.0
        %v1068 = vadd.f32 %v1050, 1.0
        %v1069 = vadd.f32 %v1052, 1.0
        %v1070 = vadd.f32 %v1054, 1.0
        %v1071 = vrcp.pop %v1055
        %v1072 = vmul.f32 1.0, %v1071
        %v1073 = vrcp.pop %v1056
        %v1074 = vmul.f32 1.0, %v1073
        %v1075 = vrcp.pop %v1057
        %v1076 = vmul.f32 1.0, %v1075
        %v1077 = vrcp.pop %v1058
        %v1078 = vmul.f32 1.0, %v1077
        %v1079 = vrcp.pop %v1059
        %v1080 = vmul.f32 1.0, %v1079
        %v1081 = vrcp.pop %v1060
        %v1082 = vmul.f32 1.0, %v1081
        %v1083 = vrcp.pop %v1061
        %v1084 = vmul.f32 1.0, %v1083
        %v1085 = vrcp.pop %v1062
        %v1086 = vmul.f32 1.0, %v1085
        %v1087 = vrcp.pop %v1063
        %v1088 = vmul.f32 1.0, %v1087
        %v1089 = vrcp.pop %v1064
        %v1090 = vmul.f32 1.0, %v1089
        %v1091 = vrcp.pop %v1065
        %v1092 = vmul.f32 1.0, %v1091
        %v1093 = vrcp.pop %v1066
        %v1094 = vmul.f32 1.0, %v1093
        %v1095 = vrcp.pop %v1067
        %v1096 = vmul.f32 1.0, %v1095
        %v1097 = vrcp.pop %v1068
        %v1098 = vmul.f32 1.0, %v1097
        %v1099 = vrcp.pop %v1069
        %v1100 = vmul.f32 1.0, %v1099
        %v1101 = vrcp.pop %v1070
        %v1102 = vmul.f32 1.0, %v1101
        %v1103 = vmul.f32 %v991, %v1072
        %v1104 = vmul.f32 %v992, %v1074
        %v1105 = vmul.f32 %v993, %v1076
        %v1106 = vmul.f32 %v994, %v1078
        %v1107 = vmul.f32 %v995, %v1080
        %v1108 = vmul.f32 %v996, %v1082
        %v1109 = vmul.f32 %v997, %v1084
        %v1110 = vmul.f32 %v998, %v1086
        %v1111 = vmul.f32 %v999, %v1088
        %v1112 = vmul.f32 %v1000, %v1090
        %v1113 = vmul.f32 %v1001, %v1092
        %v1114 = vmul.f32 %v1002, %v1094
        %v1115 = vmul.f32 %v1003, %v1096
        %v1116 = vmul.f32 %v1004, %v1098
        %v1117 = vmul.f32 %v1005, %v1100
        %v1118 = vmul.f32 %v1006, %v1102
        %s1119 = scalar_lea.vmem [#allocation2], 128
        %v1120 = vld [vmem:[%s1119] sm:$0xff]
        %v1121 = vld [vmem:[%s1119 + $0x8] sm:$0xff]
        %v1122 = vld [vmem:[%s1119 + $0x10] sm:$0xff]
        %1123 = vst.msk [vmem:[#allocation2] sm:$0xff] %vm739, %v1120
        %1124 = vst.msk [vmem:[#allocation2 + $0x8] sm:$0xff] %vm739, %v1121
        %1125 = vst.msk [vmem:[#allocation2 + $0x10] sm:$0xff] %vm739, %v1122
        %1126 = vst.msk [vmem:[#allocation4] sm:$0xff] %vm739, %v1103
        %1127 = vst.msk [vmem:[#allocation4 + $0x8] sm:$0xff] %vm739, %v1104
        %1128 = vst.msk [vmem:[#allocation4 + $0x10] sm:$0xff] %vm739, %v1105
        %1129 = vst.msk [vmem:[#allocation4 + $0x18] sm:$0xff] %vm739, %v1106
        %1130 = vst.msk [vmem:[#allocation4 + $0x20] sm:$0xff] %vm739, %v1107
        %1131 = vst.msk [vmem:[#allocation4 + $0x28] sm:$0xff] %vm739, %v1108
        %1132 = vst.msk [vmem:[#allocation4 + $0x30] sm:$0xff] %vm739, %v1109
        %1133 = vst.msk [vmem:[#allocation4 + $0x38] sm:$0xff] %vm739, %v1110
        %1134 = vst.msk [vmem:[#allocation4 + $0x40] sm:$0xff] %vm739, %v1111
        %1135 = vst.msk [vmem:[#allocation4 + $0x48] sm:$0xff] %vm739, %v1112
        %1136 = vst.msk [vmem:[#allocation4 + $0x50] sm:$0xff] %vm739, %v1113
        %1137 = vst.msk [vmem:[#allocation4 + $0x58] sm:$0xff] %vm739, %v1114
        %1138 = vst.msk [vmem:[#allocation4 + $0x60] sm:$0xff] %vm739, %v1115
        %1139 = vst.msk [vmem:[#allocation4 + $0x68] sm:$0xff] %vm739, %v1116
        %1140 = vst.msk [vmem:[#allocation4 + $0x70] sm:$0xff] %vm739, %v1117
        %1141 = vst.msk [vmem:[#allocation4 + $0x78] sm:$0xff] %vm739, %v1118
        %v1142 = vpack.c.bf16 %v1104, %v1103
        %v1143 = vpack.c.bf16 %v1106, %v1105
        %v1144 = vpack.c.bf16 %v1108, %v1107
        %v1145 = vpack.c.bf16 %v1110, %v1109
        %v1146 = vpack.c.bf16 %v1112, %v1111
        %v1147 = vpack.c.bf16 %v1114, %v1113
        %v1148 = vpack.c.bf16 %v1116, %v1115
        %v1149 = vpack.c.bf16 %v1118, %v1117
        %v1150 = vld [vmem:[%s4] sm:$0xf]
        %v1151 = vld [vmem:[%s4 + $0x4] sm:$0xf]
        %v1152 = vld [vmem:[%s4 + $0x8] sm:$0xf]
        %v1153 = vld [vmem:[%s4 + $0xc] sm:$0xf]
        %v1154 = vld [vmem:[%s4 + $0x10] sm:$0xf]
        %v1155 = vld [vmem:[%s4 + $0x14] sm:$0xf]
        %v1156 = vld [vmem:[%s4 + $0x18] sm:$0xf]
        %v1157 = vld [vmem:[%s4 + $0x1c] sm:$0xf]
        %v1166 = vunpack.c.l.b16 %v1150
        %v1167 = vunpack.c.l.b16 %v1151
        %v1168 = vunpack.c.l.b16 %v1152
        %v1169 = vunpack.c.l.b16 %v1153
        %v1170 = vunpack.c.l.b16 %v1154
        %v1171 = vunpack.c.l.b16 %v1155
        %v1172 = vunpack.c.l.b16 %v1156
        %v1173 = vunpack.c.l.b16 %v1157
        %v1174 = vpack.c.b16 %v1167, %v1166
        %v1175 = vpack.c.b16 %v1169, %v1168
        %v1176 = vpack.c.b16 %v1171, %v1170
        %v1177 = vpack.c.b16 %v1173, %v1172
        %v1183 = vsel %vm739, %v1142, 0
        %v1186 = vsel %vm739, %v1143, 0
        %v1189 = vsel %vm739, %v1144, 0
        %v1192 = vsel %vm739, %v1145, 0
        %v1195 = vsel %vm739, %v1146, 0
        %v1198 = vsel %vm739, %v1147, 0
        %v1201 = vsel %vm739, %v1148, 0
        %v1204 = vsel %vm739, %v1149, 0
        %1206 = vmatprep.subr.bf16.mxu0 0
        %1207 = vmatpush1.bf16.msra.mxu0 %v1174
        %1208 = vmatprep.subr.bf16.mxu0 0
        %1209 = vmatpush1.bf16.msra.mxu0 %v1175
        %1210 = vmatprep.subr.bf16.mxu0 0
        %1211 = vmatpush1.bf16.msra.mxu0 %v1176
        %1212 = vmatprep.subr.bf16.mxu0 0
        %1213 = vmatpush1.bf16.msra.mxu0 %v1177
        %1214 = vmatprep.subr.bf16.mxu0 0
        %1215 = vmatpush1.bf16.msra.mxu0 0
        %1216 = vmatprep.subr.bf16.mxu0 0
        %1217 = vmatpush1.bf16.msra.mxu0 0
        %1218 = vmatprep.subr.bf16.mxu0 0
        %1219 = vmatpush1.bf16.msra.mxu0 0
        %1220 = vmatprep.subr.bf16.mxu0 0
        %1221 = vmatpush1.bf16.msra.mxu0 0
        %1222 = vmatprep.subr.bf16.mxu0 0
        %1223 = vmatpush1.bf16.msra.mxu0 0
        %1224 = vmatprep.subr.bf16.mxu0 0
        %1225 = vmatpush1.bf16.msra.mxu0 0
        %1226 = vmatprep.subr.bf16.mxu0 0
        %1227 = vmatpush1.bf16.msra.mxu0 0
        %1228 = vmatprep.subr.bf16.mxu0 0
        %1229 = vmatpush1.bf16.msra.mxu0 0
        %1230 = vmatprep.subr.bf16.mxu0 0
        %1231 = vmatpush1.bf16.msra.mxu0 0
        %1232 = vmatprep.subr.bf16.mxu0 0
        %1233 = vmatpush1.bf16.msra.mxu0 0
        %1234 = vmatprep.subr.bf16.mxu0 0
        %1235 = vmatpush1.bf16.msra.mxu0 0
        %1236 = vmatprep.subr.bf16.mxu0 0
        %1237 = vmatpush1.bf16.msra.mxu0 0
        %1238 = vmatprep.mubr.bf16.mxu0 0
        %1239 = vmatmul.mubr.bf16.gmra.mrb[0].mxu0 %v1183
        %v1240 = vpop.f32.mrb[0].mxu0
        %v1241 = vadd.f32 0.0, %v1240
        %v1242 = vpop.f32.mrb[0].mxu0
        %v1243 = vpop.f32.mrb[0].mxu0
        %v1244 = vadd.f32 0.0, %v1243
        %v1245 = vpop.f32.mrb[0].mxu0
        %1246 = vmatprep.mubr.bf16.mxu0 0
        %1247 = vmatmul.mubr.bf16.gmra.mrb[0].mxu0 %v1186
        %v1248 = vpop.f32.mrb[0].mxu0
        %v1249 = vadd.f32 0.0, %v1248
        %v1250 = vpop.f32.mrb[0].mxu0
        %v1251 = vpop.f32.mrb[0].mxu0
        %v1252 = vadd.f32 0.0, %v1251
        %v1253 = vpop.f32.mrb[0].mxu0
        %1254 = vmatprep.mubr.bf16.mxu0 0
        %1255 = vmatmul.mubr.bf16.gmra.mrb[0].mxu0 %v1189
        %v1256 = vpop.f32.mrb[0].mxu0
        %v1257 = vadd.f32 0.0, %v1256
        %v1258 = vpop.f32.mrb[0].mxu0
        %v1259 = vpop.f32.mrb[0].mxu0
        %v1260 = vadd.f32 0.0, %v1259
        %v1261 = vpop.f32.mrb[0].mxu0
        %1262 = vmatprep.mubr.bf16.mxu0 0
        %1263 = vmatmul.mubr.bf16.gmra.mrb[0].mxu0 %v1192
        %v1264 = vpop.f32.mrb[0].mxu0
        %v1265 = vadd.f32 0.0, %v1264
        %v1266 = vpop.f32.mrb[0].mxu0
        %v1267 = vpop.f32.mrb[0].mxu0
        %v1268 = vadd.f32 0.0, %v1267
        %v1269 = vpop.f32.mrb[0].mxu0
        %1270 = vmatprep.mubr.bf16.mxu0 0
        %1271 = vmatmul.mubr.bf16.gmra.mrb[0].mxu0 %v1195
        %v1272 = vpop.f32.mrb[0].mxu0
        %v1273 = vadd.f32 0.0, %v1272
        %v1274 = vpop.f32.mrb[0].mxu0
        %v1275 = vpop.f32.mrb[0].mxu0
        %v1276 = vadd.f32 0.0, %v1275
        %v1277 = vpop.f32.mrb[0].mxu0
        %1278 = vmatprep.mubr.bf16.mxu0 0
        %1279 = vmatmul.mubr.bf16.gmra.mrb[0].mxu0 %v1198
        %v1280 = vpop.f32.mrb[0].mxu0
        %v1281 = vadd.f32 0.0, %v1280
        %v1282 = vpop.f32.mrb[0].mxu0
        %v1283 = vpop.f32.mrb[0].mxu0
        %v1284 = vadd.f32 0.0, %v1283
        %v1285 = vpop.f32.mrb[0].mxu0
        %1286 = vmatprep.mubr.bf16.mxu0 0
        %1287 = vmatmul.mubr.bf16.gmra.mrb[0].mxu0 %v1201
        %v1288 = vpop.f32.mrb[0].mxu0
        %v1289 = vadd.f32 0.0, %v1288
        %v1290 = vpop.f32.mrb[0].mxu0
        %v1291 = vpop.f32.mrb[0].mxu0
        %v1292 = vadd.f32 0.0, %v1291
        %v1293 = vpop.f32.mrb[0].mxu0
        %1294 = vmatprep.mubr.bf16.mxu0 0
        %1295 = vmatmul.mubr.bf16.gmra.mrb[0].mxu0 %v1204
        %v1296 = vpop.f32.mrb[0].mxu0
        %v1297 = vadd.f32 0.0, %v1296
        %v1298 = vpop.f32.mrb[0].mxu0
        %v1299 = vpop.f32.mrb[0].mxu0
        %v1300 = vadd.f32 0.0, %v1299
        %v1301 = vpop.f32.mrb[0].mxu0
        %1302 = vdwg.mxu0
        %v1303 = vld [vmem:[%s5] sm:$0x1]
        %v1305 = vlaneseq
        %v1306 = vshrl.u32 %v1305, 7
        %v1307 = vsub.s32 0, %v1306
        %v1308 = vrot.slane %v1303, %v1307
        %v1310 = vadd.f32 %v1241, %v1308
        %v1311 = vadd.f32 %v1244, %v1308
        %v1312 = vadd.f32 %v1249, %v1308
        %v1313 = vadd.f32 %v1252, %v1308
        %v1314 = vadd.f32 %v1257, %v1308
        %v1315 = vadd.f32 %v1260, %v1308
        %v1316 = vadd.f32 %v1265, %v1308
        %v1317 = vadd.f32 %v1268, %v1308
        %v1318 = vadd.f32 %v1273, %v1308
        %v1319 = vadd.f32 %v1276, %v1308
        %v1320 = vadd.f32 %v1281, %v1308
        %v1321 = vadd.f32 %v1284, %v1308
        %v1322 = vadd.f32 %v1289, %v1308
        %v1323 = vadd.f32 %v1292, %v1308
        %v1324 = vadd.f32 %v1297, %v1308
        %v1325 = vadd.f32 %v1300, %v1308
        %v1326 = vmax.f32 %v1310, 0.0
        %v1327 = vmax.f32 %v1311, 0.0
        %v1328 = vmax.f32 %v1312, 0.0
        %v1329 = vmax.f32 %v1313, 0.0
        %v1330 = vmax.f32 %v1314, 0.0
        %v1331 = vmax.f32 %v1315, 0.0
        %v1332 = vmax.f32 %v1316, 0.0
        %v1333 = vmax.f32 %v1317, 0.0
        %v1334 = vmax.f32 %v1318, 0.0
        %v1335 = vmax.f32 %v1319, 0.0
        %v1336 = vmax.f32 %v1320, 0.0
        %v1337 = vmax.f32 %v1321, 0.0
        %v1338 = vmax.f32 %v1322, 0.0
        %v1339 = vmax.f32 %v1323, 0.0
        %v1340 = vmax.f32 %v1324, 0.0
        %v1341 = vmax.f32 %v1325, 0.0
        %vm1342 = vcmp.ne.f32.partialorder %v1310, %v1310
        %vm1343 = vcmp.ne.f32.partialorder %v1311, %v1311
        %vm1344 = vcmp.ne.f32.partialorder %v1312, %v1312
        %vm1345 = vcmp.ne.f32.partialorder %v1313, %v1313
        %vm1346 = vcmp.ne.f32.partialorder %v1314, %v1314
        %vm1347 = vcmp.ne.f32.partialorder %v1315, %v1315
        %vm1348 = vcmp.ne.f32.partialorder %v1316, %v1316
        %vm1349 = vcmp.ne.f32.partialorder %v1317, %v1317
        %vm1350 = vcmp.ne.f32.partialorder %v1318, %v1318
        %vm1351 = vcmp.ne.f32.partialorder %v1319, %v1319
        %vm1352 = vcmp.ne.f32.partialorder %v1320, %v1320
        %vm1353 = vcmp.ne.f32.partialorder %v1321, %v1321
        %vm1354 = vcmp.ne.f32.partialorder %v1322, %v1322
        %vm1355 = vcmp.ne.f32.partialorder %v1323, %v1323
        %vm1356 = vcmp.ne.f32.partialorder %v1324, %v1324
        %vm1357 = vcmp.ne.f32.partialorder %v1325, %v1325
        %v1358 = vadd.f32 %v1310, 0.0
        %v1359 = vadd.f32 %v1311, 0.0
        %v1360 = vadd.f32 %v1312, 0.0
        %v1361 = vadd.f32 %v1313, 0.0
        %v1362 = vadd.f32 %v1314, 0.0
        %v1363 = vadd.f32 %v1315, 0.0
        %v1364 = vadd.f32 %v1316, 0.0
        %v1365 = vadd.f32 %v1317, 0.0
        %v1366 = vadd.f32 %v1318, 0.0
        %v1367 = vadd.f32 %v1319, 0.0
        %v1368 = vadd.f32 %v1320, 0.0
        %v1369 = vadd.f32 %v1321, 0.0
        %v1370 = vadd.f32 %v1322, 0.0
        %v1371 = vadd.f32 %v1323, 0.0
        %v1372 = vadd.f32 %v1324, 0.0
        %v1373 = vadd.f32 %v1325, 0.0
        %v1374 = vand.u32 2147483647, %v1310
        %v1375 = vand.u32 2147483647, %v1311
        %v1376 = vand.u32 2147483647, %v1312
        %v1377 = vand.u32 2147483647, %v1313
        %v1378 = vand.u32 2147483647, %v1314
        %v1379 = vand.u32 2147483647, %v1315
        %v1380 = vand.u32 2147483647, %v1316
        %v1381 = vand.u32 2147483647, %v1317
        %v1382 = vand.u32 2147483647, %v1318
        %v1383 = vand.u32 2147483647, %v1319
        %v1384 = vand.u32 2147483647, %v1320
        %v1385 = vand.u32 2147483647, %v1321
        %v1386 = vand.u32 2147483647, %v1322
        %v1387 = vand.u32 2147483647, %v1323
        %v1388 = vand.u32 2147483647, %v1324
        %v1389 = vand.u32 2147483647, %v1325
        %v1390 = vsub.f32 0.0, %v1374
        %v1391 = vsub.f32 0.0, %v1375
        %v1392 = vsub.f32 0.0, %v1376
        %v1393 = vsub.f32 0.0, %v1377
        %v1394 = vsub.f32 0.0, %v1378
        %v1395 = vsub.f32 0.0, %v1379
        %v1396 = vsub.f32 0.0, %v1380
        %v1397 = vsub.f32 0.0, %v1381
        %v1398 = vsub.f32 0.0, %v1382
        %v1399 = vsub.f32 0.0, %v1383
        %v1400 = vsub.f32 0.0, %v1384
        %v1401 = vsub.f32 0.0, %v1385
        %v1402 = vsub.f32 0.0, %v1386
        %v1403 = vsub.f32 0.0, %v1387
        %v1404 = vsub.f32 0.0, %v1388
        %v1405 = vsub.f32 0.0, %v1389
        %v1406 = vmul.f32 %v1390, 1.442695
        %v1407 = vpow.pop %v1406
        %v1408 = vmul.f32 %v1391, 1.442695
        %v1409 = vpow.pop %v1408
        %v1410 = vmul.f32 %v1392, 1.442695
        %v1411 = vpow.pop %v1410
        %v1412 = vmul.f32 %v1393, 1.442695
        %v1413 = vpow.pop %v1412
        %v1414 = vmul.f32 %v1394, 1.442695
        %v1415 = vpow.pop %v1414
        %v1416 = vmul.f32 %v1395, 1.442695
        %v1417 = vpow.pop %v1416
        %v1418 = vmul.f32 %v1396, 1.442695
        %v1419 = vpow.pop %v1418
        %v1420 = vmul.f32 %v1397, 1.442695
        %v1421 = vpow.pop %v1420
        %v1422 = vmul.f32 %v1398, 1.442695
        %v1423 = vpow.pop %v1422
        %v1424 = vmul.f32 %v1399, 1.442695
        %v1425 = vpow.pop %v1424
        %v1426 = vmul.f32 %v1400, 1.442695
        %v1427 = vpow.pop %v1426
        %v1428 = vmul.f32 %v1401, 1.442695
        %v1429 = vpow.pop %v1428
        %v1430 = vmul.f32 %v1402, 1.442695
        %v1431 = vpow.pop %v1430
        %v1432 = vmul.f32 %v1403, 1.442695
        %v1433 = vpow.pop %v1432
        %v1434 = vmul.f32 %v1404, 1.442695
        %v1435 = vpow.pop %v1434
        %v1436 = vmul.f32 %v1405, 1.442695
        %v1437 = vpow.pop %v1436
        %v1438 = vadd.f32 %v1407, 1.0
        %v1439 = vlog2.pop %v1438
        %v1440 = vmul.f32 %v1439, 0.6931472
        %v1441 = vmul.f32 -0.5, %v1407
        %v1442 = vadd.f32 %v1441, 1.0
        %v1443 = vmul.f32 %v1442, %v1407
        %v1444 = vand.u32 2147483647, %v1407
        %vm1445 = vcmp.lt.f32.partialorder %v1444, 0.0004427343
        %v1446 = vsel %vm1445, %v1443, %v1440
        %v1447 = vadd.f32 %v1409, 1.0
        %v1448 = vlog2.pop %v1447
        %v1449 = vmul.f32 %v1448, 0.6931472
        %v1450 = vmul.f32 -0.5, %v1409
        %v1451 = vadd.f32 %v1450, 1.0
        %v1452 = vmul.f32 %v1451, %v1409
        %v1453 = vand.u32 2147483647, %v1409
        %vm1454 = vcmp.lt.f32.partialorder %v1453, 0.0004427343
        %v1455 = vsel %vm1454, %v1452, %v1449
        %v1456 = vadd.f32 %v1411, 1.0
        %v1457 = vlog2.pop %v1456
        %v1458 = vmul.f32 %v1457, 0.6931472
        %v1459 = vmul.f32 -0.5, %v1411
        %v1460 = vadd.f32 %v1459, 1.0
        %v1461 = vmul.f32 %v1460, %v1411
        %v1462 = vand.u32 2147483647, %v1411
        %vm1463 = vcmp.lt.f32.partialorder %v1462, 0.0004427343
        %v1464 = vsel %vm1463, %v1461, %v1458
        %v1465 = vadd.f32 %v1413, 1.0
        %v1466 = vlog2.pop %v1465
        %v1467 = vmul.f32 %v1466, 0.6931472
        %v1468 = vmul.f32 -0.5, %v1413
        %v1469 = vadd.f32 %v1468, 1.0
        %v1470 = vmul.f32 %v1469, %v1413
        %v1471 = vand.u32 2147483647, %v1413
        %vm1472 = vcmp.lt.f32.partialorder %v1471, 0.0004427343
        %v1473 = vsel %vm1472, %v1470, %v1467
        %v1474 = vadd.f32 %v1415, 1.0
        %v1475 = vlog2.pop %v1474
        %v1476 = vmul.f32 %v1475, 0.6931472
        %v1477 = vmul.f32 -0.5, %v1415
        %v1478 = vadd.f32 %v1477, 1.0
        %v1479 = vmul.f32 %v1478, %v1415
        %v1480 = vand.u32 2147483647, %v1415
        %vm1481 = vcmp.lt.f32.partialorder %v1480, 0.0004427343
        %v1482 = vsel %vm1481, %v1479, %v1476
        %v1483 = vadd.f32 %v1417, 1.0
        %v1484 = vlog2.pop %v1483
        %v1485 = vmul.f32 %v1484, 0.6931472
        %v1486 = vmul.f32 -0.5, %v1417
        %v1487 = vadd.f32 %v1486, 1.0
        %v1488 = vmul.f32 %v1487, %v1417
        %v1489 = vand.u32 2147483647, %v1417
        %vm1490 = vcmp.lt.f32.partialorder %v1489, 0.0004427343
        %v1491 = vsel %vm1490, %v1488, %v1485
        %v1492 = vadd.f32 %v1419, 1.0
        %v1493 = vlog2.pop %v1492
        %v1494 = vmul.f32 %v1493, 0.6931472
        %v1495 = vmul.f32 -0.5, %v1419
        %v1496 = vadd.f32 %v1495, 1.0
        %v1497 = vmul.f32 %v1496, %v1419
        %v1498 = vand.u32 2147483647, %v1419
        %vm1499 = vcmp.lt.f32.partialorder %v1498, 0.0004427343
        %v1500 = vsel %vm1499, %v1497, %v1494
        %v1501 = vadd.f32 %v1421, 1.0
        %v1502 = vlog2.pop %v1501
        %v1503 = vmul.f32 %v1502, 0.6931472
        %v1504 = vmul.f32 -0.5, %v1421
        %v1505 = vadd.f32 %v1504, 1.0
        %v1506 = vmul.f32 %v1505, %v1421
        %v1507 = vand.u32 2147483647, %v1421
        %vm1508 = vcmp.lt.f32.partialorder %v1507, 0.0004427343
        %v1509 = vsel %vm1508, %v1506, %v1503
        %v1510 = vadd.f32 %v1423, 1.0
        %v1511 = vlog2.pop %v1510
        %v1512 = vmul.f32 %v1511, 0.6931472
        %v1513 = vmul.f32 -0.5, %v1423
        %v1514 = vadd.f32 %v1513, 1.0
        %v1515 = vmul.f32 %v1514, %v1423
        %v1516 = vand.u32 2147483647, %v1423
        %vm1517 = vcmp.lt.f32.partialorder %v1516, 0.0004427343
        %v1518 = vsel %vm1517, %v1515, %v1512
        %v1519 = vadd.f32 %v1425, 1.0
        %v1520 = vlog2.pop %v1519
        %v1521 = vmul.f32 %v1520, 0.6931472
        %v1522 = vmul.f32 -0.5, %v1425
        %v1523 = vadd.f32 %v1522, 1.0
        %v1524 = vmul.f32 %v1523, %v1425
        %v1525 = vand.u32 2147483647, %v1425
        %vm1526 = vcmp.lt.f32.partialorder %v1525, 0.0004427343
        %v1527 = vsel %vm1526, %v1524, %v1521
        %v1528 = vadd.f32 %v1427, 1.0
        %v1529 = vlog2.pop %v1528
        %v1530 = vmul.f32 %v1529, 0.6931472
        %v1531 = vmul.f32 -0.5, %v1427
        %v1532 = vadd.f32 %v1531, 1.0
        %v1533 = vmul.f32 %v1532, %v1427
        %v1534 = vand.u32 2147483647, %v1427
        %vm1535 = vcmp.lt.f32.partialorder %v1534, 0.0004427343
        %v1536 = vsel %vm1535, %v1533, %v1530
        %v1537 = vadd.f32 %v1429, 1.0
        %v1538 = vlog2.pop %v1537
        %v1539 = vmul.f32 %v1538, 0.6931472
        %v1540 = vmul.f32 -0.5, %v1429
        %v1541 = vadd.f32 %v1540, 1.0
        %v1542 = vmul.f32 %v1541, %v1429
        %v1543 = vand.u32 2147483647, %v1429
        %vm1544 = vcmp.lt.f32.partialorder %v1543, 0.0004427343
        %v1545 = vsel %vm1544, %v1542, %v1539
        %v1546 = vadd.f32 %v1431, 1.0
        %v1547 = vlog2.pop %v1546
        %v1548 = vmul.f32 %v1547, 0.6931472
        %v1549 = vmul.f32 -0.5, %v1431
        %v1550 = vadd.f32 %v1549, 1.0
        %v1551 = vmul.f32 %v1550, %v1431
        %v1552 = vand.u32 2147483647, %v1431
        %vm1553 = vcmp.lt.f32.partialorder %v1552, 0.0004427343
        %v1554 = vsel %vm1553, %v1551, %v1548
        %v1555 = vadd.f32 %v1433, 1.0
        %v1556 = vlog2.pop %v1555
        %v1557 = vmul.f32 %v1556, 0.6931472
        %v1558 = vmul.f32 -0.5, %v1433
        %v1559 = vadd.f32 %v1558, 1.0
        %v1560 = vmul.f32 %v1559, %v1433
        %v1561 = vand.u32 2147483647, %v1433
        %vm1562 = vcmp.lt.f32.partialorder %v1561, 0.0004427343
        %v1563 = vsel %vm1562, %v1560, %v1557
        %v1564 = vadd.f32 %v1435, 1.0
        %v1565 = vlog2.pop %v1564
        %v1566 = vmul.f32 %v1565, 0.6931472
        %v1567 = vmul.f32 -0.5, %v1435
        %v1568 = vadd.f32 %v1567, 1.0
        %v1569 = vmul.f32 %v1568, %v1435
        %v1570 = vand.u32 2147483647, %v1435
        %vm1571 = vcmp.lt.f32.partialorder %v1570, 0.0004427343
        %v1572 = vsel %vm1571, %v1569, %v1566
        %v1573 = vadd.f32 %v1437, 1.0
        %v1574 = vlog2.pop %v1573
        %v1575 = vmul.f32 %v1574, 0.6931472
        %v1576 = vmul.f32 -0.5, %v1437
        %v1577 = vadd.f32 %v1576, 1.0
        %v1578 = vmul.f32 %v1577, %v1437
        %v1579 = vand.u32 2147483647, %v1437
        %vm1580 = vcmp.lt.f32.partialorder %v1579, 0.0004427343
        %v1581 = vsel %vm1580, %v1578, %v1575
        %v1582 = vadd.f32 %v1326, %v1446
        %v1583 = vadd.f32 %v1327, %v1455
        %v1584 = vadd.f32 %v1328, %v1464
        %v1585 = vadd.f32 %v1329, %v1473
        %v1586 = vadd.f32 %v1330, %v1482
        %v1587 = vadd.f32 %v1331, %v1491
        %v1588 = vadd.f32 %v1332, %v1500
        %v1589 = vadd.f32 %v1333, %v1509
        %v1590 = vadd.f32 %v1334, %v1518
        %v1591 = vadd.f32 %v1335, %v1527
        %v1592 = vadd.f32 %v1336, %v1536
        %v1593 = vadd.f32 %v1337, %v1545
        %v1594 = vadd.f32 %v1338, %v1554
        %v1595 = vadd.f32 %v1339, %v1563
        %v1596 = vadd.f32 %v1340, %v1572
        %v1597 = vadd.f32 %v1341, %v1581
        %v1598 = vsel %vm1342, %v1358, %v1582
        %v1599 = vsel %vm1343, %v1359, %v1583
        %v1600 = vsel %vm1344, %v1360, %v1584
        %v1601 = vsel %vm1345, %v1361, %v1585
        %v1602 = vsel %vm1346, %v1362, %v1586
        %v1603 = vsel %vm1347, %v1363, %v1587
        %v1604 = vsel %vm1348, %v1364, %v1588
        %v1605 = vsel %vm1349, %v1365, %v1589
        %v1606 = vsel %vm1350, %v1366, %v1590
        %v1607 = vsel %vm1351, %v1367, %v1591
        %v1608 = vsel %vm1352, %v1368, %v1592
        %v1609 = vsel %vm1353, %v1369, %v1593
        %v1610 = vsel %vm1354, %v1370, %v1594
        %v1611 = vsel %vm1355, %v1371, %v1595
        %v1612 = vsel %vm1356, %v1372, %v1596
        %v1613 = vsel %vm1357, %v1373, %v1597
        %1630 = vrot.lane.b32.xlu0 %v1241, 56
        %v1631 = vpop.permute.xlu0 %1630
        %1632 = vrot.lane.b32.xlu0 %v1244, 56
        %v1633 = vpop.permute.xlu0 %1632
        %1634 = vrot.lane.b32.xlu0 %v1249, 56
        %v1635 = vpop.permute.xlu0 %1634
        %1636 = vrot.lane.b32.xlu0 %v1252, 56
        %v1637 = vpop.permute.xlu0 %1636
        %1638 = vrot.lane.b32.xlu0 %v1257, 56
        %v1639 = vpop.permute.xlu0 %1638
        %1640 = vrot.lane.b32.xlu0 %v1260, 56
        %v1641 = vpop.permute.xlu0 %1640
        %1642 = vrot.lane.b32.xlu0 %v1265, 56
        %v1643 = vpop.permute.xlu0 %1642
        %1644 = vrot.lane.b32.xlu0 %v1268, 56
        %v1645 = vpop.permute.xlu0 %1644
        %1646 = vrot.lane.b32.xlu0 %v1273, 56
        %v1647 = vpop.permute.xlu0 %1646
        %1648 = vrot.lane.b32.xlu0 %v1276, 56
        %v1649 = vpop.permute.xlu0 %1648
        %1650 = vrot.lane.b32.xlu0 %v1281, 56
        %v1651 = vpop.permute.xlu0 %1650
        %1652 = vrot.lane.b32.xlu0 %v1284, 56
        %v1653 = vpop.permute.xlu0 %1652
        %1654 = vrot.lane.b32.xlu0 %v1289, 56
        %v1655 = vpop.permute.xlu0 %1654
        %1656 = vrot.lane.b32.xlu0 %v1292, 56
        %v1657 = vpop.permute.xlu0 %1656
        %1658 = vrot.lane.b32.xlu0 %v1297, 56
        %v1659 = vpop.permute.xlu0 %1658
        %1660 = vrot.lane.b32.xlu0 %v1300, 56
        %v1661 = vpop.permute.xlu0 %1660
        %vm1678 = vcmask 64512
        %1679 = vst.msk [vmem:[#allocation8] sm:$0xff] %vm1678, %v1631
        %1680 = vst.msk [vmem:[#allocation8 + $0x8] sm:$0xff] %vm1678, %v1633
        %1681 = vst.msk [vmem:[#allocation8 + $0x10] sm:$0xff] %vm1678, %v1635
        %1682 = vst.msk [vmem:[#allocation8 + $0x18] sm:$0xff] %vm1678, %v1637
        %1683 = vst.msk [vmem:[#allocation8 + $0x20] sm:$0xff] %vm1678, %v1639
        %1684 = vst.msk [vmem:[#allocation8 + $0x28] sm:$0xff] %vm1678, %v1641
        %1685 = vst.msk [vmem:[#allocation8 + $0x30] sm:$0xff] %vm1678, %v1643
        %1686 = vst.msk [vmem:[#allocation8 + $0x38] sm:$0xff] %vm1678, %v1645
        %1687 = vst.msk [vmem:[#allocation8 + $0x40] sm:$0xff] %vm1678, %v1647
        %1688 = vst.msk [vmem:[#allocation8 + $0x48] sm:$0xff] %vm1678, %v1649
        %1689 = vst.msk [vmem:[#allocation8 + $0x50] sm:$0xff] %vm1678, %v1651
        %1690 = vst.msk [vmem:[#allocation8 + $0x58] sm:$0xff] %vm1678, %v1653
        %1691 = vst.msk [vmem:[#allocation8 + $0x60] sm:$0xff] %vm1678, %v1655
        %1692 = vst.msk [vmem:[#allocation8 + $0x68] sm:$0xff] %vm1678, %v1657
        %1693 = vst.msk [vmem:[#allocation8 + $0x70] sm:$0xff] %vm1678, %v1659
        %1694 = vst.msk [vmem:[#allocation8 + $0x78] sm:$0xff] %vm1678, %v1661
        %v1695 = vld [vmem:[%s6] sm:$0xff]
        %v1712 = vcombine.high %v1598, %v1598
        %v1714 = vunpack.c.l.s4 1966171168
        %v1715 = vunpack.c.0.s8 %v1714
        %v1716 = vlaneseq
        %v1717 = vshrl.u32 %v1716, 7
        %v1718 = vsub.s32 %v1715, %v1717
        %v1719 = vrot.slane %v1598, %v1718
        %v1721 = vunpack.c.l.s4 1966171168
        %v1722 = vunpack.c.0.s8 %v1721
        %v1723 = vlaneseq
        %v1724 = vshrl.u32 %v1723, 7
        %v1725 = vsub.s32 %v1722, %v1724
        %v1726 = vrot.slane %v1712, %v1725
        %v1727 = vcombine.high %v1719, %v1719
        %v1728 = vcombine.high %v1726, %v1726
        %v1730 = vunpack.c.l.s4 1966171168
        %v1731 = vunpack.c.0.s8 %v1730
        %v1732 = vlaneseq
        %v1733 = vshrl.u32 %v1732, 7
        %v1734 = vsub.s32 %v1731, %v1733
        %v1735 = vrot.slane %v1719, %v1734
        %v1737 = vunpack.c.l.s4 1966171168
        %v1738 = vunpack.c.0.s8 %v1737
        %v1739 = vlaneseq
        %v1740 = vshrl.u32 %v1739, 7
        %v1741 = vsub.s32 %v1738, %v1740
        %v1742 = vrot.slane %v1726, %v1741
        %v1744 = vunpack.c.l.s4 1966171168
        %v1745 = vunpack.c.0.s8 %v1744
        %v1746 = vlaneseq
        %v1747 = vshrl.u32 %v1746, 7
        %v1748 = vsub.s32 %v1745, %v1747
        %v1749 = vrot.slane %v1727, %v1748
        %v1751 = vunpack.c.l.s4 1966171168
        %v1752 = vunpack.c.0.s8 %v1751
        %v1753 = vlaneseq
        %v1754 = vshrl.u32 %v1753, 7
        %v1755 = vsub.s32 %v1752, %v1754
        %v1756 = vrot.slane %v1728, %v1755
        %v1757 = vcombine.high %v1735, %v1735
        %v1758 = vcombine.high %v1742, %v1742
        %v1759 = vcombine.high %v1749, %v1749
        %v1760 = vcombine.high %v1756, %v1756
        %v1761 = vcombine.high %v1599, %v1599
        %v1763 = vunpack.c.l.s4 1966171168
        %v1764 = vunpack.c.0.s8 %v1763
        %v1765 = vlaneseq
        %v1766 = vshrl.u32 %v1765, 7
        %v1767 = vsub.s32 %v1764, %v1766
        %v1768 = vrot.slane %v1599, %v1767
        %v1770 = vunpack.c.l.s4 1966171168
        %v1771 = vunpack.c.0.s8 %v1770
        %v1772 = vlaneseq
        %v1773 = vshrl.u32 %v1772, 7
        %v1774 = vsub.s32 %v1771, %v1773
        %v1775 = vrot.slane %v1761, %v1774
        %v1776 = vcombine.high %v1768, %v1768
        %v1777 = vcombine.high %v1775, %v1775
        %v1779 = vunpack.c.l.s4 1966171168
        %v1780 = vunpack.c.0.s8 %v1779
        %v1781 = vlaneseq
        %v1782 = vshrl.u32 %v1781, 7
        %v1783 = vsub.s32 %v1780, %v1782
        %v1784 = vrot.slane %v1768, %v1783
        %v1786 = vunpack.c.l.s4 1966171168
        %v1787 = vunpack.c.0.s8 %v1786
        %v1788 = vlaneseq
        %v1789 = vshrl.u32 %v1788, 7
        %v1790 = vsub.s32 %v1787, %v1789
        %v1791 = vrot.slane %v1775, %v1790
        %v1793 = vunpack.c.l.s4 1966171168
        %v1794 = vunpack.c.0.s8 %v1793
        %v1795 = vlaneseq
        %v1796 = vshrl.u32 %v1795, 7
        %v1797 = vsub.s32 %v1794, %v1796
        %v1798 = vrot.slane %v1776, %v1797
        %v1800 = vunpack.c.l.s4 1966171168
        %v1801 = vunpack.c.0.s8 %v1800
        %v1802 = vlaneseq
        %v1803 = vshrl.u32 %v1802, 7
        %v1804 = vsub.s32 %v1801, %v1803
        %v1805 = vrot.slane %v1777, %v1804
        %v1806 = vcombine.high %v1784, %v1784
        %v1807 = vcombine.high %v1791, %v1791
        %v1808 = vcombine.high %v1798, %v1798
        %v1809 = vcombine.high %v1805, %v1805
        %v1810 = vcombine.high %v1600, %v1600
        %v1812 = vunpack.c.l.s4 1966171168
        %v1813 = vunpack.c.0.s8 %v1812
        %v1814 = vlaneseq
        %v1815 = vshrl.u32 %v1814, 7
        %v1816 = vsub.s32 %v1813, %v1815
        %v1817 = vrot.slane %v1600, %v1816
        %v1819 = vunpack.c.l.s4 1966171168
        %v1820 = vunpack.c.0.s8 %v1819
        %v1821 = vlaneseq
        %v1822 = vshrl.u32 %v1821, 7
        %v1823 = vsub.s32 %v1820, %v1822
        %v1824 = vrot.slane %v1810, %v1823
        %v1825 = vcombine.high %v1817, %v1817
        %v1826 = vcombine.high %v1824, %v1824
        %v1828 = vunpack.c.l.s4 1966171168
        %v1829 = vunpack.c.0.s8 %v1828
        %v1830 = vlaneseq
        %v1831 = vshrl.u32 %v1830, 7
        %v1832 = vsub.s32 %v1829, %v1831
        %v1833 = vrot.slane %v1817, %v1832
        %v1835 = vunpack.c.l.s4 1966171168
        %v1836 = vunpack.c.0.s8 %v1835
        %v1837 = vlaneseq
        %v1838 = vshrl.u32 %v1837, 7
        %v1839 = vsub.s32 %v1836, %v1838
        %v1840 = vrot.slane %v1824, %v1839
        %v1842 = vunpack.c.l.s4 1966171168
        %v1843 = vunpack.c.0.s8 %v1842
        %v1844 = vlaneseq
        %v1845 = vshrl.u32 %v1844, 7
        %v1846 = vsub.s32 %v1843, %v1845
        %v1847 = vrot.slane %v1825, %v1846
        %v1849 = vunpack.c.l.s4 1966171168
        %v1850 = vunpack.c.0.s8 %v1849
        %v1851 = vlaneseq
        %v1852 = vshrl.u32 %v1851, 7
        %v1853 = vsub.s32 %v1850, %v1852
        %v1854 = vrot.slane %v1826, %v1853
        %v1855 = vcombine.high %v1833, %v1833
        %v1856 = vcombine.high %v1840, %v1840
        %v1857 = vcombine.high %v1847, %v1847
        %v1858 = vcombine.high %v1854, %v1854
        %v1859 = vcombine.high %v1601, %v1601
        %v1861 = vunpack.c.l.s4 1966171168
        %v1862 = vunpack.c.0.s8 %v1861
        %v1863 = vlaneseq
        %v1864 = vshrl.u32 %v1863, 7
        %v1865 = vsub.s32 %v1862, %v1864
        %v1866 = vrot.slane %v1601, %v1865
        %v1868 = vunpack.c.l.s4 1966171168
        %v1869 = vunpack.c.0.s8 %v1868
        %v1870 = vlaneseq
        %v1871 = vshrl.u32 %v1870, 7
        %v1872 = vsub.s32 %v1869, %v1871
        %v1873 = vrot.slane %v1859, %v1872
        %v1874 = vcombine.high %v1866, %v1866
        %v1875 = vcombine.high %v1873, %v1873
        %v1877 = vunpack.c.l.s4 1966171168
        %v1878 = vunpack.c.0.s8 %v1877
        %v1879 = vlaneseq
        %v1880 = vshrl.u32 %v1879, 7
        %v1881 = vsub.s32 %v1878, %v1880
        %v1882 = vrot.slane %v1866, %v1881
        %v1884 = vunpack.c.l.s4 1966171168
        %v1885 = vunpack.c.0.s8 %v1884
        %v1886 = vlaneseq
        %v1887 = vshrl.u32 %v1886, 7
        %v1888 = vsub.s32 %v1885, %v1887
        %v1889 = vrot.slane %v1873, %v1888
        %v1891 = vunpack.c.l.s4 1966171168
        %v1892 = vunpack.c.0.s8 %v1891
        %v1893 = vlaneseq
        %v1894 = vshrl.u32 %v1893, 7
        %v1895 = vsub.s32 %v1892, %v1894
        %v1896 = vrot.slane %v1874, %v1895
        %v1898 = vunpack.c.l.s4 1966171168
        %v1899 = vunpack.c.0.s8 %v1898
        %v1900 = vlaneseq
        %v1901 = vshrl.u32 %v1900, 7
        %v1902 = vsub.s32 %v1899, %v1901
        %v1903 = vrot.slane %v1875, %v1902
        %v1904 = vcombine.high %v1882, %v1882
        %v1905 = vcombine.high %v1889, %v1889
        %v1906 = vcombine.high %v1896, %v1896
        %v1907 = vcombine.high %v1903, %v1903
        %v1908 = vcombine.high %v1602, %v1602
        %v1910 = vunpack.c.l.s4 1966171168
        %v1911 = vunpack.c.0.s8 %v1910
        %v1912 = vlaneseq
        %v1913 = vshrl.u32 %v1912, 7
        %v1914 = vsub.s32 %v1911, %v1913
        %v1915 = vrot.slane %v1602, %v1914
        %v1917 = vunpack.c.l.s4 1966171168
        %v1918 = vunpack.c.0.s8 %v1917
        %v1919 = vlaneseq
        %v1920 = vshrl.u32 %v1919, 7
        %v1921 = vsub.s32 %v1918, %v1920
        %v1922 = vrot.slane %v1908, %v1921
        %v1923 = vcombine.high %v1915, %v1915
        %v1924 = vcombine.high %v1922, %v1922
        %v1926 = vunpack.c.l.s4 1966171168
        %v1927 = vunpack.c.0.s8 %v1926
        %v1928 = vlaneseq
        %v1929 = vshrl.u32 %v1928, 7
        %v1930 = vsub.s32 %v1927, %v1929
        %v1931 = vrot.slane %v1915, %v1930
        %v1933 = vunpack.c.l.s4 1966171168
        %v1934 = vunpack.c.0.s8 %v1933
        %v1935 = vlaneseq
        %v1936 = vshrl.u32 %v1935, 7
        %v1937 = vsub.s32 %v1934, %v1936
        %v1938 = vrot.slane %v1922, %v1937
        %v1940 = vunpack.c.l.s4 1966171168
        %v1941 = vunpack.c.0.s8 %v1940
        %v1942 = vlaneseq
        %v1943 = vshrl.u32 %v1942, 7
        %v1944 = vsub.s32 %v1941, %v1943
        %v1945 = vrot.slane %v1923, %v1944
        %v1947 = vunpack.c.l.s4 1966171168
        %v1948 = vunpack.c.0.s8 %v1947
        %v1949 = vlaneseq
        %v1950 = vshrl.u32 %v1949, 7
        %v1951 = vsub.s32 %v1948, %v1950
        %v1952 = vrot.slane %v1924, %v1951
        %v1953 = vcombine.high %v1931, %v1931
        %v1954 = vcombine.high %v1938, %v1938
        %v1955 = vcombine.high %v1945, %v1945
        %v1956 = vcombine.high %v1952, %v1952
        %v1957 = vcombine.high %v1603, %v1603
        %v1959 = vunpack.c.l.s4 1966171168
        %v1960 = vunpack.c.0.s8 %v1959
        %v1961 = vlaneseq
        %v1962 = vshrl.u32 %v1961, 7
        %v1963 = vsub.s32 %v1960, %v1962
        %v1964 = vrot.slane %v1603, %v1963
        %v1966 = vunpack.c.l.s4 1966171168
        %v1967 = vunpack.c.0.s8 %v1966
        %v1968 = vlaneseq
        %v1969 = vshrl.u32 %v1968, 7
        %v1970 = vsub.s32 %v1967, %v1969
        %v1971 = vrot.slane %v1957, %v1970
        %v1972 = vcombine.high %v1964, %v1964
        %v1973 = vcombine.high %v1971, %v1971
        %v1975 = vunpack.c.l.s4 1966171168
        %v1976 = vunpack.c.0.s8 %v1975
        %v1977 = vlaneseq
        %v1978 = vshrl.u32 %v1977, 7
        %v1979 = vsub.s32 %v1976, %v1978
        %v1980 = vrot.slane %v1964, %v1979
        %v1982 = vunpack.c.l.s4 1966171168
        %v1983 = vunpack.c.0.s8 %v1982
        %v1984 = vlaneseq
        %v1985 = vshrl.u32 %v1984, 7
        %v1986 = vsub.s32 %v1983, %v1985
        %v1987 = vrot.slane %v1971, %v1986
        %v1989 = vunpack.c.l.s4 1966171168
        %v1990 = vunpack.c.0.s8 %v1989
        %v1991 = vlaneseq
        %v1992 = vshrl.u32 %v1991, 7
        %v1993 = vsub.s32 %v1990, %v1992
        %v1994 = vrot.slane %v1972, %v1993
        %v1996 = vunpack.c.l.s4 1966171168
        %v1997 = vunpack.c.0.s8 %v1996
        %v1998 = vlaneseq
        %v1999 = vshrl.u32 %v1998, 7
        %v2000 = vsub.s32 %v1997, %v1999
        %v2001 = vrot.slane %v1973, %v2000
        %v2002 = vcombine.high %v1980, %v1980
        %v2003 = vcombine.high %v1987, %v1987
        %v2004 = vcombine.high %v1994, %v1994
        %v2005 = vcombine.high %v2001, %v2001
        %v2006 = vcombine.high %v1604, %v1604
        %v2008 = vunpack.c.l.s4 1966171168
        %v2009 = vunpack.c.0.s8 %v2008
        %v2010 = vlaneseq
        %v2011 = vshrl.u32 %v2010, 7
        %v2012 = vsub.s32 %v2009, %v2011
        %v2013 = vrot.slane %v1604, %v2012
        %v2015 = vunpack.c.l.s4 1966171168
        %v2016 = vunpack.c.0.s8 %v2015
        %v2017 = vlaneseq
        %v2018 = vshrl.u32 %v2017, 7
        %v2019 = vsub.s32 %v2016, %v2018
        %v2020 = vrot.slane %v2006, %v2019
        %v2021 = vcombine.high %v2013, %v2013
        %v2022 = vcombine.high %v2020, %v2020
        %v2024 = vunpack.c.l.s4 1966171168
        %v2025 = vunpack.c.0.s8 %v2024
        %v2026 = vlaneseq
        %v2027 = vshrl.u32 %v2026, 7
        %v2028 = vsub.s32 %v2025, %v2027
        %v2029 = vrot.slane %v2013, %v2028
        %v2031 = vunpack.c.l.s4 1966171168
        %v2032 = vunpack.c.0.s8 %v2031
        %v2033 = vlaneseq
        %v2034 = vshrl.u32 %v2033, 7
        %v2035 = vsub.s32 %v2032, %v2034
        %v2036 = vrot.slane %v2020, %v2035
        %v2038 = vunpack.c.l.s4 1966171168
        %v2039 = vunpack.c.0.s8 %v2038
        %v2040 = vlaneseq
        %v2041 = vshrl.u32 %v2040, 7
        %v2042 = vsub.s32 %v2039, %v2041
        %v2043 = vrot.slane %v2021, %v2042
        %v2045 = vunpack.c.l.s4 1966171168
        %v2046 = vunpack.c.0.s8 %v2045
        %v2047 = vlaneseq
        %v2048 = vshrl.u32 %v2047, 7
        %v2049 = vsub.s32 %v2046, %v2048
        %v2050 = vrot.slane %v2022, %v2049
        %v2051 = vcombine.high %v2029, %v2029
        %v2052 = vcombine.high %v2036, %v2036
        %v2053 = vcombine.high %v2043, %v2043
        %v2054 = vcombine.high %v2050, %v2050
        %v2055 = vcombine.high %v1605, %v1605
        %v2057 = vunpack.c.l.s4 1966171168
        %v2058 = vunpack.c.0.s8 %v2057
        %v2059 = vlaneseq
        %v2060 = vshrl.u32 %v2059, 7
        %v2061 = vsub.s32 %v2058, %v2060
        %v2062 = vrot.slane %v1605, %v2061
        %v2064 = vunpack.c.l.s4 1966171168
        %v2065 = vunpack.c.0.s8 %v2064
        %v2066 = vlaneseq
        %v2067 = vshrl.u32 %v2066, 7
        %v2068 = vsub.s32 %v2065, %v2067
        %v2069 = vrot.slane %v2055, %v2068
        %v2070 = vcombine.high %v2062, %v2062
        %v2071 = vcombine.high %v2069, %v2069
        %v2073 = vunpack.c.l.s4 1966171168
        %v2074 = vunpack.c.0.s8 %v2073
        %v2075 = vlaneseq
        %v2076 = vshrl.u32 %v2075, 7
        %v2077 = vsub.s32 %v2074, %v2076
        %v2078 = vrot.slane %v2062, %v2077
        %v2080 = vunpack.c.l.s4 1966171168
        %v2081 = vunpack.c.0.s8 %v2080
        %v2082 = vlaneseq
        %v2083 = vshrl.u32 %v2082, 7
        %v2084 = vsub.s32 %v2081, %v2083
        %v2085 = vrot.slane %v2069, %v2084
        %v2087 = vunpack.c.l.s4 1966171168
        %v2088 = vunpack.c.0.s8 %v2087
        %v2089 = vlaneseq
        %v2090 = vshrl.u32 %v2089, 7
        %v2091 = vsub.s32 %v2088, %v2090
        %v2092 = vrot.slane %v2070, %v2091
        %v2094 = vunpack.c.l.s4 1966171168
        %v2095 = vunpack.c.0.s8 %v2094
        %v2096 = vlaneseq
        %v2097 = vshrl.u32 %v2096, 7
        %v2098 = vsub.s32 %v2095, %v2097
        %v2099 = vrot.slane %v2071, %v2098
        %v2100 = vcombine.high %v2078, %v2078
        %v2101 = vcombine.high %v2085, %v2085
        %v2102 = vcombine.high %v2092, %v2092
        %v2103 = vcombine.high %v2099, %v2099
        %v2104 = vcombine.high %v1606, %v1606
        %v2106 = vunpack.c.l.s4 1966171168
        %v2107 = vunpack.c.0.s8 %v2106
        %v2108 = vlaneseq
        %v2109 = vshrl.u32 %v2108, 7
        %v2110 = vsub.s32 %v2107, %v2109
        %v2111 = vrot.slane %v1606, %v2110
        %v2113 = vunpack.c.l.s4 1966171168
        %v2114 = vunpack.c.0.s8 %v2113
        %v2115 = vlaneseq
        %v2116 = vshrl.u32 %v2115, 7
        %v2117 = vsub.s32 %v2114, %v2116
        %v2118 = vrot.slane %v2104, %v2117
        %v2119 = vcombine.high %v2111, %v2111
        %v2120 = vcombine.high %v2118, %v2118
        %v2122 = vunpack.c.l.s4 1966171168
        %v2123 = vunpack.c.0.s8 %v2122
        %v2124 = vlaneseq
        %v2125 = vshrl.u32 %v2124, 7
        %v2126 = vsub.s32 %v2123, %v2125
        %v2127 = vrot.slane %v2111, %v2126
        %v2129 = vunpack.c.l.s4 1966171168
        %v2130 = vunpack.c.0.s8 %v2129
        %v2131 = vlaneseq
        %v2132 = vshrl.u32 %v2131, 7
        %v2133 = vsub.s32 %v2130, %v2132
        %v2134 = vrot.slane %v2118, %v2133
        %v2136 = vunpack.c.l.s4 1966171168
        %v2137 = vunpack.c.0.s8 %v2136
        %v2138 = vlaneseq
        %v2139 = vshrl.u32 %v2138, 7
        %v2140 = vsub.s32 %v2137, %v2139
        %v2141 = vrot.slane %v2119, %v2140
        %v2143 = vunpack.c.l.s4 1966171168
        %v2144 = vunpack.c.0.s8 %v2143
        %v2145 = vlaneseq
        %v2146 = vshrl.u32 %v2145, 7
        %v2147 = vsub.s32 %v2144, %v2146
        %v2148 = vrot.slane %v2120, %v2147
        %v2149 = vcombine.high %v2127, %v2127
        %v2150 = vcombine.high %v2134, %v2134
        %v2151 = vcombine.high %v2141, %v2141
        %v2152 = vcombine.high %v2148, %v2148
        %v2153 = vcombine.high %v1607, %v1607
        %v2155 = vunpack.c.l.s4 1966171168
        %v2156 = vunpack.c.0.s8 %v2155
        %v2157 = vlaneseq
        %v2158 = vshrl.u32 %v2157, 7
        %v2159 = vsub.s32 %v2156, %v2158
        %v2160 = vrot.slane %v1607, %v2159
        %v2162 = vunpack.c.l.s4 1966171168
        %v2163 = vunpack.c.0.s8 %v2162
        %v2164 = vlaneseq
        %v2165 = vshrl.u32 %v2164, 7
        %v2166 = vsub.s32 %v2163, %v2165
        %v2167 = vrot.slane %v2153, %v2166
        %v2168 = vcombine.high %v2160, %v2160
        %v2169 = vcombine.high %v2167, %v2167
        %v2171 = vunpack.c.l.s4 1966171168
        %v2172 = vunpack.c.0.s8 %v2171
        %v2173 = vlaneseq
        %v2174 = vshrl.u32 %v2173, 7
        %v2175 = vsub.s32 %v2172, %v2174
        %v2176 = vrot.slane %v2160, %v2175
        %v2178 = vunpack.c.l.s4 1966171168
        %v2179 = vunpack.c.0.s8 %v2178
        %v2180 = vlaneseq
        %v2181 = vshrl.u32 %v2180, 7
        %v2182 = vsub.s32 %v2179, %v2181
        %v2183 = vrot.slane %v2167, %v2182
        %v2185 = vunpack.c.l.s4 1966171168
        %v2186 = vunpack.c.0.s8 %v2185
        %v2187 = vlaneseq
        %v2188 = vshrl.u32 %v2187, 7
        %v2189 = vsub.s32 %v2186, %v2188
        %v2190 = vrot.slane %v2168, %v2189
        %v2192 = vunpack.c.l.s4 1966171168
        %v2193 = vunpack.c.0.s8 %v2192
        %v2194 = vlaneseq
        %v2195 = vshrl.u32 %v2194, 7
        %v2196 = vsub.s32 %v2193, %v2195
        %v2197 = vrot.slane %v2169, %v2196
        %v2198 = vcombine.high %v2176, %v2176
        %v2199 = vcombine.high %v2183, %v2183
        %v2200 = vcombine.high %v2190, %v2190
        %v2201 = vcombine.high %v2197, %v2197
        %v2202 = vcombine.high %v1608, %v1608
        %v2204 = vunpack.c.l.s4 1966171168
        %v2205 = vunpack.c.0.s8 %v2204
        %v2206 = vlaneseq
        %v2207 = vshrl.u32 %v2206, 7
        %v2208 = vsub.s32 %v2205, %v2207
        %v2209 = vrot.slane %v1608, %v2208
        %v2211 = vunpack.c.l.s4 1966171168
        %v2212 = vunpack.c.0.s8 %v2211
        %v2213 = vlaneseq
        %v2214 = vshrl.u32 %v2213, 7
        %v2215 = vsub.s32 %v2212, %v2214
        %v2216 = vrot.slane %v2202, %v2215
        %v2217 = vcombine.high %v2209, %v2209
        %v2218 = vcombine.high %v2216, %v2216
        %v2220 = vunpack.c.l.s4 1966171168
        %v2221 = vunpack.c.0.s8 %v2220
        %v2222 = vlaneseq
        %v2223 = vshrl.u32 %v2222, 7
        %v2224 = vsub.s32 %v2221, %v2223
        %v2225 = vrot.slane %v2209, %v2224
        %v2227 = vunpack.c.l.s4 1966171168
        %v2228 = vunpack.c.0.s8 %v2227
        %v2229 = vlaneseq
        %v2230 = vshrl.u32 %v2229, 7
        %v2231 = vsub.s32 %v2228, %v2230
        %v2232 = vrot.slane %v2216, %v2231
        %v2234 = vunpack.c.l.s4 1966171168
        %v2235 = vunpack.c.0.s8 %v2234
        %v2236 = vlaneseq
        %v2237 = vshrl.u32 %v2236, 7
        %v2238 = vsub.s32 %v2235, %v2237
        %v2239 = vrot.slane %v2217, %v2238
        %v2241 = vunpack.c.l.s4 1966171168
        %v2242 = vunpack.c.0.s8 %v2241
        %v2243 = vlaneseq
        %v2244 = vshrl.u32 %v2243, 7
        %v2245 = vsub.s32 %v2242, %v2244
        %v2246 = vrot.slane %v2218, %v2245
        %v2247 = vcombine.high %v2225, %v2225
        %v2248 = vcombine.high %v2232, %v2232
        %v2249 = vcombine.high %v2239, %v2239
        %v2250 = vcombine.high %v2246, %v2246
        %v2251 = vcombine.high %v1609, %v1609
        %v2253 = vunpack.c.l.s4 1966171168
        %v2254 = vunpack.c.0.s8 %v2253
        %v2255 = vlaneseq
        %v2256 = vshrl.u32 %v2255, 7
        %v2257 = vsub.s32 %v2254, %v2256
        %v2258 = vrot.slane %v1609, %v2257
        %v2260 = vunpack.c.l.s4 1966171168
        %v2261 = vunpack.c.0.s8 %v2260
        %v2262 = vlaneseq
        %v2263 = vshrl.u32 %v2262, 7
        %v2264 = vsub.s32 %v2261, %v2263
        %v2265 = vrot.slane %v2251, %v2264
        %v2266 = vcombine.high %v2258, %v2258
        %v2267 = vcombine.high %v2265, %v2265
        %v2269 = vunpack.c.l.s4 1966171168
        %v2270 = vunpack.c.0.s8 %v2269
        %v2271 = vlaneseq
        %v2272 = vshrl.u32 %v2271, 7
        %v2273 = vsub.s32 %v2270, %v2272
        %v2274 = vrot.slane %v2258, %v2273
        %v2276 = vunpack.c.l.s4 1966171168
        %v2277 = vunpack.c.0.s8 %v2276
        %v2278 = vlaneseq
        %v2279 = vshrl.u32 %v2278, 7
        %v2280 = vsub.s32 %v2277, %v2279
        %v2281 = vrot.slane %v2265, %v2280
        %v2283 = vunpack.c.l.s4 1966171168
        %v2284 = vunpack.c.0.s8 %v2283
        %v2285 = vlaneseq
        %v2286 = vshrl.u32 %v2285, 7
        %v2287 = vsub.s32 %v2284, %v2286
        %v2288 = vrot.slane %v2266, %v2287
        %v2290 = vunpack.c.l.s4 1966171168
        %v2291 = vunpack.c.0.s8 %v2290
        %v2292 = vlaneseq
        %v2293 = vshrl.u32 %v2292, 7
        %v2294 = vsub.s32 %v2291, %v2293
        %v2295 = vrot.slane %v2267, %v2294
        %v2296 = vcombine.high %v2274, %v2274
        %v2297 = vcombine.high %v2281, %v2281
        %v2298 = vcombine.high %v2288, %v2288
        %v2299 = vcombine.high %v2295, %v2295
        %v2300 = vcombine.high %v1610, %v1610
        %v2302 = vunpack.c.l.s4 1966171168
        %v2303 = vunpack.c.0.s8 %v2302
        %v2304 = vlaneseq
        %v2305 = vshrl.u32 %v2304, 7
        %v2306 = vsub.s32 %v2303, %v2305
        %v2307 = vrot.slane %v1610, %v2306
        %v2309 = vunpack.c.l.s4 1966171168
        %v2310 = vunpack.c.0.s8 %v2309
        %v2311 = vlaneseq
        %v2312 = vshrl.u32 %v2311, 7
        %v2313 = vsub.s32 %v2310, %v2312
        %v2314 = vrot.slane %v2300, %v2313
        %v2315 = vcombine.high %v2307, %v2307
        %v2316 = vcombine.high %v2314, %v2314
        %v2318 = vunpack.c.l.s4 1966171168
        %v2319 = vunpack.c.0.s8 %v2318
        %v2320 = vlaneseq
        %v2321 = vshrl.u32 %v2320, 7
        %v2322 = vsub.s32 %v2319, %v2321
        %v2323 = vrot.slane %v2307, %v2322
        %v2325 = vunpack.c.l.s4 1966171168
        %v2326 = vunpack.c.0.s8 %v2325
        %v2327 = vlaneseq
        %v2328 = vshrl.u32 %v2327, 7
        %v2329 = vsub.s32 %v2326, %v2328
        %v2330 = vrot.slane %v2314, %v2329
        %v2332 = vunpack.c.l.s4 1966171168
        %v2333 = vunpack.c.0.s8 %v2332
        %v2334 = vlaneseq
        %v2335 = vshrl.u32 %v2334, 7
        %v2336 = vsub.s32 %v2333, %v2335
        %v2337 = vrot.slane %v2315, %v2336
        %v2339 = vunpack.c.l.s4 1966171168
        %v2340 = vunpack.c.0.s8 %v2339
        %v2341 = vlaneseq
        %v2342 = vshrl.u32 %v2341, 7
        %v2343 = vsub.s32 %v2340, %v2342
        %v2344 = vrot.slane %v2316, %v2343
        %v2345 = vcombine.high %v2323, %v2323
        %v2346 = vcombine.high %v2330, %v2330
        %v2347 = vcombine.high %v2337, %v2337
        %v2348 = vcombine.high %v2344, %v2344
        %v2349 = vcombine.high %v1611, %v1611
        %v2351 = vunpack.c.l.s4 1966171168
        %v2352 = vunpack.c.0.s8 %v2351
        %v2353 = vlaneseq
        %v2354 = vshrl.u32 %v2353, 7
        %v2355 = vsub.s32 %v2352, %v2354
        %v2356 = vrot.slane %v1611, %v2355
        %v2358 = vunpack.c.l.s4 1966171168
        %v2359 = vunpack.c.0.s8 %v2358
        %v2360 = vlaneseq
        %v2361 = vshrl.u32 %v2360, 7
        %v2362 = vsub.s32 %v2359, %v2361
        %v2363 = vrot.slane %v2349, %v2362
        %v2364 = vcombine.high %v2356, %v2356
        %v2365 = vcombine.high %v2363, %v2363
        %v2367 = vunpack.c.l.s4 1966171168
        %v2368 = vunpack.c.0.s8 %v2367
        %v2369 = vlaneseq
        %v2370 = vshrl.u32 %v2369, 7
        %v2371 = vsub.s32 %v2368, %v2370
        %v2372 = vrot.slane %v2356, %v2371
        %v2374 = vunpack.c.l.s4 1966171168
        %v2375 = vunpack.c.0.s8 %v2374
        %v2376 = vlaneseq
        %v2377 = vshrl.u32 %v2376, 7
        %v2378 = vsub.s32 %v2375, %v2377
        %v2379 = vrot.slane %v2363, %v2378
        %v2381 = vunpack.c.l.s4 1966171168
        %v2382 = vunpack.c.0.s8 %v2381
        %v2383 = vlaneseq
        %v2384 = vshrl.u32 %v2383, 7
        %v2385 = vsub.s32 %v2382, %v2384
        %v2386 = vrot.slane %v2364, %v2385
        %v2388 = vunpack.c.l.s4 1966171168
        %v2389 = vunpack.c.0.s8 %v2388
        %v2390 = vlaneseq
        %v2391 = vshrl.u32 %v2390, 7
        %v2392 = vsub.s32 %v2389, %v2391
        %v2393 = vrot.slane %v2365, %v2392
        %v2394 = vcombine.high %v2372, %v2372
        %v2395 = vcombine.high %v2379, %v2379
        %v2396 = vcombine.high %v2386, %v2386
        %v2397 = vcombine.high %v2393, %v2393
        %v2398 = vcombine.high %v1612, %v1612
        %v2400 = vunpack.c.l.s4 1966171168
        %v2401 = vunpack.c.0.s8 %v2400
        %v2402 = vlaneseq
        %v2403 = vshrl.u32 %v2402, 7
        %v2404 = vsub.s32 %v2401, %v2403
        %v2405 = vrot.slane %v1612, %v2404
        %v2407 = vunpack.c.l.s4 1966171168
        %v2408 = vunpack.c.0.s8 %v2407
        %v2409 = vlaneseq
        %v2410 = vshrl.u32 %v2409, 7
        %v2411 = vsub.s32 %v2408, %v2410
        %v2412 = vrot.slane %v2398, %v2411
        %v2413 = vcombine.high %v2405, %v2405
        %v2414 = vcombine.high %v2412, %v2412
        %v2416 = vunpack.c.l.s4 1966171168
        %v2417 = vunpack.c.0.s8 %v2416
        %v2418 = vlaneseq
        %v2419 = vshrl.u32 %v2418, 7
        %v2420 = vsub.s32 %v2417, %v2419
        %v2421 = vrot.slane %v2405, %v2420
        %v2423 = vunpack.c.l.s4 1966171168
        %v2424 = vunpack.c.0.s8 %v2423
        %v2425 = vlaneseq
        %v2426 = vshrl.u32 %v2425, 7
        %v2427 = vsub.s32 %v2424, %v2426
        %v2428 = vrot.slane %v2412, %v2427
        %v2430 = vunpack.c.l.s4 1966171168
        %v2431 = vunpack.c.0.s8 %v2430
        %v2432 = vlaneseq
        %v2433 = vshrl.u32 %v2432, 7
        %v2434 = vsub.s32 %v2431, %v2433
        %v2435 = vrot.slane %v2413, %v2434
        %v2437 = vunpack.c.l.s4 1966171168
        %v2438 = vunpack.c.0.s8 %v2437
        %v2439 = vlaneseq
        %v2440 = vshrl.u32 %v2439, 7
        %v2441 = vsub.s32 %v2438, %v2440
        %v2442 = vrot.slane %v2414, %v2441
        %v2443 = vcombine.high %v2421, %v2421
        %v2444 = vcombine.high %v2428, %v2428
        %v2445 = vcombine.high %v2435, %v2435
        %v2446 = vcombine.high %v2442, %v2442
        %v2447 = vcombine.high %v1613, %v1613
        %v2449 = vunpack.c.l.s4 1966171168
        %v2450 = vunpack.c.0.s8 %v2449
        %v2451 = vlaneseq
        %v2452 = vshrl.u32 %v2451, 7
        %v2453 = vsub.s32 %v2450, %v2452
        %v2454 = vrot.slane %v1613, %v2453
        %v2456 = vunpack.c.l.s4 1966171168
        %v2457 = vunpack.c.0.s8 %v2456
        %v2458 = vlaneseq
        %v2459 = vshrl.u32 %v2458, 7
        %v2460 = vsub.s32 %v2457, %v2459
        %v2461 = vrot.slane %v2447, %v2460
        %v2462 = vcombine.high %v2454, %v2454
        %v2463 = vcombine.high %v2461, %v2461
        %v2465 = vunpack.c.l.s4 1966171168
        %v2466 = vunpack.c.0.s8 %v2465
        %v2467 = vlaneseq
        %v2468 = vshrl.u32 %v2467, 7
        %v2469 = vsub.s32 %v2466, %v2468
        %v2470 = vrot.slane %v2454, %v2469
        %v2472 = vunpack.c.l.s4 1966171168
        %v2473 = vunpack.c.0.s8 %v2472
        %v2474 = vlaneseq
        %v2475 = vshrl.u32 %v2474, 7
        %v2476 = vsub.s32 %v2473, %v2475
        %v2477 = vrot.slane %v2461, %v2476
        %v2479 = vunpack.c.l.s4 1966171168
        %v2480 = vunpack.c.0.s8 %v2479
        %v2481 = vlaneseq
        %v2482 = vshrl.u32 %v2481, 7
        %v2483 = vsub.s32 %v2480, %v2482
        %v2484 = vrot.slane %v2462, %v2483
        %v2486 = vunpack.c.l.s4 1966171168
        %v2487 = vunpack.c.0.s8 %v2486
        %v2488 = vlaneseq
        %v2489 = vshrl.u32 %v2488, 7
        %v2490 = vsub.s32 %v2487, %v2489
        %v2491 = vrot.slane %v2463, %v2490
        %v2492 = vcombine.high %v2470, %v2470
        %v2493 = vcombine.high %v2477, %v2477
        %v2494 = vcombine.high %v2484, %v2484
        %v2495 = vcombine.high %v2491, %v2491
        %v2496 = vlaneseq
        %v2497 = vshrl.u32 %v2496, 7
        %v2498 = vsub.s32 0, %v2497
        %v2499 = vrot.slane %v1735, %v2498
        %v2500 = vlaneseq
        %v2501 = vshrl.u32 %v2500, 7
        %v2502 = vsub.s32 0, %v2501
        %v2503 = vrot.slane %v1749, %v2502
        %v2504 = vlaneseq
        %v2505 = vshrl.u32 %v2504, 7
        %v2506 = vsub.s32 0, %v2505
        %v2507 = vrot.slane %v1757, %v2506
        %v2508 = vlaneseq
        %v2509 = vshrl.u32 %v2508, 7
        %v2510 = vsub.s32 0, %v2509
        %v2511 = vrot.slane %v1759, %v2510
        %v2512 = vlaneseq
        %v2513 = vshrl.u32 %v2512, 7
        %v2514 = vsub.s32 0, %v2513
        %v2515 = vrot.slane %v1742, %v2514
        %v2516 = vlaneseq
        %v2517 = vshrl.u32 %v2516, 7
        %v2518 = vsub.s32 0, %v2517
        %v2519 = vrot.slane %v1756, %v2518
        %v2520 = vlaneseq
        %v2521 = vshrl.u32 %v2520, 7
        %v2522 = vsub.s32 0, %v2521
        %v2523 = vrot.slane %v1758, %v2522
        %v2524 = vlaneseq
        %v2525 = vshrl.u32 %v2524, 7
        %v2526 = vsub.s32 0, %v2525
        %v2527 = vrot.slane %v1760, %v2526
        %v2528 = vlaneseq
        %v2529 = vshrl.u32 %v2528, 7
        %v2530 = vsub.s32 0, %v2529
        %v2531 = vrot.slane %v1784, %v2530
        %v2532 = vlaneseq
        %v2533 = vshrl.u32 %v2532, 7
        %v2534 = vsub.s32 0, %v2533
        %v2535 = vrot.slane %v1798, %v2534
        %v2536 = vlaneseq
        %v2537 = vshrl.u32 %v2536, 7
        %v2538 = vsub.s32 0, %v2537
        %v2539 = vrot.slane %v1806, %v2538
        %v2540 = vlaneseq
        %v2541 = vshrl.u32 %v2540, 7
        %v2542 = vsub.s32 0, %v2541
        %v2543 = vrot.slane %v1808, %v2542
        %v2544 = vlaneseq
        %v2545 = vshrl.u32 %v2544, 7
        %v2546 = vsub.s32 0, %v2545
        %v2547 = vrot.slane %v1791, %v2546
        %v2548 = vlaneseq
        %v2549 = vshrl.u32 %v2548, 7
        %v2550 = vsub.s32 0, %v2549
        %v2551 = vrot.slane %v1805, %v2550
        %v2552 = vlaneseq
        %v2553 = vshrl.u32 %v2552, 7
        %v2554 = vsub.s32 0, %v2553
        %v2555 = vrot.slane %v1807, %v2554
        %v2556 = vlaneseq
        %v2557 = vshrl.u32 %v2556, 7
        %v2558 = vsub.s32 0, %v2557
        %v2559 = vrot.slane %v1809, %v2558
        %v2560 = vlaneseq
        %v2561 = vshrl.u32 %v2560, 7
        %v2562 = vsub.s32 0, %v2561
        %v2563 = vrot.slane %v1833, %v2562
        %v2564 = vlaneseq
        %v2565 = vshrl.u32 %v2564, 7
        %v2566 = vsub.s32 0, %v2565
        %v2567 = vrot.slane %v1847, %v2566
        %v2568 = vlaneseq
        %v2569 = vshrl.u32 %v2568, 7
        %v2570 = vsub.s32 0, %v2569
        %v2571 = vrot.slane %v1855, %v2570
        %v2572 = vlaneseq
        %v2573 = vshrl.u32 %v2572, 7
        %v2574 = vsub.s32 0, %v2573
        %v2575 = vrot.slane %v1857, %v2574
        %v2576 = vlaneseq
        %v2577 = vshrl.u32 %v2576, 7
        %v2578 = vsub.s32 0, %v2577
        %v2579 = vrot.slane %v1840, %v2578
        %v2580 = vlaneseq
        %v2581 = vshrl.u32 %v2580, 7
        %v2582 = vsub.s32 0, %v2581
        %v2583 = vrot.slane %v1854, %v2582
        %v2584 = vlaneseq
        %v2585 = vshrl.u32 %v2584, 7
        %v2586 = vsub.s32 0, %v2585
        %v2587 = vrot.slane %v1856, %v2586
        %v2588 = vlaneseq
        %v2589 = vshrl.u32 %v2588, 7
        %v2590 = vsub.s32 0, %v2589
        %v2591 = vrot.slane %v1858, %v2590
        %v2592 = vlaneseq
        %v2593 = vshrl.u32 %v2592, 7
        %v2594 = vsub.s32 0, %v2593
        %v2595 = vrot.slane %v1882, %v2594
        %v2596 = vlaneseq
        %v2597 = vshrl.u32 %v2596, 7
        %v2598 = vsub.s32 0, %v2597
        %v2599 = vrot.slane %v1896, %v2598
        %v2600 = vlaneseq
        %v2601 = vshrl.u32 %v2600, 7
        %v2602 = vsub.s32 0, %v2601
        %v2603 = vrot.slane %v1904, %v2602
        %v2604 = vlaneseq
        %v2605 = vshrl.u32 %v2604, 7
        %v2606 = vsub.s32 0, %v2605
        %v2607 = vrot.slane %v1906, %v2606
        %v2608 = vlaneseq
        %v2609 = vshrl.u32 %v2608, 7
        %v2610 = vsub.s32 0, %v2609
        %v2611 = vrot.slane %v1889, %v2610
        %v2612 = vlaneseq
        %v2613 = vshrl.u32 %v2612, 7
        %v2614 = vsub.s32 0, %v2613
        %v2615 = vrot.slane %v1903, %v2614
        %v2616 = vlaneseq
        %v2617 = vshrl.u32 %v2616, 7
        %v2618 = vsub.s32 0, %v2617
        %v2619 = vrot.slane %v1905, %v2618
        %v2620 = vlaneseq
        %v2621 = vshrl.u32 %v2620, 7
        %v2622 = vsub.s32 0, %v2621
        %v2623 = vrot.slane %v1907, %v2622
        %v2624 = vlaneseq
        %v2625 = vshrl.u32 %v2624, 7
        %v2626 = vsub.s32 0, %v2625
        %v2627 = vrot.slane %v1931, %v2626
        %v2628 = vlaneseq
        %v2629 = vshrl.u32 %v2628, 7
        %v2630 = vsub.s32 0, %v2629
        %v2631 = vrot.slane %v1945, %v2630
        %v2632 = vlaneseq
        %v2633 = vshrl.u32 %v2632, 7
        %v2634 = vsub.s32 0, %v2633
        %v2635 = vrot.slane %v1953, %v2634
        %v2636 = vlaneseq
        %v2637 = vshrl.u32 %v2636, 7
        %v2638 = vsub.s32 0, %v2637
        %v2639 = vrot.slane %v1955, %v2638
        %v2640 = vlaneseq
        %v2641 = vshrl.u32 %v2640, 7
        %v2642 = vsub.s32 0, %v2641
        %v2643 = vrot.slane %v1938, %v2642
        %v2644 = vlaneseq
        %v2645 = vshrl.u32 %v2644, 7
        %v2646 = vsub.s32 0, %v2645
        %v2647 = vrot.slane %v1952, %v2646
        %v2648 = vlaneseq
        %v2649 = vshrl.u32 %v2648, 7
        %v2650 = vsub.s32 0, %v2649
        %v2651 = vrot.slane %v1954, %v2650
        %v2652 = vlaneseq
        %v2653 = vshrl.u32 %v2652, 7
        %v2654 = vsub.s32 0, %v2653
        %v2655 = vrot.slane %v1956, %v2654
        %v2656 = vlaneseq
        %v2657 = vshrl.u32 %v2656, 7
        %v2658 = vsub.s32 0, %v2657
        %v2659 = vrot.slane %v1980, %v2658
        %v2660 = vlaneseq
        %v2661 = vshrl.u32 %v2660, 7
        %v2662 = vsub.s32 0, %v2661
        %v2663 = vrot.slane %v1994, %v2662
        %v2664 = vlaneseq
        %v2665 = vshrl.u32 %v2664, 7
        %v2666 = vsub.s32 0, %v2665
        %v2667 = vrot.slane %v2002, %v2666
        %v2668 = vlaneseq
        %v2669 = vshrl.u32 %v2668, 7
        %v2670 = vsub.s32 0, %v2669
        %v2671 = vrot.slane %v2004, %v2670
        %v2672 = vlaneseq
        %v2673 = vshrl.u32 %v2672, 7
        %v2674 = vsub.s32 0, %v2673
        %v2675 = vrot.slane %v1987, %v2674
        %v2676 = vlaneseq
        %v2677 = vshrl.u32 %v2676, 7
        %v2678 = vsub.s32 0, %v2677
        %v2679 = vrot.slane %v2001, %v2678
        %v2680 = vlaneseq
        %v2681 = vshrl.u32 %v2680, 7
        %v2682 = vsub.s32 0, %v2681
        %v2683 = vrot.slane %v2003, %v2682
        %v2684 = vlaneseq
        %v2685 = vshrl.u32 %v2684, 7
        %v2686 = vsub.s32 0, %v2685
        %v2687 = vrot.slane %v2005, %v2686
        %v2688 = vlaneseq
        %v2689 = vshrl.u32 %v2688, 7
        %v2690 = vsub.s32 0, %v2689
        %v2691 = vrot.slane %v2029, %v2690
        %v2692 = vlaneseq
        %v2693 = vshrl.u32 %v2692, 7
        %v2694 = vsub.s32 0, %v2693
        %v2695 = vrot.slane %v2043, %v2694
        %v2696 = vlaneseq
        %v2697 = vshrl.u32 %v2696, 7
        %v2698 = vsub.s32 0, %v2697
        %v2699 = vrot.slane %v2051, %v2698
        %v2700 = vlaneseq
        %v2701 = vshrl.u32 %v2700, 7
        %v2702 = vsub.s32 0, %v2701
        %v2703 = vrot.slane %v2053, %v2702
        %v2704 = vlaneseq
        %v2705 = vshrl.u32 %v2704, 7
        %v2706 = vsub.s32 0, %v2705
        %v2707 = vrot.slane %v2036, %v2706
        %v2708 = vlaneseq
        %v2709 = vshrl.u32 %v2708, 7
        %v2710 = vsub.s32 0, %v2709
        %v2711 = vrot.slane %v2050, %v2710
        %v2712 = vlaneseq
        %v2713 = vshrl.u32 %v2712, 7
        %v2714 = vsub.s32 0, %v2713
        %v2715 = vrot.slane %v2052, %v2714
        %v2716 = vlaneseq
        %v2717 = vshrl.u32 %v2716, 7
        %v2718 = vsub.s32 0, %v2717
        %v2719 = vrot.slane %v2054, %v2718
        %v2720 = vlaneseq
        %v2721 = vshrl.u32 %v2720, 7
        %v2722 = vsub.s32 0, %v2721
        %v2723 = vrot.slane %v2078, %v2722
        %v2724 = vlaneseq
        %v2725 = vshrl.u32 %v2724, 7
        %v2726 = vsub.s32 0, %v2725
        %v2727 = vrot.slane %v2092, %v2726
        %v2728 = vlaneseq
        %v2729 = vshrl.u32 %v2728, 7
        %v2730 = vsub.s32 0, %v2729
        %v2731 = vrot.slane %v2100, %v2730
        %v2732 = vlaneseq
        %v2733 = vshrl.u32 %v2732, 7
        %v2734 = vsub.s32 0, %v2733
        %v2735 = vrot.slane %v2102, %v2734
        %v2736 = vlaneseq
        %v2737 = vshrl.u32 %v2736, 7
        %v2738 = vsub.s32 0, %v2737
        %v2739 = vrot.slane %v2085, %v2738
        %v2740 = vlaneseq
        %v2741 = vshrl.u32 %v2740, 7
        %v2742 = vsub.s32 0, %v2741
        %v2743 = vrot.slane %v2099, %v2742
        %v2744 = vlaneseq
        %v2745 = vshrl.u32 %v2744, 7
        %v2746 = vsub.s32 0, %v2745
        %v2747 = vrot.slane %v2101, %v2746
        %v2748 = vlaneseq
        %v2749 = vshrl.u32 %v2748, 7
        %v2750 = vsub.s32 0, %v2749
        %v2751 = vrot.slane %v2103, %v2750
        %v2752 = vlaneseq
        %v2753 = vshrl.u32 %v2752, 7
        %v2754 = vsub.s32 0, %v2753
        %v2755 = vrot.slane %v2127, %v2754
        %v2756 = vlaneseq
        %v2757 = vshrl.u32 %v2756, 7
        %v2758 = vsub.s32 0, %v2757
        %v2759 = vrot.slane %v2141, %v2758
        %v2760 = vlaneseq
        %v2761 = vshrl.u32 %v2760, 7
        %v2762 = vsub.s32 0, %v2761
        %v2763 = vrot.slane %v2149, %v2762
        %v2764 = vlaneseq
        %v2765 = vshrl.u32 %v2764, 7
        %v2766 = vsub.s32 0, %v2765
        %v2767 = vrot.slane %v2151, %v2766
        %v2768 = vlaneseq
        %v2769 = vshrl.u32 %v2768, 7
        %v2770 = vsub.s32 0, %v2769
        %v2771 = vrot.slane %v2134, %v2770
        %v2772 = vlaneseq
        %v2773 = vshrl.u32 %v2772, 7
        %v2774 = vsub.s32 0, %v2773
        %v2775 = vrot.slane %v2148, %v2774
        %v2776 = vlaneseq
        %v2777 = vshrl.u32 %v2776, 7
        %v2778 = vsub.s32 0, %v2777
        %v2779 = vrot.slane %v2150, %v2778
        %v2780 = vlaneseq
        %v2781 = vshrl.u32 %v2780, 7
        %v2782 = vsub.s32 0, %v2781
        %v2783 = vrot.slane %v2152, %v2782
        %v2784 = vlaneseq
        %v2785 = vshrl.u32 %v2784, 7
        %v2786 = vsub.s32 0, %v2785
        %v2787 = vrot.slane %v2176, %v2786
        %v2788 = vlaneseq
        %v2789 = vshrl.u32 %v2788, 7
        %v2790 = vsub.s32 0, %v2789
        %v2791 = vrot.slane %v2190, %v2790
        %v2792 = vlaneseq
        %v2793 = vshrl.u32 %v2792, 7
        %v2794 = vsub.s32 0, %v2793
        %v2795 = vrot.slane %v2198, %v2794
        %v2796 = vlaneseq
        %v2797 = vshrl.u32 %v2796, 7
        %v2798 = vsub.s32 0, %v2797
        %v2799 = vrot.slane %v2200, %v2798
        %v2800 = vlaneseq
        %v2801 = vshrl.u32 %v2800, 7
        %v2802 = vsub.s32 0, %v2801
        %v2803 = vrot.slane %v2183, %v2802
        %v2804 = vlaneseq
        %v2805 = vshrl.u32 %v2804, 7
        %v2806 = vsub.s32 0, %v2805
        %v2807 = vrot.slane %v2197, %v2806
        %v2808 = vlaneseq
        %v2809 = vshrl.u32 %v2808, 7
        %v2810 = vsub.s32 0, %v2809
        %v2811 = vrot.slane %v2199, %v2810
        %v2812 = vlaneseq
        %v2813 = vshrl.u32 %v2812, 7
        %v2814 = vsub.s32 0, %v2813
        %v2815 = vrot.slane %v2201, %v2814
        %v2816 = vlaneseq
        %v2817 = vshrl.u32 %v2816, 7
        %v2818 = vsub.s32 0, %v2817
        %v2819 = vrot.slane %v2225, %v2818
        %v2820 = vlaneseq
        %v2821 = vshrl.u32 %v2820, 7
        %v2822 = vsub.s32 0, %v2821
        %v2823 = vrot.slane %v2239, %v2822
        %v2824 = vlaneseq
        %v2825 = vshrl.u32 %v2824, 7
        %v2826 = vsub.s32 0, %v2825
        %v2827 = vrot.slane %v2247, %v2826
        %v2828 = vlaneseq
        %v2829 = vshrl.u32 %v2828, 7
        %v2830 = vsub.s32 0, %v2829
        %v2831 = vrot.slane %v2249, %v2830
        %v2832 = vlaneseq
        %v2833 = vshrl.u32 %v2832, 7
        %v2834 = vsub.s32 0, %v2833
        %v2835 = vrot.slane %v2232, %v2834
        %v2836 = vlaneseq
        %v2837 = vshrl.u32 %v2836, 7
        %v2838 = vsub.s32 0, %v2837
        %v2839 = vrot.slane %v2246, %v2838
        %v2840 = vlaneseq
        %v2841 = vshrl.u32 %v2840, 7
        %v2842 = vsub.s32 0, %v2841
        %v2843 = vrot.slane %v2248, %v2842
        %v2844 = vlaneseq
        %v2845 = vshrl.u32 %v2844, 7
        %v2846 = vsub.s32 0, %v2845
        %v2847 = vrot.slane %v2250, %v2846
        %v2848 = vlaneseq
        %v2849 = vshrl.u32 %v2848, 7
        %v2850 = vsub.s32 0, %v2849
        %v2851 = vrot.slane %v2274, %v2850
        %v2852 = vlaneseq
        %v2853 = vshrl.u32 %v2852, 7
        %v2854 = vsub.s32 0, %v2853
        %v2855 = vrot.slane %v2288, %v2854
        %v2856 = vlaneseq
        %v2857 = vshrl.u32 %v2856, 7
        %v2858 = vsub.s32 0, %v2857
        %v2859 = vrot.slane %v2296, %v2858
        %v2860 = vlaneseq
        %v2861 = vshrl.u32 %v2860, 7
        %v2862 = vsub.s32 0, %v2861
        %v2863 = vrot.slane %v2298, %v2862
        %v2864 = vlaneseq
        %v2865 = vshrl.u32 %v2864, 7
        %v2866 = vsub.s32 0, %v2865
        %v2867 = vrot.slane %v2281, %v2866
        %v2868 = vlaneseq
        %v2869 = vshrl.u32 %v2868, 7
        %v2870 = vsub.s32 0, %v2869
        %v2871 = vrot.slane %v2295, %v2870
        %v2872 = vlaneseq
        %v2873 = vshrl.u32 %v2872, 7
        %v2874 = vsub.s32 0, %v2873
        %v2875 = vrot.slane %v2297, %v2874
        %v2876 = vlaneseq
        %v2877 = vshrl.u32 %v2876, 7
        %v2878 = vsub.s32 0, %v2877
        %v2879 = vrot.slane %v2299, %v2878
        %v2880 = vlaneseq
        %v2881 = vshrl.u32 %v2880, 7
        %v2882 = vsub.s32 0, %v2881
        %v2883 = vrot.slane %v2323, %v2882
        %v2884 = vlaneseq
        %v2885 = vshrl.u32 %v2884, 7
        %v2886 = vsub.s32 0, %v2885
        %v2887 = vrot.slane %v2337, %v2886
        %v2888 = vlaneseq
        %v2889 = vshrl.u32 %v2888, 7
        %v2890 = vsub.s32 0, %v2889
        %v2891 = vrot.slane %v2345, %v2890
        %v2892 = vlaneseq
        %v2893 = vshrl.u32 %v2892, 7
        %v2894 = vsub.s32 0, %v2893
        %v2895 = vrot.slane %v2347, %v2894
        %v2896 = vlaneseq
        %v2897 = vshrl.u32 %v2896, 7
        %v2898 = vsub.s32 0, %v2897
        %v2899 = vrot.slane %v2330, %v2898
        %v2900 = vlaneseq
        %v2901 = vshrl.u32 %v2900, 7
        %v2902 = vsub.s32 0, %v2901
        %v2903 = vrot.slane %v2344, %v2902
        %v2904 = vlaneseq
        %v2905 = vshrl.u32 %v2904, 7
        %v2906 = vsub.s32 0, %v2905
        %v2907 = vrot.slane %v2346, %v2906
        %v2908 = vlaneseq
        %v2909 = vshrl.u32 %v2908, 7
        %v2910 = vsub.s32 0, %v2909
        %v2911 = vrot.slane %v2348, %v2910
        %v2912 = vlaneseq
        %v2913 = vshrl.u32 %v2912, 7
        %v2914 = vsub.s32 0, %v2913
        %v2915 = vrot.slane %v2372, %v2914
        %v2916 = vlaneseq
        %v2917 = vshrl.u32 %v2916, 7
        %v2918 = vsub.s32 0, %v2917
        %v2919 = vrot.slane %v2386, %v2918
        %v2920 = vlaneseq
        %v2921 = vshrl.u32 %v2920, 7
        %v2922 = vsub.s32 0, %v2921
        %v2923 = vrot.slane %v2394, %v2922
        %v2924 = vlaneseq
        %v2925 = vshrl.u32 %v2924, 7
        %v2926 = vsub.s32 0, %v2925
        %v2927 = vrot.slane %v2396, %v2926
        %v2928 = vlaneseq
        %v2929 = vshrl.u32 %v2928, 7
        %v2930 = vsub.s32 0, %v2929
        %v2931 = vrot.slane %v2379, %v2930
        %v2932 = vlaneseq
        %v2933 = vshrl.u32 %v2932, 7
        %v2934 = vsub.s32 0, %v2933
        %v2935 = vrot.slane %v2393, %v2934
        %v2936 = vlaneseq
        %v2937 = vshrl.u32 %v2936, 7
        %v2938 = vsub.s32 0, %v2937
        %v2939 = vrot.slane %v2395, %v2938
        %v2940 = vlaneseq
        %v2941 = vshrl.u32 %v2940, 7
        %v2942 = vsub.s32 0, %v2941
        %v2943 = vrot.slane %v2397, %v2942
        %v2944 = vlaneseq
        %v2945 = vshrl.u32 %v2944, 7
        %v2946 = vsub.s32 0, %v2945
        %v2947 = vrot.slane %v2421, %v2946
        %v2948 = vlaneseq
        %v2949 = vshrl.u32 %v2948, 7
        %v2950 = vsub.s32 0, %v2949
        %v2951 = vrot.slane %v2435, %v2950
        %v2952 = vlaneseq
        %v2953 = vshrl.u32 %v2952, 7
        %v2954 = vsub.s32 0, %v2953
        %v2955 = vrot.slane %v2443, %v2954
        %v2956 = vlaneseq
        %v2957 = vshrl.u32 %v2956, 7
        %v2958 = vsub.s32 0, %v2957
        %v2959 = vrot.slane %v2445, %v2958
        %v2960 = vlaneseq
        %v2961 = vshrl.u32 %v2960, 7
        %v2962 = vsub.s32 0, %v2961
        %v2963 = vrot.slane %v2428, %v2962
        %v2964 = vlaneseq
        %v2965 = vshrl.u32 %v2964, 7
        %v2966 = vsub.s32 0, %v2965
        %v2967 = vrot.slane %v2442, %v2966
        %v2968 = vlaneseq
        %v2969 = vshrl.u32 %v2968, 7
        %v2970 = vsub.s32 0, %v2969
        %v2971 = vrot.slane %v2444, %v2970
        %v2972 = vlaneseq
        %v2973 = vshrl.u32 %v2972, 7
        %v2974 = vsub.s32 0, %v2973
        %v2975 = vrot.slane %v2446, %v2974
        %v2976 = vlaneseq
        %v2977 = vshrl.u32 %v2976, 7
        %v2978 = vsub.s32 0, %v2977
        %v2979 = vrot.slane %v2470, %v2978
        %v2980 = vlaneseq
        %v2981 = vshrl.u32 %v2980, 7
        %v2982 = vsub.s32 0, %v2981
        %v2983 = vrot.slane %v2484, %v2982
        %v2984 = vlaneseq
        %v2985 = vshrl.u32 %v2984, 7
        %v2986 = vsub.s32 0, %v2985
        %v2987 = vrot.slane %v2492, %v2986
        %v2988 = vlaneseq
        %v2989 = vshrl.u32 %v2988, 7
        %v2990 = vsub.s32 0, %v2989
        %v2991 = vrot.slane %v2494, %v2990
        %v2992 = vlaneseq
        %v2993 = vshrl.u32 %v2992, 7
        %v2994 = vsub.s32 0, %v2993
        %v2995 = vrot.slane %v2477, %v2994
        %v2996 = vlaneseq
        %v2997 = vshrl.u32 %v2996, 7
        %v2998 = vsub.s32 0, %v2997
        %v2999 = vrot.slane %v2491, %v2998
        %v3000 = vlaneseq
        %v3001 = vshrl.u32 %v3000, 7
        %v3002 = vsub.s32 0, %v3001
        %v3003 = vrot.slane %v2493, %v3002
        %v3004 = vlaneseq
        %v3005 = vshrl.u32 %v3004, 7
        %v3006 = vsub.s32 0, %v3005
        %v3007 = vrot.slane %v2495, %v3006
        %v3136 = vmul.f32 %v2499, %v1695
        %v3137 = vmul.f32 %v2503, %v1695
        %v3138 = vmul.f32 %v2507, %v1695
        %v3139 = vmul.f32 %v2511, %v1695
        %v3140 = vmul.f32 %v2515, %v1695
        %v3141 = vmul.f32 %v2519, %v1695
        %v3142 = vmul.f32 %v2523, %v1695
        %v3143 = vmul.f32 %v2527, %v1695
        %v3144 = vmul.f32 %v2531, %v1695
        %v3145 = vmul.f32 %v2535, %v1695
        %v3146 = vmul.f32 %v2539, %v1695
        %v3147 = vmul.f32 %v2543, %v1695
        %v3148 = vmul.f32 %v2547, %v1695
        %v3149 = vmul.f32 %v2551, %v1695
        %v3150 = vmul.f32 %v2555, %v1695
        %v3151 = vmul.f32 %v2559, %v1695
        %v3152 = vmul.f32 %v2563, %v1695
        %v3153 = vmul.f32 %v2567, %v1695
        %v3154 = vmul.f32 %v2571, %v1695
        %v3155 = vmul.f32 %v2575, %v1695
        %v3156 = vmul.f32 %v2579, %v1695
        %v3157 = vmul.f32 %v2583, %v1695
        %v3158 = vmul.f32 %v2587, %v1695
        %v3159 = vmul.f32 %v2591, %v1695
        %v3160 = vmul.f32 %v2595, %v1695
        %v3161 = vmul.f32 %v2599, %v1695
        %v3162 = vmul.f32 %v2603, %v1695
        %v3163 = vmul.f32 %v2607, %v1695
        %v3164 = vmul.f32 %v2611, %v1695
        %v3165 = vmul.f32 %v2615, %v1695
        %v3166 = vmul.f32 %v2619, %v1695
        %v3167 = vmul.f32 %v2623, %v1695
        %v3168 = vmul.f32 %v2627, %v1695
        %v3169 = vmul.f32 %v2631, %v1695
        %v3170 = vmul.f32 %v2635, %v1695
        %v3171 = vmul.f32 %v2639, %v1695
        %v3172 = vmul.f32 %v2643, %v1695
        %v3173 = vmul.f32 %v2647, %v1695
        %v3174 = vmul.f32 %v2651, %v1695
        %v3175 = vmul.f32 %v2655, %v1695
        %v3176 = vmul.f32 %v2659, %v1695
        %v3177 = vmul.f32 %v2663, %v1695
        %v3178 = vmul.f32 %v2667, %v1695
        %v3179 = vmul.f32 %v2671, %v1695
        %v3180 = vmul.f32 %v2675, %v1695
        %v3181 = vmul.f32 %v2679, %v1695
        %v3182 = vmul.f32 %v2683, %v1695
        %v3183 = vmul.f32 %v2687, %v1695
        %v3184 = vmul.f32 %v2691, %v1695
        %v3185 = vmul.f32 %v2695, %v1695
        %v3186 = vmul.f32 %v2699, %v1695
        %v3187 = vmul.f32 %v2703, %v1695
        %v3188 = vmul.f32 %v2707, %v1695
        %v3189 = vmul.f32 %v2711, %v1695
        %v3190 = vmul.f32 %v2715, %v1695
        %v3191 = vmul.f32 %v2719, %v1695
        %v3192 = vmul.f32 %v2723, %v1695
        %v3193 = vmul.f32 %v2727, %v1695
        %v3194 = vmul.f32 %v2731, %v1695
        %v3195 = vmul.f32 %v2735, %v1695
        %v3196 = vmul.f32 %v2739, %v1695
        %v3197 = vmul.f32 %v2743, %v1695
        %v3198 = vmul.f32 %v2747, %v1695
        %v3199 = vmul.f32 %v2751, %v1695
        %v3200 = vmul.f32 %v2755, %v1695
        %v3201 = vmul.f32 %v2759, %v1695
        %v3202 = vmul.f32 %v2763, %v1695
        %v3203 = vmul.f32 %v2767, %v1695
        %v3204 = vmul.f32 %v2771, %v1695
        %v3205 = vmul.f32 %v2775, %v1695
        %v3206 = vmul.f32 %v2779, %v1695
        %v3207 = vmul.f32 %v2783, %v1695
        %v3208 = vmul.f32 %v2787, %v1695
        %v3209 = vmul.f32 %v2791, %v1695
        %v3210 = vmul.f32 %v2795, %v1695
        %v3211 = vmul.f32 %v2799, %v1695
        %v3212 = vmul.f32 %v2803, %v1695
        %v3213 = vmul.f32 %v2807, %v1695
        %v3214 = vmul.f32 %v2811, %v1695
        %v3215 = vmul.f32 %v2815, %v1695
        %v3216 = vmul.f32 %v2819, %v1695
        %v3217 = vmul.f32 %v2823, %v1695
        %v3218 = vmul.f32 %v2827, %v1695
        %v3219 = vmul.f32 %v2831, %v1695
        %v3220 = vmul.f32 %v2835, %v1695
        %v3221 = vmul.f32 %v2839, %v1695
        %v3222 = vmul.f32 %v2843, %v1695
        %v3223 = vmul.f32 %v2847, %v1695
        %v3224 = vmul.f32 %v2851, %v1695
        %v3225 = vmul.f32 %v2855, %v1695
        %v3226 = vmul.f32 %v2859, %v1695
        %v3227 = vmul.f32 %v2863, %v1695
        %v3228 = vmul.f32 %v2867, %v1695
        %v3229 = vmul.f32 %v2871, %v1695
        %v3230 = vmul.f32 %v2875, %v1695
        %v3231 = vmul.f32 %v2879, %v1695
        %v3232 = vmul.f32 %v2883, %v1695
        %v3233 = vmul.f32 %v2887, %v1695
        %v3234 = vmul.f32 %v2891, %v1695
        %v3235 = vmul.f32 %v2895, %v1695
        %v3236 = vmul.f32 %v2899, %v1695
        %v3237 = vmul.f32 %v2903, %v1695
        %v3238 = vmul.f32 %v2907, %v1695
        %v3239 = vmul.f32 %v2911, %v1695
        %v3240 = vmul.f32 %v2915, %v1695
        %v3241 = vmul.f32 %v2919, %v1695
        %v3242 = vmul.f32 %v2923, %v1695
        %v3243 = vmul.f32 %v2927, %v1695
        %v3244 = vmul.f32 %v2931, %v1695
        %v3245 = vmul.f32 %v2935, %v1695
        %v3246 = vmul.f32 %v2939, %v1695
        %v3247 = vmul.f32 %v2943, %v1695
        %v3248 = vmul.f32 %v2947, %v1695
        %v3249 = vmul.f32 %v2951, %v1695
        %v3250 = vmul.f32 %v2955, %v1695
        %v3251 = vmul.f32 %v2959, %v1695
        %v3252 = vmul.f32 %v2963, %v1695
        %v3253 = vmul.f32 %v2967, %v1695
        %v3254 = vmul.f32 %v2971, %v1695
        %v3255 = vmul.f32 %v2975, %v1695
        %v3256 = vmul.f32 %v2979, %v1695
        %v3257 = vmul.f32 %v2983, %v1695
        %v3258 = vmul.f32 %v2987, %v1695
        %v3259 = vmul.f32 %v2991, %v1695
        %v3260 = vmul.f32 %v2995, %v1695
        %v3261 = vmul.f32 %v2999, %v1695
        %v3262 = vmul.f32 %v3003, %v1695
        %v3263 = vmul.f32 %v3007, %v1695
        %v3264 = vmul.f32 %v3136, 1.442695
        %v3265 = vpow.pop %v3264
        %v3266 = vmul.f32 %v3137, 1.442695
        %v3267 = vpow.pop %v3266
        %v3268 = vmul.f32 %v3138, 1.442695
        %v3269 = vpow.pop %v3268
        %v3270 = vmul.f32 %v3139, 1.442695
        %v3271 = vpow.pop %v3270
        %v3272 = vmul.f32 %v3140, 1.442695
        %v3273 = vpow.pop %v3272
        %v3274 = vmul.f32 %v3141, 1.442695
        %v3275 = vpow.pop %v3274
        %v3276 = vmul.f32 %v3142, 1.442695
        %v3277 = vpow.pop %v3276
        %v3278 = vmul.f32 %v3143, 1.442695
        %v3279 = vpow.pop %v3278
        %v3280 = vmul.f32 %v3144, 1.442695
        %v3281 = vpow.pop %v3280
        %v3282 = vmul.f32 %v3145, 1.442695
        %v3283 = vpow.pop %v3282
        %v3284 = vmul.f32 %v3146, 1.442695
        %v3285 = vpow.pop %v3284
        %v3286 = vmul.f32 %v3147, 1.442695
        %v3287 = vpow.pop %v3286
        %v3288 = vmul.f32 %v3148, 1.442695
        %v3289 = vpow.pop %v3288
        %v3290 = vmul.f32 %v3149, 1.442695
        %v3291 = vpow.pop %v3290
        %v3292 = vmul.f32 %v3150, 1.442695
        %v3293 = vpow.pop %v3292
        %v3294 = vmul.f32 %v3151, 1.442695
        %v3295 = vpow.pop %v3294
        %v3296 = vmul.f32 %v3152, 1.442695
        %v3297 = vpow.pop %v3296
        %v3298 = vmul.f32 %v3153, 1.442695
        %v3299 = vpow.pop %v3298
        %v3300 = vmul.f32 %v3154, 1.442695
        %v3301 = vpow.pop %v3300
        %v3302 = vmul.f32 %v3155, 1.442695
        %v3303 = vpow.pop %v3302
        %v3304 = vmul.f32 %v3156, 1.442695
        %v3305 = vpow.pop %v3304
        %v3306 = vmul.f32 %v3157, 1.442695
        %v3307 = vpow.pop %v3306
        %v3308 = vmul.f32 %v3158, 1.442695
        %v3309 = vpow.pop %v3308
        %v3310 = vmul.f32 %v3159, 1.442695
        %v3311 = vpow.pop %v3310
        %v3312 = vmul.f32 %v3160, 1.442695
        %v3313 = vpow.pop %v3312
        %v3314 = vmul.f32 %v3161, 1.442695
        %v3315 = vpow.pop %v3314
        %v3316 = vmul.f32 %v3162, 1.442695
        %v3317 = vpow.pop %v3316
        %v3318 = vmul.f32 %v3163, 1.442695
        %v3319 = vpow.pop %v3318
        %v3320 = vmul.f32 %v3164, 1.442695
        %v3321 = vpow.pop %v3320
        %v3322 = vmul.f32 %v3165, 1.442695
        %v3323 = vpow.pop %v3322
        %v3324 = vmul.f32 %v3166, 1.442695
        %v3325 = vpow.pop %v3324
        %v3326 = vmul.f32 %v3167, 1.442695
        %v3327 = vpow.pop %v3326
        %v3328 = vmul.f32 %v3168, 1.442695
        %v3329 = vpow.pop %v3328
        %v3330 = vmul.f32 %v3169, 1.442695
        %v3331 = vpow.pop %v3330
        %v3332 = vmul.f32 %v3170, 1.442695
        %v3333 = vpow.pop %v3332
        %v3334 = vmul.f32 %v3171, 1.442695
        %v3335 = vpow.pop %v3334
        %v3336 = vmul.f32 %v3172, 1.442695
        %v3337 = vpow.pop %v3336
        %v3338 = vmul.f32 %v3173, 1.442695
        %v3339 = vpow.pop %v3338
        %v3340 = vmul.f32 %v3174, 1.442695
        %v3341 = vpow.pop %v3340
        %v3342 = vmul.f32 %v3175, 1.442695
        %v3343 = vpow.pop %v3342
        %v3344 = vmul.f32 %v3176, 1.442695
        %v3345 = vpow.pop %v3344
        %v3346 = vmul.f32 %v3177, 1.442695
        %v3347 = vpow.pop %v3346
        %v3348 = vmul.f32 %v3178, 1.442695
        %v3349 = vpow.pop %v3348
        %v3350 = vmul.f32 %v3179, 1.442695
        %v3351 = vpow.pop %v3350
        %v3352 = vmul.f32 %v3180, 1.442695
        %v3353 = vpow.pop %v3352
        %v3354 = vmul.f32 %v3181, 1.442695
        %v3355 = vpow.pop %v3354
        %v3356 = vmul.f32 %v3182, 1.442695
        %v3357 = vpow.pop %v3356
        %v3358 = vmul.f32 %v3183, 1.442695
        %v3359 = vpow.pop %v3358
        %v3360 = vmul.f32 %v3184, 1.442695
        %v3361 = vpow.pop %v3360
        %v3362 = vmul.f32 %v3185, 1.442695
        %v3363 = vpow.pop %v3362
        %v3364 = vmul.f32 %v3186, 1.442695
        %v3365 = vpow.pop %v3364
        %v3366 = vmul.f32 %v3187, 1.442695
        %v3367 = vpow.pop %v3366
        %v3368 = vmul.f32 %v3188, 1.442695
        %v3369 = vpow.pop %v3368
        %v3370 = vmul.f32 %v3189, 1.442695
        %v3371 = vpow.pop %v3370
        %v3372 = vmul.f32 %v3190, 1.442695
        %v3373 = vpow.pop %v3372
        %v3374 = vmul.f32 %v3191, 1.442695
        %v3375 = vpow.pop %v3374
        %v3376 = vmul.f32 %v3192, 1.442695
        %v3377 = vpow.pop %v3376
        %v3378 = vmul.f32 %v3193, 1.442695
        %v3379 = vpow.pop %v3378
        %v3380 = vmul.f32 %v3194, 1.442695
        %v3381 = vpow.pop %v3380
        %v3382 = vmul.f32 %v3195, 1.442695
        %v3383 = vpow.pop %v3382
        %v3384 = vmul.f32 %v3196, 1.442695
        %v3385 = vpow.pop %v3384
        %v3386 = vmul.f32 %v3197, 1.442695
        %v3387 = vpow.pop %v3386
        %v3388 = vmul.f32 %v3198, 1.442695
        %v3389 = vpow.pop %v3388
        %v3390 = vmul.f32 %v3199, 1.442695
        %v3391 = vpow.pop %v3390
        %v3392 = vmul.f32 %v3200, 1.442695
        %v3393 = vpow.pop %v3392
        %v3394 = vmul.f32 %v3201, 1.442695
        %v3395 = vpow.pop %v3394
        %v3396 = vmul.f32 %v3202, 1.442695
        %v3397 = vpow.pop %v3396
        %v3398 = vmul.f32 %v3203, 1.442695
        %v3399 = vpow.pop %v3398
        %v3400 = vmul.f32 %v3204, 1.442695
        %v3401 = vpow.pop %v3400
        %v3402 = vmul.f32 %v3205, 1.442695
        %v3403 = vpow.pop %v3402
        %v3404 = vmul.f32 %v3206, 1.442695
        %v3405 = vpow.pop %v3404
        %v3406 = vmul.f32 %v3207, 1.442695
        %v3407 = vpow.pop %v3406
        %v3408 = vmul.f32 %v3208, 1.442695
        %v3409 = vpow.pop %v3408
        %v3410 = vmul.f32 %v3209, 1.442695
        %v3411 = vpow.pop %v3410
        %v3412 = vmul.f32 %v3210, 1.442695
        %v3413 = vpow.pop %v3412
        %v3414 = vmul.f32 %v3211, 1.442695
        %v3415 = vpow.pop %v3414
        %v3416 = vmul.f32 %v3212, 1.442695
        %v3417 = vpow.pop %v3416
        %v3418 = vmul.f32 %v3213, 1.442695
        %v3419 = vpow.pop %v3418
        %v3420 = vmul.f32 %v3214, 1.442695
        %v3421 = vpow.pop %v3420
        %v3422 = vmul.f32 %v3215, 1.442695
        %v3423 = vpow.pop %v3422
        %v3424 = vmul.f32 %v3216, 1.442695
        %v3425 = vpow.pop %v3424
        %v3426 = vmul.f32 %v3217, 1.442695
        %v3427 = vpow.pop %v3426
        %v3428 = vmul.f32 %v3218, 1.442695
        %v3429 = vpow.pop %v3428
        %v3430 = vmul.f32 %v3219, 1.442695
        %v3431 = vpow.pop %v3430
        %v3432 = vmul.f32 %v3220, 1.442695
        %v3433 = vpow.pop %v3432
        %v3434 = vmul.f32 %v3221, 1.442695
        %v3435 = vpow.pop %v3434
        %v3436 = vmul.f32 %v3222, 1.442695
        %v3437 = vpow.pop %v3436
        %v3438 = vmul.f32 %v3223, 1.442695
        %v3439 = vpow.pop %v3438
        %v3440 = vmul.f32 %v3224, 1.442695
        %v3441 = vpow.pop %v3440
        %v3442 = vmul.f32 %v3225, 1.442695
        %v3443 = vpow.pop %v3442
        %v3444 = vmul.f32 %v3226, 1.442695
        %v3445 = vpow.pop %v3444
        %v3446 = vmul.f32 %v3227, 1.442695
        %v3447 = vpow.pop %v3446
        %v3448 = vmul.f32 %v3228, 1.442695
        %v3449 = vpow.pop %v3448
        %v3450 = vmul.f32 %v3229, 1.442695
        %v3451 = vpow.pop %v3450
        %v3452 = vmul.f32 %v3230, 1.442695
        %v3453 = vpow.pop %v3452
        %v3454 = vmul.f32 %v3231, 1.442695
        %v3455 = vpow.pop %v3454
        %v3456 = vmul.f32 %v3232, 1.442695
        %v3457 = vpow.pop %v3456
        %v3458 = vmul.f32 %v3233, 1.442695
        %v3459 = vpow.pop %v3458
        %v3460 = vmul.f32 %v3234, 1.442695
        %v3461 = vpow.pop %v3460
        %v3462 = vmul.f32 %v3235, 1.442695
        %v3463 = vpow.pop %v3462
        %v3464 = vmul.f32 %v3236, 1.442695
        %v3465 = vpow.pop %v3464
        %v3466 = vmul.f32 %v3237, 1.442695
        %v3467 = vpow.pop %v3466
        %v3468 = vmul.f32 %v3238, 1.442695
        %v3469 = vpow.pop %v3468
        %v3470 = vmul.f32 %v3239, 1.442695
        %v3471 = vpow.pop %v3470
        %v3472 = vmul.f32 %v3240, 1.442695
        %v3473 = vpow.pop %v3472
        %v3474 = vmul.f32 %v3241, 1.442695
        %v3475 = vpow.pop %v3474
        %v3476 = vmul.f32 %v3242, 1.442695
        %v3477 = vpow.pop %v3476
        %v3478 = vmul.f32 %v3243, 1.442695
        %v3479 = vpow.pop %v3478
        %v3480 = vmul.f32 %v3244, 1.442695
        %v3481 = vpow.pop %v3480
        %v3482 = vmul.f32 %v3245, 1.442695
        %v3483 = vpow.pop %v3482
        %v3484 = vmul.f32 %v3246, 1.442695
        %v3485 = vpow.pop %v3484
        %v3486 = vmul.f32 %v3247, 1.442695
        %v3487 = vpow.pop %v3486
        %v3488 = vmul.f32 %v3248, 1.442695
        %v3489 = vpow.pop %v3488
        %v3490 = vmul.f32 %v3249, 1.442695
        %v3491 = vpow.pop %v3490
        %v3492 = vmul.f32 %v3250, 1.442695
        %v3493 = vpow.pop %v3492
        %v3494 = vmul.f32 %v3251, 1.442695
        %v3495 = vpow.pop %v3494
        %v3496 = vmul.f32 %v3252, 1.442695
        %v3497 = vpow.pop %v3496
        %v3498 = vmul.f32 %v3253, 1.442695
        %v3499 = vpow.pop %v3498
        %v3500 = vmul.f32 %v3254, 1.442695
        %v3501 = vpow.pop %v3500
        %v3502 = vmul.f32 %v3255, 1.442695
        %v3503 = vpow.pop %v3502
        %v3504 = vmul.f32 %v3256, 1.442695
        %v3505 = vpow.pop %v3504
        %v3506 = vmul.f32 %v3257, 1.442695
        %v3507 = vpow.pop %v3506
        %v3508 = vmul.f32 %v3258, 1.442695
        %v3509 = vpow.pop %v3508
        %v3510 = vmul.f32 %v3259, 1.442695
        %v3511 = vpow.pop %v3510
        %v3512 = vmul.f32 %v3260, 1.442695
        %v3513 = vpow.pop %v3512
        %v3514 = vmul.f32 %v3261, 1.442695
        %v3515 = vpow.pop %v3514
        %v3516 = vmul.f32 %v3262, 1.442695
        %v3517 = vpow.pop %v3516
        %v3518 = vmul.f32 %v3263, 1.442695
        %v3519 = vpow.pop %v3518
        %3520 = vst.msk [vmem:[#allocation6] sm:$0xff] %vm739, %v3265
        %3521 = vst.msk [vmem:[#allocation6 + $0x8] sm:$0xff] %vm739, %v3267
        %3522 = vst.msk [vmem:[#allocation6 + $0x10] sm:$0xff] %vm739, %v3269
        %3523 = vst.msk [vmem:[#allocation6 + $0x18] sm:$0xff] %vm739, %v3271
        %3524 = vst.msk [vmem:[#allocation6 + $0x20] sm:$0xff] %vm739, %v3273
        %3525 = vst.msk [vmem:[#allocation6 + $0x28] sm:$0xff] %vm739, %v3275
        %3526 = vst.msk [vmem:[#allocation6 + $0x30] sm:$0xff] %vm739, %v3277
        %3527 = vst.msk [vmem:[#allocation6 + $0x38] sm:$0xff] %vm739, %v3279
        %3528 = vst.msk [vmem:[#allocation6 + $0x40] sm:$0xff] %vm739, %v3281
        %3529 = vst.msk [vmem:[#allocation6 + $0x48] sm:$0xff] %vm739, %v3283
        %3530 = vst.msk [vmem:[#allocation6 + $0x50] sm:$0xff] %vm739, %v3285
        %3531 = vst.msk [vmem:[#allocation6 + $0x58] sm:$0xff] %vm739, %v3287
        %3532 = vst.msk [vmem:[#allocation6 + $0x60] sm:$0xff] %vm739, %v3289
        %3533 = vst.msk [vmem:[#allocation6 + $0x68] sm:$0xff] %vm739, %v3291
        %3534 = vst.msk [vmem:[#allocation6 + $0x70] sm:$0xff] %vm739, %v3293
        %3535 = vst.msk [vmem:[#allocation6 + $0x78] sm:$0xff] %vm739, %v3295
        %3536 = vst.msk [vmem:[#allocation6 + $0x80] sm:$0xff] %vm739, %v3297
        %3537 = vst.msk [vmem:[#allocation6 + $0x88] sm:$0xff] %vm739, %v3299
        %3538 = vst.msk [vmem:[#allocation6 + $0x90] sm:$0xff] %vm739, %v3301
        %3539 = vst.msk [vmem:[#allocation6 + $0x98] sm:$0xff] %vm739, %v3303
        %3540 = vst.msk [vmem:[#allocation6 + $0xa0] sm:$0xff] %vm739, %v3305
        %3541 = vst.msk [vmem:[#allocation6 + $0xa8] sm:$0xff] %vm739, %v3307
        %3542 = vst.msk [vmem:[#allocation6 + $0xb0] sm:$0xff] %vm739, %v3309
        %3543 = vst.msk [vmem:[#allocation6 + $0xb8] sm:$0xff] %vm739, %v3311
        %3544 = vst.msk [vmem:[#allocation6 + $0xc0] sm:$0xff] %vm739, %v3313
        %3545 = vst.msk [vmem:[#allocation6 + $0xc8] sm:$0xff] %vm739, %v3315
        %3546 = vst.msk [vmem:[#allocation6 + $0xd0] sm:$0xff] %vm739, %v3317
        %3547 = vst.msk [vmem:[#allocation6 + $0xd8] sm:$0xff] %vm739, %v3319
        %3548 = vst.msk [vmem:[#allocation6 + $0xe0] sm:$0xff] %vm739, %v3321
        %3549 = vst.msk [vmem:[#allocation6 + $0xe8] sm:$0xff] %vm739, %v3323
        %3550 = vst.msk [vmem:[#allocation6 + $0xf0] sm:$0xff] %vm739, %v3325
        %3551 = vst.msk [vmem:[#allocation6 + $0xf8] sm:$0xff] %vm739, %v3327
        %3552 = vst.msk [vmem:[#allocation6 + $0x100] sm:$0xff] %vm739, %v3329
        %3553 = vst.msk [vmem:[#allocation6 + $0x108] sm:$0xff] %vm739, %v3331
        %3554 = vst.msk [vmem:[#allocation6 + $0x110] sm:$0xff] %vm739, %v3333
        %3555 = vst.msk [vmem:[#allocation6 + $0x118] sm:$0xff] %vm739, %v3335
        %3556 = vst.msk [vmem:[#allocation6 + $0x120] sm:$0xff] %vm739, %v3337
        %3557 = vst.msk [vmem:[#allocation6 + $0x128] sm:$0xff] %vm739, %v3339
        %3558 = vst.msk [vmem:[#allocation6 + $0x130] sm:$0xff] %vm739, %v3341
        %3559 = vst.msk [vmem:[#allocation6 + $0x138] sm:$0xff] %vm739, %v3343
        %3560 = vst.msk [vmem:[#allocation6 + $0x140] sm:$0xff] %vm739, %v3345
        %3561 = vst.msk [vmem:[#allocation6 + $0x148] sm:$0xff] %vm739, %v3347
        %3562 = vst.msk [vmem:[#allocation6 + $0x150] sm:$0xff] %vm739, %v3349
        %3563 = vst.msk [vmem:[#allocation6 + $0x158] sm:$0xff] %vm739, %v3351
        %3564 = vst.msk [vmem:[#allocation6 + $0x160] sm:$0xff] %vm739, %v3353
        %3565 = vst.msk [vmem:[#allocation6 + $0x168] sm:$0xff] %vm739, %v3355
        %3566 = vst.msk [vmem:[#allocation6 + $0x170] sm:$0xff] %vm739, %v3357
        %3567 = vst.msk [vmem:[#allocation6 + $0x178] sm:$0xff] %vm739, %v3359
        %3568 = vst.msk [vmem:[#allocation6 + $0x180] sm:$0xff] %vm739, %v3361
        %3569 = vst.msk [vmem:[#allocation6 + $0x188] sm:$0xff] %vm739, %v3363
        %3570 = vst.msk [vmem:[#allocation6 + $0x190] sm:$0xff] %vm739, %v3365
        %3571 = vst.msk [vmem:[#allocation6 + $0x198] sm:$0xff] %vm739, %v3367
        %3572 = vst.msk [vmem:[#allocation6 + $0x1a0] sm:$0xff] %vm739, %v3369
        %3573 = vst.msk [vmem:[#allocation6 + $0x1a8] sm:$0xff] %vm739, %v3371
        %3574 = vst.msk [vmem:[#allocation6 + $0x1b0] sm:$0xff] %vm739, %v3373
        %3575 = vst.msk [vmem:[#allocation6 + $0x1b8] sm:$0xff] %vm739, %v3375
        %3576 = vst.msk [vmem:[#allocation6 + $0x1c0] sm:$0xff] %vm739, %v3377
        %3577 = vst.msk [vmem:[#allocation6 + $0x1c8] sm:$0xff] %vm739, %v3379
        %3578 = vst.msk [vmem:[#allocation6 + $0x1d0] sm:$0xff] %vm739, %v3381
        %3579 = vst.msk [vmem:[#allocation6 + $0x1d8] sm:$0xff] %vm739, %v3383
        %3580 = vst.msk [vmem:[#allocation6 + $0x1e0] sm:$0xff] %vm739, %v3385
        %3581 = vst.msk [vmem:[#allocation6 + $0x1e8] sm:$0xff] %vm739, %v3387
        %3582 = vst.msk [vmem:[#allocation6 + $0x1f0] sm:$0xff] %vm739, %v3389
        %3583 = vst.msk [vmem:[#allocation6 + $0x1f8] sm:$0xff] %vm739, %v3391
        %3584 = vst.msk [vmem:[#allocation6 + $0x200] sm:$0xff] %vm739, %v3393
        %3585 = vst.msk [vmem:[#allocation6 + $0x208] sm:$0xff] %vm739, %v3395
        %3586 = vst.msk [vmem:[#allocation6 + $0x210] sm:$0xff] %vm739, %v3397
        %3587 = vst.msk [vmem:[#allocation6 + $0x218] sm:$0xff] %vm739, %v3399
        %3588 = vst.msk [vmem:[#allocation6 + $0x220] sm:$0xff] %vm739, %v3401
        %3589 = vst.msk [vmem:[#allocation6 + $0x228] sm:$0xff] %vm739, %v3403
        %3590 = vst.msk [vmem:[#allocation6 + $0x230] sm:$0xff] %vm739, %v3405
        %3591 = vst.msk [vmem:[#allocation6 + $0x238] sm:$0xff] %vm739, %v3407
        %3592 = vst.msk [vmem:[#allocation6 + $0x240] sm:$0xff] %vm739, %v3409
        %3593 = vst.msk [vmem:[#allocation6 + $0x248] sm:$0xff] %vm739, %v3411
        %3594 = vst.msk [vmem:[#allocation6 + $0x250] sm:$0xff] %vm739, %v3413
        %3595 = vst.msk [vmem:[#allocation6 + $0x258] sm:$0xff] %vm739, %v3415
        %3596 = vst.msk [vmem:[#allocation6 + $0x260] sm:$0xff] %vm739, %v3417
        %3597 = vst.msk [vmem:[#allocation6 + $0x268] sm:$0xff] %vm739, %v3419
        %3598 = vst.msk [vmem:[#allocation6 + $0x270] sm:$0xff] %vm739, %v3421
        %3599 = vst.msk [vmem:[#allocation6 + $0x278] sm:$0xff] %vm739, %v3423
        %3600 = vst.msk [vmem:[#allocation6 + $0x280] sm:$0xff] %vm739, %v3425
        %3601 = vst.msk [vmem:[#allocation6 + $0x288] sm:$0xff] %vm739, %v3427
        %3602 = vst.msk [vmem:[#allocation6 + $0x290] sm:$0xff] %vm739, %v3429
        %3603 = vst.msk [vmem:[#allocation6 + $0x298] sm:$0xff] %vm739, %v3431
        %3604 = vst.msk [vmem:[#allocation6 + $0x2a0] sm:$0xff] %vm739, %v3433
        %3605 = vst.msk [vmem:[#allocation6 + $0x2a8] sm:$0xff] %vm739, %v3435
        %3606 = vst.msk [vmem:[#allocation6 + $0x2b0] sm:$0xff] %vm739, %v3437
        %3607 = vst.msk [vmem:[#allocation6 + $0x2b8] sm:$0xff] %vm739, %v3439
        %3608 = vst.msk [vmem:[#allocation6 + $0x2c0] sm:$0xff] %vm739, %v3441
        %3609 = vst.msk [vmem:[#allocation6 + $0x2c8] sm:$0xff] %vm739, %v3443
        %3610 = vst.msk [vmem:[#allocation6 + $0x2d0] sm:$0xff] %vm739, %v3445
        %3611 = vst.msk [vmem:[#allocation6 + $0x2d8] sm:$0xff] %vm739, %v3447
        %3612 = vst.msk [vmem:[#allocation6 + $0x2e0] sm:$0xff] %vm739, %v3449
        %3613 = vst.msk [vmem:[#allocation6 + $0x2e8] sm:$0xff] %vm739, %v3451
        %3614 = vst.msk [vmem:[#allocation6 + $0x2f0] sm:$0xff] %vm739, %v3453
        %3615 = vst.msk [vmem:[#allocation6 + $0x2f8] sm:$0xff] %vm739, %v3455
        %3616 = vst.msk [vmem:[#allocation6 + $0x300] sm:$0xff] %vm739, %v3457
        %3617 = vst.msk [vmem:[#allocation6 + $0x308] sm:$0xff] %vm739, %v3459
        %3618 = vst.msk [vmem:[#allocation6 + $0x310] sm:$0xff] %vm739, %v3461
        %3619 = vst.msk [vmem:[#allocation6 + $0x318] sm:$0xff] %vm739, %v3463
        %3620 = vst.msk [vmem:[#allocation6 + $0x320] sm:$0xff] %vm739, %v3465
        %3621 = vst.msk [vmem:[#allocation6 + $0x328] sm:$0xff] %vm739, %v3467
        %3622 = vst.msk [vmem:[#allocation6 + $0x330] sm:$0xff] %vm739, %v3469
        %3623 = vst.msk [vmem:[#allocation6 + $0x338] sm:$0xff] %vm739, %v3471
        %3624 = vst.msk [vmem:[#allocation6 + $0x340] sm:$0xff] %vm739, %v3473
        %3625 = vst.msk [vmem:[#allocation6 + $0x348] sm:$0xff] %vm739, %v3475
        %3626 = vst.msk [vmem:[#allocation6 + $0x350] sm:$0xff] %vm739, %v3477
        %3627 = vst.msk [vmem:[#allocation6 + $0x358] sm:$0xff] %vm739, %v3479
        %3628 = vst.msk [vmem:[#allocation6 + $0x360] sm:$0xff] %vm739, %v3481
        %3629 = vst.msk [vmem:[#allocation6 + $0x368] sm:$0xff] %vm739, %v3483
        %3630 = vst.msk [vmem:[#allocation6 + $0x370] sm:$0xff] %vm739, %v3485
        %3631 = vst.msk [vmem:[#allocation6 + $0x378] sm:$0xff] %vm739, %v3487
        %3632 = vst.msk [vmem:[#allocation6 + $0x380] sm:$0xff] %vm739, %v3489
        %3633 = vst.msk [vmem:[#allocation6 + $0x388] sm:$0xff] %vm739, %v3491
        %3634 = vst.msk [vmem:[#allocation6 + $0x390] sm:$0xff] %vm739, %v3493
        %3635 = vst.msk [vmem:[#allocation6 + $0x398] sm:$0xff] %vm739, %v3495
        %3636 = vst.msk [vmem:[#allocation6 + $0x3a0] sm:$0xff] %vm739, %v3497
        %3637 = vst.msk [vmem:[#allocation6 + $0x3a8] sm:$0xff] %vm739, %v3499
        %3638 = vst.msk [vmem:[#allocation6 + $0x3b0] sm:$0xff] %vm739, %v3501
        %3639 = vst.msk [vmem:[#allocation6 + $0x3b8] sm:$0xff] %vm739, %v3503
        %3640 = vst.msk [vmem:[#allocation6 + $0x3c0] sm:$0xff] %vm739, %v3505
        %3641 = vst.msk [vmem:[#allocation6 + $0x3c8] sm:$0xff] %vm739, %v3507
        %3642 = vst.msk [vmem:[#allocation6 + $0x3d0] sm:$0xff] %vm739, %v3509
        %3643 = vst.msk [vmem:[#allocation6 + $0x3d8] sm:$0xff] %vm739, %v3511
        %3644 = vst.msk [vmem:[#allocation6 + $0x3e0] sm:$0xff] %vm739, %v3513
        %3645 = vst.msk [vmem:[#allocation6 + $0x3e8] sm:$0xff] %vm739, %v3515
        %3646 = vst.msk [vmem:[#allocation6 + $0x3f0] sm:$0xff] %vm739, %v3517
        %3647 = vst.msk [vmem:[#allocation6 + $0x3f8] sm:$0xff] %vm739, %v3519
        %v3648 = vmul.f32 %v1598, %v1103
        %v3649 = vmul.f32 %v1599, %v1104
        %v3650 = vmul.f32 %v1600, %v1105
        %v3651 = vmul.f32 %v1601, %v1106
        %v3652 = vmul.f32 %v1602, %v1107
        %v3653 = vmul.f32 %v1603, %v1108
        %v3654 = vmul.f32 %v1604, %v1109
        %v3655 = vmul.f32 %v1605, %v1110
        %v3656 = vmul.f32 %v1606, %v1111
        %v3657 = vmul.f32 %v1607, %v1112
        %v3658 = vmul.f32 %v1608, %v1113
        %v3659 = vmul.f32 %v1609, %v1114
        %v3660 = vmul.f32 %v1610, %v1115
        %v3661 = vmul.f32 %v1611, %v1116
        %v3662 = vmul.f32 %v1612, %v1117
        %v3663 = vmul.f32 %v1613, %v1118
        %v3680 = vcombine.high %v3648, %v3648
        %v3682 = vunpack.c.l.s4 1966171168
        %v3683 = vunpack.c.0.s8 %v3682
        %v3684 = vlaneseq
        %v3685 = vshrl.u32 %v3684, 7
        %v3686 = vsub.s32 %v3683, %v3685
        %v3687 = vrot.slane %v3648, %v3686
        %v3689 = vunpack.c.l.s4 1966171168
        %v3690 = vunpack.c.0.s8 %v3689
        %v3691 = vlaneseq
        %v3692 = vshrl.u32 %v3691, 7
        %v3693 = vsub.s32 %v3690, %v3692
        %v3694 = vrot.slane %v3680, %v3693
        %v3695 = vcombine.high %v3687, %v3687
        %v3696 = vcombine.high %v3694, %v3694
        %v3698 = vunpack.c.l.s4 1966171168
        %v3699 = vunpack.c.0.s8 %v3698
        %v3700 = vlaneseq
        %v3701 = vshrl.u32 %v3700, 7
        %v3702 = vsub.s32 %v3699, %v3701
        %v3703 = vrot.slane %v3687, %v3702
        %v3705 = vunpack.c.l.s4 1966171168
        %v3706 = vunpack.c.0.s8 %v3705
        %v3707 = vlaneseq
        %v3708 = vshrl.u32 %v3707, 7
        %v3709 = vsub.s32 %v3706, %v3708
        %v3710 = vrot.slane %v3694, %v3709
        %v3712 = vunpack.c.l.s4 1966171168
        %v3713 = vunpack.c.0.s8 %v3712
        %v3714 = vlaneseq
        %v3715 = vshrl.u32 %v3714, 7
        %v3716 = vsub.s32 %v3713, %v3715
        %v3717 = vrot.slane %v3695, %v3716
        %v3719 = vunpack.c.l.s4 1966171168
        %v3720 = vunpack.c.0.s8 %v3719
        %v3721 = vlaneseq
        %v3722 = vshrl.u32 %v3721, 7
        %v3723 = vsub.s32 %v3720, %v3722
        %v3724 = vrot.slane %v3696, %v3723
        %v3725 = vcombine.high %v3703, %v3703
        %v3726 = vcombine.high %v3710, %v3710
        %v3727 = vcombine.high %v3717, %v3717
        %v3728 = vcombine.high %v3724, %v3724
        %v3729 = vcombine.high %v3649, %v3649
        %v3731 = vunpack.c.l.s4 1966171168
        %v3732 = vunpack.c.0.s8 %v3731
        %v3733 = vlaneseq
        %v3734 = vshrl.u32 %v3733, 7
        %v3735 = vsub.s32 %v3732, %v3734
        %v3736 = vrot.slane %v3649, %v3735
        %v3738 = vunpack.c.l.s4 1966171168
        %v3739 = vunpack.c.0.s8 %v3738
        %v3740 = vlaneseq
        %v3741 = vshrl.u32 %v3740, 7
        %v3742 = vsub.s32 %v3739, %v3741
        %v3743 = vrot.slane %v3729, %v3742
        %v3744 = vcombine.high %v3736, %v3736
        %v3745 = vcombine.high %v3743, %v3743
        %v3747 = vunpack.c.l.s4 1966171168
        %v3748 = vunpack.c.0.s8 %v3747
        %v3749 = vlaneseq
        %v3750 = vshrl.u32 %v3749, 7
        %v3751 = vsub.s32 %v3748, %v3750
        %v3752 = vrot.slane %v3736, %v3751
        %v3754 = vunpack.c.l.s4 1966171168
        %v3755 = vunpack.c.0.s8 %v3754
        %v3756 = vlaneseq
        %v3757 = vshrl.u32 %v3756, 7
        %v3758 = vsub.s32 %v3755, %v3757
        %v3759 = vrot.slane %v3743, %v3758
        %v3761 = vunpack.c.l.s4 1966171168
        %v3762 = vunpack.c.0.s8 %v3761
        %v3763 = vlaneseq
        %v3764 = vshrl.u32 %v3763, 7
        %v3765 = vsub.s32 %v3762, %v3764
        %v3766 = vrot.slane %v3744, %v3765
        %v3768 = vunpack.c.l.s4 1966171168
        %v3769 = vunpack.c.0.s8 %v3768
        %v3770 = vlaneseq
        %v3771 = vshrl.u32 %v3770, 7
        %v3772 = vsub.s32 %v3769, %v3771
        %v3773 = vrot.slane %v3745, %v3772
        %v3774 = vcombine.high %v3752, %v3752
        %v3775 = vcombine.high %v3759, %v3759
        %v3776 = vcombine.high %v3766, %v3766
        %v3777 = vcombine.high %v3773, %v3773
        %v3778 = vcombine.high %v3650, %v3650
        %v3780 = vunpack.c.l.s4 1966171168
        %v3781 = vunpack.c.0.s8 %v3780
        %v3782 = vlaneseq
        %v3783 = vshrl.u32 %v3782, 7
        %v3784 = vsub.s32 %v3781, %v3783
        %v3785 = vrot.slane %v3650, %v3784
        %v3787 = vunpack.c.l.s4 1966171168
        %v3788 = vunpack.c.0.s8 %v3787
        %v3789 = vlaneseq
        %v3790 = vshrl.u32 %v3789, 7
        %v3791 = vsub.s32 %v3788, %v3790
        %v3792 = vrot.slane %v3778, %v3791
        %v3793 = vcombine.high %v3785, %v3785
        %v3794 = vcombine.high %v3792, %v3792
        %v3796 = vunpack.c.l.s4 1966171168
        %v3797 = vunpack.c.0.s8 %v3796
        %v3798 = vlaneseq
        %v3799 = vshrl.u32 %v3798, 7
        %v3800 = vsub.s32 %v3797, %v3799
        %v3801 = vrot.slane %v3785, %v3800
        %v3803 = vunpack.c.l.s4 1966171168
        %v3804 = vunpack.c.0.s8 %v3803
        %v3805 = vlaneseq
        %v3806 = vshrl.u32 %v3805, 7
        %v3807 = vsub.s32 %v3804, %v3806
        %v3808 = vrot.slane %v3792, %v3807
        %v3810 = vunpack.c.l.s4 1966171168
        %v3811 = vunpack.c.0.s8 %v3810
        %v3812 = vlaneseq
        %v3813 = vshrl.u32 %v3812, 7
        %v3814 = vsub.s32 %v3811, %v3813
        %v3815 = vrot.slane %v3793, %v3814
        %v3817 = vunpack.c.l.s4 1966171168
        %v3818 = vunpack.c.0.s8 %v3817
        %v3819 = vlaneseq
        %v3820 = vshrl.u32 %v3819, 7
        %v3821 = vsub.s32 %v3818, %v3820
        %v3822 = vrot.slane %v3794, %v3821
        %v3823 = vcombine.high %v3801, %v3801
        %v3824 = vcombine.high %v3808, %v3808
        %v3825 = vcombine.high %v3815, %v3815
        %v3826 = vcombine.high %v3822, %v3822
        %v3827 = vcombine.high %v3651, %v3651
        %v3829 = vunpack.c.l.s4 1966171168
        %v3830 = vunpack.c.0.s8 %v3829
        %v3831 = vlaneseq
        %v3832 = vshrl.u32 %v3831, 7
        %v3833 = vsub.s32 %v3830, %v3832
        %v3834 = vrot.slane %v3651, %v3833
        %v3836 = vunpack.c.l.s4 1966171168
        %v3837 = vunpack.c.0.s8 %v3836
        %v3838 = vlaneseq
        %v3839 = vshrl.u32 %v3838, 7
        %v3840 = vsub.s32 %v3837, %v3839
        %v3841 = vrot.slane %v3827, %v3840
        %v3842 = vcombine.high %v3834, %v3834
        %v3843 = vcombine.high %v3841, %v3841
        %v3845 = vunpack.c.l.s4 1966171168
        %v3846 = vunpack.c.0.s8 %v3845
        %v3847 = vlaneseq
        %v3848 = vshrl.u32 %v3847, 7
        %v3849 = vsub.s32 %v3846, %v3848
        %v3850 = vrot.slane %v3834, %v3849
        %v3852 = vunpack.c.l.s4 1966171168
        %v3853 = vunpack.c.0.s8 %v3852
        %v3854 = vlaneseq
        %v3855 = vshrl.u32 %v3854, 7
        %v3856 = vsub.s32 %v3853, %v3855
        %v3857 = vrot.slane %v3841, %v3856
        %v3859 = vunpack.c.l.s4 1966171168
        %v3860 = vunpack.c.0.s8 %v3859
        %v3861 = vlaneseq
        %v3862 = vshrl.u32 %v3861, 7
        %v3863 = vsub.s32 %v3860, %v3862
        %v3864 = vrot.slane %v3842, %v3863
        %v3866 = vunpack.c.l.s4 1966171168
        %v3867 = vunpack.c.0.s8 %v3866
        %v3868 = vlaneseq
        %v3869 = vshrl.u32 %v3868, 7
        %v3870 = vsub.s32 %v3867, %v3869
        %v3871 = vrot.slane %v3843, %v3870
        %v3872 = vcombine.high %v3850, %v3850
        %v3873 = vcombine.high %v3857, %v3857
        %v3874 = vcombine.high %v3864, %v3864
        %v3875 = vcombine.high %v3871, %v3871
        %v3876 = vcombine.high %v3652, %v3652
        %v3878 = vunpack.c.l.s4 1966171168
        %v3879 = vunpack.c.0.s8 %v3878
        %v3880 = vlaneseq
        %v3881 = vshrl.u32 %v3880, 7
        %v3882 = vsub.s32 %v3879, %v3881
        %v3883 = vrot.slane %v3652, %v3882
        %v3885 = vunpack.c.l.s4 1966171168
        %v3886 = vunpack.c.0.s8 %v3885
        %v3887 = vlaneseq
        %v3888 = vshrl.u32 %v3887, 7
        %v3889 = vsub.s32 %v3886, %v3888
        %v3890 = vrot.slane %v3876, %v3889
        %v3891 = vcombine.high %v3883, %v3883
        %v3892 = vcombine.high %v3890, %v3890
        %v3894 = vunpack.c.l.s4 1966171168
        %v3895 = vunpack.c.0.s8 %v3894
        %v3896 = vlaneseq
        %v3897 = vshrl.u32 %v3896, 7
        %v3898 = vsub.s32 %v3895, %v3897
        %v3899 = vrot.slane %v3883, %v3898
        %v3901 = vunpack.c.l.s4 1966171168
        %v3902 = vunpack.c.0.s8 %v3901
        %v3903 = vlaneseq
        %v3904 = vshrl.u32 %v3903, 7
        %v3905 = vsub.s32 %v3902, %v3904
        %v3906 = vrot.slane %v3890, %v3905
        %v3908 = vunpack.c.l.s4 1966171168
        %v3909 = vunpack.c.0.s8 %v3908
        %v3910 = vlaneseq
        %v3911 = vshrl.u32 %v3910, 7
        %v3912 = vsub.s32 %v3909, %v3911
        %v3913 = vrot.slane %v3891, %v3912
        %v3915 = vunpack.c.l.s4 1966171168
        %v3916 = vunpack.c.0.s8 %v3915
        %v3917 = vlaneseq
        %v3918 = vshrl.u32 %v3917, 7
        %v3919 = vsub.s32 %v3916, %v3918
        %v3920 = vrot.slane %v3892, %v3919
        %v3921 = vcombine.high %v3899, %v3899
        %v3922 = vcombine.high %v3906, %v3906
        %v3923 = vcombine.high %v3913, %v3913
        %v3924 = vcombine.high %v3920, %v3920
        %v3925 = vcombine.high %v3653, %v3653
        %v3927 = vunpack.c.l.s4 1966171168
        %v3928 = vunpack.c.0.s8 %v3927
        %v3929 = vlaneseq
        %v3930 = vshrl.u32 %v3929, 7
        %v3931 = vsub.s32 %v3928, %v3930
        %v3932 = vrot.slane %v3653, %v3931
        %v3934 = vunpack.c.l.s4 1966171168
        %v3935 = vunpack.c.0.s8 %v3934
        %v3936 = vlaneseq
        %v3937 = vshrl.u32 %v3936, 7
        %v3938 = vsub.s32 %v3935, %v3937
        %v3939 = vrot.slane %v3925, %v3938
        %v3940 = vcombine.high %v3932, %v3932
        %v3941 = vcombine.high %v3939, %v3939
        %v3943 = vunpack.c.l.s4 1966171168
        %v3944 = vunpack.c.0.s8 %v3943
        %v3945 = vlaneseq
        %v3946 = vshrl.u32 %v3945, 7
        %v3947 = vsub.s32 %v3944, %v3946
        %v3948 = vrot.slane %v3932, %v3947
        %v3950 = vunpack.c.l.s4 1966171168
        %v3951 = vunpack.c.0.s8 %v3950
        %v3952 = vlaneseq
        %v3953 = vshrl.u32 %v3952, 7
        %v3954 = vsub.s32 %v3951, %v3953
        %v3955 = vrot.slane %v3939, %v3954
        %v3957 = vunpack.c.l.s4 1966171168
        %v3958 = vunpack.c.0.s8 %v3957
        %v3959 = vlaneseq
        %v3960 = vshrl.u32 %v3959, 7
        %v3961 = vsub.s32 %v3958, %v3960
        %v3962 = vrot.slane %v3940, %v3961
        %v3964 = vunpack.c.l.s4 1966171168
        %v3965 = vunpack.c.0.s8 %v3964
        %v3966 = vlaneseq
        %v3967 = vshrl.u32 %v3966, 7
        %v3968 = vsub.s32 %v3965, %v3967
        %v3969 = vrot.slane %v3941, %v3968
        %v3970 = vcombine.high %v3948, %v3948
        %v3971 = vcombine.high %v3955, %v3955
        %v3972 = vcombine.high %v3962, %v3962
        %v3973 = vcombine.high %v3969, %v3969
        %v3974 = vcombine.high %v3654, %v3654
        %v3976 = vunpack.c.l.s4 1966171168
        %v3977 = vunpack.c.0.s8 %v3976
        %v3978 = vlaneseq
        %v3979 = vshrl.u32 %v3978, 7
        %v3980 = vsub.s32 %v3977, %v3979
        %v3981 = vrot.slane %v3654, %v3980
        %v3983 = vunpack.c.l.s4 1966171168
        %v3984 = vunpack.c.0.s8 %v3983
        %v3985 = vlaneseq
        %v3986 = vshrl.u32 %v3985, 7
        %v3987 = vsub.s32 %v3984, %v3986
        %v3988 = vrot.slane %v3974, %v3987
        %v3989 = vcombine.high %v3981, %v3981
        %v3990 = vcombine.high %v3988, %v3988
        %v3992 = vunpack.c.l.s4 1966171168
        %v3993 = vunpack.c.0.s8 %v3992
        %v3994 = vlaneseq
        %v3995 = vshrl.u32 %v3994, 7
        %v3996 = vsub.s32 %v3993, %v3995
        %v3997 = vrot.slane %v3981, %v3996
        %v3999 = vunpack.c.l.s4 1966171168
        %v4000 = vunpack.c.0.s8 %v3999
        %v4001 = vlaneseq
        %v4002 = vshrl.u32 %v4001, 7
        %v4003 = vsub.s32 %v4000, %v4002
        %v4004 = vrot.slane %v3988, %v4003
        %v4006 = vunpack.c.l.s4 1966171168
        %v4007 = vunpack.c.0.s8 %v4006
        %v4008 = vlaneseq
        %v4009 = vshrl.u32 %v4008, 7
        %v4010 = vsub.s32 %v4007, %v4009
        %v4011 = vrot.slane %v3989, %v4010
        %v4013 = vunpack.c.l.s4 1966171168
        %v4014 = vunpack.c.0.s8 %v4013
        %v4015 = vlaneseq
        %v4016 = vshrl.u32 %v4015, 7
        %v4017 = vsub.s32 %v4014, %v4016
        %v4018 = vrot.slane %v3990, %v4017
        %v4019 = vcombine.high %v3997, %v3997
        %v4020 = vcombine.high %v4004, %v4004
        %v4021 = vcombine.high %v4011, %v4011
        %v4022 = vcombine.high %v4018, %v4018
        %v4023 = vcombine.high %v3655, %v3655
        %v4025 = vunpack.c.l.s4 1966171168
        %v4026 = vunpack.c.0.s8 %v4025
        %v4027 = vlaneseq
        %v4028 = vshrl.u32 %v4027, 7
        %v4029 = vsub.s32 %v4026, %v4028
        %v4030 = vrot.slane %v3655, %v4029
        %v4032 = vunpack.c.l.s4 1966171168
        %v4033 = vunpack.c.0.s8 %v4032
        %v4034 = vlaneseq
        %v4035 = vshrl.u32 %v4034, 7
        %v4036 = vsub.s32 %v4033, %v4035
        %v4037 = vrot.slane %v4023, %v4036
        %v4038 = vcombine.high %v4030, %v4030
        %v4039 = vcombine.high %v4037, %v4037
        %v4041 = vunpack.c.l.s4 1966171168
        %v4042 = vunpack.c.0.s8 %v4041
        %v4043 = vlaneseq
        %v4044 = vshrl.u32 %v4043, 7
        %v4045 = vsub.s32 %v4042, %v4044
        %v4046 = vrot.slane %v4030, %v4045
        %v4048 = vunpack.c.l.s4 1966171168
        %v4049 = vunpack.c.0.s8 %v4048
        %v4050 = vlaneseq
        %v4051 = vshrl.u32 %v4050, 7
        %v4052 = vsub.s32 %v4049, %v4051
        %v4053 = vrot.slane %v4037, %v4052
        %v4055 = vunpack.c.l.s4 1966171168
        %v4056 = vunpack.c.0.s8 %v4055
        %v4057 = vlaneseq
        %v4058 = vshrl.u32 %v4057, 7
        %v4059 = vsub.s32 %v4056, %v4058
        %v4060 = vrot.slane %v4038, %v4059
        %v4062 = vunpack.c.l.s4 1966171168
        %v4063 = vunpack.c.0.s8 %v4062
        %v4064 = vlaneseq
        %v4065 = vshrl.u32 %v4064, 7
        %v4066 = vsub.s32 %v4063, %v4065
        %v4067 = vrot.slane %v4039, %v4066
        %v4068 = vcombine.high %v4046, %v4046
        %v4069 = vcombine.high %v4053, %v4053
        %v4070 = vcombine.high %v4060, %v4060
        %v4071 = vcombine.high %v4067, %v4067
        %v4072 = vcombine.high %v3656, %v3656
        %v4074 = vunpack.c.l.s4 1966171168
        %v4075 = vunpack.c.0.s8 %v4074
        %v4076 = vlaneseq
        %v4077 = vshrl.u32 %v4076, 7
        %v4078 = vsub.s32 %v4075, %v4077
        %v4079 = vrot.slane %v3656, %v4078
        %v4081 = vunpack.c.l.s4 1966171168
        %v4082 = vunpack.c.0.s8 %v4081
        %v4083 = vlaneseq
        %v4084 = vshrl.u32 %v4083, 7
        %v4085 = vsub.s32 %v4082, %v4084
        %v4086 = vrot.slane %v4072, %v4085
        %v4087 = vcombine.high %v4079, %v4079
        %v4088 = vcombine.high %v4086, %v4086
        %v4090 = vunpack.c.l.s4 1966171168
        %v4091 = vunpack.c.0.s8 %v4090
        %v4092 = vlaneseq
        %v4093 = vshrl.u32 %v4092, 7
        %v4094 = vsub.s32 %v4091, %v4093
        %v4095 = vrot.slane %v4079, %v4094
        %v4097 = vunpack.c.l.s4 1966171168
        %v4098 = vunpack.c.0.s8 %v4097
        %v4099 = vlaneseq
        %v4100 = vshrl.u32 %v4099, 7
        %v4101 = vsub.s32 %v4098, %v4100
        %v4102 = vrot.slane %v4086, %v4101
        %v4104 = vunpack.c.l.s4 1966171168
        %v4105 = vunpack.c.0.s8 %v4104
        %v4106 = vlaneseq
        %v4107 = vshrl.u32 %v4106, 7
        %v4108 = vsub.s32 %v4105, %v4107
        %v4109 = vrot.slane %v4087, %v4108
        %v4111 = vunpack.c.l.s4 1966171168
        %v4112 = vunpack.c.0.s8 %v4111
        %v4113 = vlaneseq
        %v4114 = vshrl.u32 %v4113, 7
        %v4115 = vsub.s32 %v4112, %v4114
        %v4116 = vrot.slane %v4088, %v4115
        %v4117 = vcombine.high %v4095, %v4095
        %v4118 = vcombine.high %v4102, %v4102
        %v4119 = vcombine.high %v4109, %v4109
        %v4120 = vcombine.high %v4116, %v4116
        %v4121 = vcombine.high %v3657, %v3657
        %v4123 = vunpack.c.l.s4 1966171168
        %v4124 = vunpack.c.0.s8 %v4123
        %v4125 = vlaneseq
        %v4126 = vshrl.u32 %v4125, 7
        %v4127 = vsub.s32 %v4124, %v4126
        %v4128 = vrot.slane %v3657, %v4127
        %v4130 = vunpack.c.l.s4 1966171168
        %v4131 = vunpack.c.0.s8 %v4130
        %v4132 = vlaneseq
        %v4133 = vshrl.u32 %v4132, 7
        %v4134 = vsub.s32 %v4131, %v4133
        %v4135 = vrot.slane %v4121, %v4134
        %v4136 = vcombine.high %v4128, %v4128
        %v4137 = vcombine.high %v4135, %v4135
        %v4139 = vunpack.c.l.s4 1966171168
        %v4140 = vunpack.c.0.s8 %v4139
        %v4141 = vlaneseq
        %v4142 = vshrl.u32 %v4141, 7
        %v4143 = vsub.s32 %v4140, %v4142
        %v4144 = vrot.slane %v4128, %v4143
        %v4146 = vunpack.c.l.s4 1966171168
        %v4147 = vunpack.c.0.s8 %v4146
        %v4148 = vlaneseq
        %v4149 = vshrl.u32 %v4148, 7
        %v4150 = vsub.s32 %v4147, %v4149
        %v4151 = vrot.slane %v4135, %v4150
        %v4153 = vunpack.c.l.s4 1966171168
        %v4154 = vunpack.c.0.s8 %v4153
        %v4155 = vlaneseq
        %v4156 = vshrl.u32 %v4155, 7
        %v4157 = vsub.s32 %v4154, %v4156
        %v4158 = vrot.slane %v4136, %v4157
        %v4160 = vunpack.c.l.s4 1966171168
        %v4161 = vunpack.c.0.s8 %v4160
        %v4162 = vlaneseq
        %v4163 = vshrl.u32 %v4162, 7
        %v4164 = vsub.s32 %v4161, %v4163
        %v4165 = vrot.slane %v4137, %v4164
        %v4166 = vcombine.high %v4144, %v4144
        %v4167 = vcombine.high %v4151, %v4151
        %v4168 = vcombine.high %v4158, %v4158
        %v4169 = vcombine.high %v4165, %v4165
        %v4170 = vcombine.high %v3658, %v3658
        %v4172 = vunpack.c.l.s4 1966171168
        %v4173 = vunpack.c.0.s8 %v4172
        %v4174 = vlaneseq
        %v4175 = vshrl.u32 %v4174, 7
        %v4176 = vsub.s32 %v4173, %v4175
        %v4177 = vrot.slane %v3658, %v4176
        %v4179 = vunpack.c.l.s4 1966171168
        %v4180 = vunpack.c.0.s8 %v4179
        %v4181 = vlaneseq
        %v4182 = vshrl.u32 %v4181, 7
        %v4183 = vsub.s32 %v4180, %v4182
        %v4184 = vrot.slane %v4170, %v4183
        %v4185 = vcombine.high %v4177, %v4177
        %v4186 = vcombine.high %v4184, %v4184
        %v4188 = vunpack.c.l.s4 1966171168
        %v4189 = vunpack.c.0.s8 %v4188
        %v4190 = vlaneseq
        %v4191 = vshrl.u32 %v4190, 7
        %v4192 = vsub.s32 %v4189, %v4191
        %v4193 = vrot.slane %v4177, %v4192
        %v4195 = vunpack.c.l.s4 1966171168
        %v4196 = vunpack.c.0.s8 %v4195
        %v4197 = vlaneseq
        %v4198 = vshrl.u32 %v4197, 7
        %v4199 = vsub.s32 %v4196, %v4198
        %v4200 = vrot.slane %v4184, %v4199
        %v4202 = vunpack.c.l.s4 1966171168
        %v4203 = vunpack.c.0.s8 %v4202
        %v4204 = vlaneseq
        %v4205 = vshrl.u32 %v4204, 7
        %v4206 = vsub.s32 %v4203, %v4205
        %v4207 = vrot.slane %v4185, %v4206
        %v4209 = vunpack.c.l.s4 1966171168
        %v4210 = vunpack.c.0.s8 %v4209
        %v4211 = vlaneseq
        %v4212 = vshrl.u32 %v4211, 7
        %v4213 = vsub.s32 %v4210, %v4212
        %v4214 = vrot.slane %v4186, %v4213
        %v4215 = vcombine.high %v4193, %v4193
        %v4216 = vcombine.high %v4200, %v4200
        %v4217 = vcombine.high %v4207, %v4207
        %v4218 = vcombine.high %v4214, %v4214
        %v4219 = vcombine.high %v3659, %v3659
        %v4221 = vunpack.c.l.s4 1966171168
        %v4222 = vunpack.c.0.s8 %v4221
        %v4223 = vlaneseq
        %v4224 = vshrl.u32 %v4223, 7
        %v4225 = vsub.s32 %v4222, %v4224
        %v4226 = vrot.slane %v3659, %v4225
        %v4228 = vunpack.c.l.s4 1966171168
        %v4229 = vunpack.c.0.s8 %v4228
        %v4230 = vlaneseq
        %v4231 = vshrl.u32 %v4230, 7
        %v4232 = vsub.s32 %v4229, %v4231
        %v4233 = vrot.slane %v4219, %v4232
        %v4234 = vcombine.high %v4226, %v4226
        %v4235 = vcombine.high %v4233, %v4233
        %v4237 = vunpack.c.l.s4 1966171168
        %v4238 = vunpack.c.0.s8 %v4237
        %v4239 = vlaneseq
        %v4240 = vshrl.u32 %v4239, 7
        %v4241 = vsub.s32 %v4238, %v4240
        %v4242 = vrot.slane %v4226, %v4241
        %v4244 = vunpack.c.l.s4 1966171168
        %v4245 = vunpack.c.0.s8 %v4244
        %v4246 = vlaneseq
        %v4247 = vshrl.u32 %v4246, 7
        %v4248 = vsub.s32 %v4245, %v4247
        %v4249 = vrot.slane %v4233, %v4248
        %v4251 = vunpack.c.l.s4 1966171168
        %v4252 = vunpack.c.0.s8 %v4251
        %v4253 = vlaneseq
        %v4254 = vshrl.u32 %v4253, 7
        %v4255 = vsub.s32 %v4252, %v4254
        %v4256 = vrot.slane %v4234, %v4255
        %v4258 = vunpack.c.l.s4 1966171168
        %v4259 = vunpack.c.0.s8 %v4258
        %v4260 = vlaneseq
        %v4261 = vshrl.u32 %v4260, 7
        %v4262 = vsub.s32 %v4259, %v4261
        %v4263 = vrot.slane %v4235, %v4262
        %v4264 = vcombine.high %v4242, %v4242
        %v4265 = vcombine.high %v4249, %v4249
        %v4266 = vcombine.high %v4256, %v4256
        %v4267 = vcombine.high %v4263, %v4263
        %v4268 = vcombine.high %v3660, %v3660
        %v4270 = vunpack.c.l.s4 1966171168
        %v4271 = vunpack.c.0.s8 %v4270
        %v4272 = vlaneseq
        %v4273 = vshrl.u32 %v4272, 7
        %v4274 = vsub.s32 %v4271, %v4273
        %v4275 = vrot.slane %v3660, %v4274
        %v4277 = vunpack.c.l.s4 1966171168
        %v4278 = vunpack.c.0.s8 %v4277
        %v4279 = vlaneseq
        %v4280 = vshrl.u32 %v4279, 7
        %v4281 = vsub.s32 %v4278, %v4280
        %v4282 = vrot.slane %v4268, %v4281
        %v4283 = vcombine.high %v4275, %v4275
        %v4284 = vcombine.high %v4282, %v4282
        %v4286 = vunpack.c.l.s4 1966171168
        %v4287 = vunpack.c.0.s8 %v4286
        %v4288 = vlaneseq
        %v4289 = vshrl.u32 %v4288, 7
        %v4290 = vsub.s32 %v4287, %v4289
        %v4291 = vrot.slane %v4275, %v4290
        %v4293 = vunpack.c.l.s4 1966171168
        %v4294 = vunpack.c.0.s8 %v4293
        %v4295 = vlaneseq
        %v4296 = vshrl.u32 %v4295, 7
        %v4297 = vsub.s32 %v4294, %v4296
        %v4298 = vrot.slane %v4282, %v4297
        %v4300 = vunpack.c.l.s4 1966171168
        %v4301 = vunpack.c.0.s8 %v4300
        %v4302 = vlaneseq
        %v4303 = vshrl.u32 %v4302, 7
        %v4304 = vsub.s32 %v4301, %v4303
        %v4305 = vrot.slane %v4283, %v4304
        %v4307 = vunpack.c.l.s4 1966171168
        %v4308 = vunpack.c.0.s8 %v4307
        %v4309 = vlaneseq
        %v4310 = vshrl.u32 %v4309, 7
        %v4311 = vsub.s32 %v4308, %v4310
        %v4312 = vrot.slane %v4284, %v4311
        %v4313 = vcombine.high %v4291, %v4291
        %v4314 = vcombine.high %v4298, %v4298
        %v4315 = vcombine.high %v4305, %v4305
        %v4316 = vcombine.high %v4312, %v4312
        %v4317 = vcombine.high %v3661, %v3661
        %v4319 = vunpack.c.l.s4 1966171168
        %v4320 = vunpack.c.0.s8 %v4319
        %v4321 = vlaneseq
        %v4322 = vshrl.u32 %v4321, 7
        %v4323 = vsub.s32 %v4320, %v4322
        %v4324 = vrot.slane %v3661, %v4323
        %v4326 = vunpack.c.l.s4 1966171168
        %v4327 = vunpack.c.0.s8 %v4326
        %v4328 = vlaneseq
        %v4329 = vshrl.u32 %v4328, 7
        %v4330 = vsub.s32 %v4327, %v4329
        %v4331 = vrot.slane %v4317, %v4330
        %v4332 = vcombine.high %v4324, %v4324
        %v4333 = vcombine.high %v4331, %v4331
        %v4335 = vunpack.c.l.s4 1966171168
        %v4336 = vunpack.c.0.s8 %v4335
        %v4337 = vlaneseq
        %v4338 = vshrl.u32 %v4337, 7
        %v4339 = vsub.s32 %v4336, %v4338
        %v4340 = vrot.slane %v4324, %v4339
        %v4342 = vunpack.c.l.s4 1966171168
        %v4343 = vunpack.c.0.s8 %v4342
        %v4344 = vlaneseq
        %v4345 = vshrl.u32 %v4344, 7
        %v4346 = vsub.s32 %v4343, %v4345
        %v4347 = vrot.slane %v4331, %v4346
        %v4349 = vunpack.c.l.s4 1966171168
        %v4350 = vunpack.c.0.s8 %v4349
        %v4351 = vlaneseq
        %v4352 = vshrl.u32 %v4351, 7
        %v4353 = vsub.s32 %v4350, %v4352
        %v4354 = vrot.slane %v4332, %v4353
        %v4356 = vunpack.c.l.s4 1966171168
        %v4357 = vunpack.c.0.s8 %v4356
        %v4358 = vlaneseq
        %v4359 = vshrl.u32 %v4358, 7
        %v4360 = vsub.s32 %v4357, %v4359
        %v4361 = vrot.slane %v4333, %v4360
        %v4362 = vcombine.high %v4340, %v4340
        %v4363 = vcombine.high %v4347, %v4347
        %v4364 = vcombine.high %v4354, %v4354
        %v4365 = vcombine.high %v4361, %v4361
        %v4366 = vcombine.high %v3662, %v3662
        %v4368 = vunpack.c.l.s4 1966171168
        %v4369 = vunpack.c.0.s8 %v4368
        %v4370 = vlaneseq
        %v4371 = vshrl.u32 %v4370, 7
        %v4372 = vsub.s32 %v4369, %v4371
        %v4373 = vrot.slane %v3662, %v4372
        %v4375 = vunpack.c.l.s4 1966171168
        %v4376 = vunpack.c.0.s8 %v4375
        %v4377 = vlaneseq
        %v4378 = vshrl.u32 %v4377, 7
        %v4379 = vsub.s32 %v4376, %v4378
        %v4380 = vrot.slane %v4366, %v4379
        %v4381 = vcombine.high %v4373, %v4373
        %v4382 = vcombine.high %v4380, %v4380
        %v4384 = vunpack.c.l.s4 1966171168
        %v4385 = vunpack.c.0.s8 %v4384
        %v4386 = vlaneseq
        %v4387 = vshrl.u32 %v4386, 7
        %v4388 = vsub.s32 %v4385, %v4387
        %v4389 = vrot.slane %v4373, %v4388
        %v4391 = vunpack.c.l.s4 1966171168
        %v4392 = vunpack.c.0.s8 %v4391
        %v4393 = vlaneseq
        %v4394 = vshrl.u32 %v4393, 7
        %v4395 = vsub.s32 %v4392, %v4394
        %v4396 = vrot.slane %v4380, %v4395
        %v4398 = vunpack.c.l.s4 1966171168
        %v4399 = vunpack.c.0.s8 %v4398
        %v4400 = vlaneseq
        %v4401 = vshrl.u32 %v4400, 7
        %v4402 = vsub.s32 %v4399, %v4401
        %v4403 = vrot.slane %v4381, %v4402
        %v4405 = vunpack.c.l.s4 1966171168
        %v4406 = vunpack.c.0.s8 %v4405
        %v4407 = vlaneseq
        %v4408 = vshrl.u32 %v4407, 7
        %v4409 = vsub.s32 %v4406, %v4408
        %v4410 = vrot.slane %v4382, %v4409
        %v4411 = vcombine.high %v4389, %v4389
        %v4412 = vcombine.high %v4396, %v4396
        %v4413 = vcombine.high %v4403, %v4403
        %v4414 = vcombine.high %v4410, %v4410
        %v4415 = vcombine.high %v3663, %v3663
        %v4417 = vunpack.c.l.s4 1966171168
        %v4418 = vunpack.c.0.s8 %v4417
        %v4419 = vlaneseq
        %v4420 = vshrl.u32 %v4419, 7
        %v4421 = vsub.s32 %v4418, %v4420
        %v4422 = vrot.slane %v3663, %v4421
        %v4424 = vunpack.c.l.s4 1966171168
        %v4425 = vunpack.c.0.s8 %v4424
        %v4426 = vlaneseq
        %v4427 = vshrl.u32 %v4426, 7
        %v4428 = vsub.s32 %v4425, %v4427
        %v4429 = vrot.slane %v4415, %v4428
        %v4430 = vcombine.high %v4422, %v4422
        %v4431 = vcombine.high %v4429, %v4429
        %v4433 = vunpack.c.l.s4 1966171168
        %v4434 = vunpack.c.0.s8 %v4433
        %v4435 = vlaneseq
        %v4436 = vshrl.u32 %v4435, 7
        %v4437 = vsub.s32 %v4434, %v4436
        %v4438 = vrot.slane %v4422, %v4437
        %v4440 = vunpack.c.l.s4 1966171168
        %v4441 = vunpack.c.0.s8 %v4440
        %v4442 = vlaneseq
        %v4443 = vshrl.u32 %v4442, 7
        %v4444 = vsub.s32 %v4441, %v4443
        %v4445 = vrot.slane %v4429, %v4444
        %v4447 = vunpack.c.l.s4 1966171168
        %v4448 = vunpack.c.0.s8 %v4447
        %v4449 = vlaneseq
        %v4450 = vshrl.u32 %v4449, 7
        %v4451 = vsub.s32 %v4448, %v4450
        %v4452 = vrot.slane %v4430, %v4451
        %v4454 = vunpack.c.l.s4 1966171168
        %v4455 = vunpack.c.0.s8 %v4454
        %v4456 = vlaneseq
        %v4457 = vshrl.u32 %v4456, 7
        %v4458 = vsub.s32 %v4455, %v4457
        %v4459 = vrot.slane %v4431, %v4458
        %v4460 = vcombine.high %v4438, %v4438
        %v4461 = vcombine.high %v4445, %v4445
        %v4462 = vcombine.high %v4452, %v4452
        %v4463 = vcombine.high %v4459, %v4459
        %v4464 = vlaneseq
        %v4465 = vshrl.u32 %v4464, 7
        %v4466 = vsub.s32 0, %v4465
        %v4467 = vrot.slane %v1241, %v4466
        %s4469 = sor.u32 256, 64
        %4470 = vbcast.lane.b32.xlu0 %v4467, %s4469
        %v4471 = vpop.permute.xlu0 %4470
        %v4472 = vlaneseq
        %v4473 = vshrl.u32 %v4472, 7
        %v4474 = vsub.s32 1, %v4473
        %v4475 = vrot.slane %v1241, %v4474
        %s4477 = sor.u32 256, 64
        %4478 = vbcast.lane.b32.xlu0 %v4475, %s4477
        %v4479 = vpop.permute.xlu0 %4478
        %v4480 = vlaneseq
        %v4481 = vshrl.u32 %v4480, 7
        %v4482 = vsub.s32 2, %v4481
        %v4483 = vrot.slane %v1241, %v4482
        %s4485 = sor.u32 256, 64
        %4486 = vbcast.lane.b32.xlu0 %v4483, %s4485
        %v4487 = vpop.permute.xlu0 %4486
        %v4488 = vlaneseq
        %v4489 = vshrl.u32 %v4488, 7
        %v4490 = vsub.s32 3, %v4489
        %v4491 = vrot.slane %v1241, %v4490
        %s4493 = sor.u32 256, 64
        %4494 = vbcast.lane.b32.xlu0 %v4491, %s4493
        %v4495 = vpop.permute.xlu0 %4494
        %v4496 = vlaneseq
        %v4497 = vshrl.u32 %v4496, 7
        %v4498 = vsub.s32 4, %v4497
        %v4499 = vrot.slane %v1241, %v4498
        %s4501 = sor.u32 256, 64
        %4502 = vbcast.lane.b32.xlu0 %v4499, %s4501
        %v4503 = vpop.permute.xlu0 %4502
        %v4504 = vlaneseq
        %v4505 = vshrl.u32 %v4504, 7
        %v4506 = vsub.s32 5, %v4505
        %v4507 = vrot.slane %v1241, %v4506
        %s4509 = sor.u32 256, 64
        %4510 = vbcast.lane.b32.xlu0 %v4507, %s4509
        %v4511 = vpop.permute.xlu0 %4510
        %v4512 = vlaneseq
        %v4513 = vshrl.u32 %v4512, 7
        %v4514 = vsub.s32 6, %v4513
        %v4515 = vrot.slane %v1241, %v4514
        %s4517 = sor.u32 256, 64
        %4518 = vbcast.lane.b32.xlu0 %v4515, %s4517
        %v4519 = vpop.permute.xlu0 %4518
        %v4520 = vlaneseq
        %v4521 = vshrl.u32 %v4520, 7
        %v4522 = vsub.s32 7, %v4521
        %v4523 = vrot.slane %v1241, %v4522
        %s4525 = sor.u32 256, 64
        %4526 = vbcast.lane.b32.xlu0 %v4523, %s4525
        %v4527 = vpop.permute.xlu0 %4526
        %v4528 = vlaneseq
        %v4529 = vshrl.u32 %v4528, 7
        %v4530 = vsub.s32 0, %v4529
        %v4531 = vrot.slane %v1244, %v4530
        %s4533 = sor.u32 256, 64
        %4534 = vbcast.lane.b32.xlu0 %v4531, %s4533
        %v4535 = vpop.permute.xlu0 %4534
        %v4536 = vlaneseq
        %v4537 = vshrl.u32 %v4536, 7
        %v4538 = vsub.s32 1, %v4537
        %v4539 = vrot.slane %v1244, %v4538
        %s4541 = sor.u32 256, 64
        %4542 = vbcast.lane.b32.xlu0 %v4539, %s4541
        %v4543 = vpop.permute.xlu0 %4542
        %v4544 = vlaneseq
        %v4545 = vshrl.u32 %v4544, 7
        %v4546 = vsub.s32 2, %v4545
        %v4547 = vrot.slane %v1244, %v4546
        %s4549 = sor.u32 256, 64
        %4550 = vbcast.lane.b32.xlu0 %v4547, %s4549
        %v4551 = vpop.permute.xlu0 %4550
        %v4552 = vlaneseq
        %v4553 = vshrl.u32 %v4552, 7
        %v4554 = vsub.s32 3, %v4553
        %v4555 = vrot.slane %v1244, %v4554
        %s4557 = sor.u32 256, 64
        %4558 = vbcast.lane.b32.xlu0 %v4555, %s4557
        %v4559 = vpop.permute.xlu0 %4558
        %v4560 = vlaneseq
        %v4561 = vshrl.u32 %v4560, 7
        %v4562 = vsub.s32 4, %v4561
        %v4563 = vrot.slane %v1244, %v4562
        %s4565 = sor.u32 256, 64
        %4566 = vbcast.lane.b32.xlu0 %v4563, %s4565
        %v4567 = vpop.permute.xlu0 %4566
        %v4568 = vlaneseq
        %v4569 = vshrl.u32 %v4568, 7
        %v4570 = vsub.s32 5, %v4569
        %v4571 = vrot.slane %v1244, %v4570
        %s4573 = sor.u32 256, 64
        %4574 = vbcast.lane.b32.xlu0 %v4571, %s4573
        %v4575 = vpop.permute.xlu0 %4574
        %v4576 = vlaneseq
        %v4577 = vshrl.u32 %v4576, 7
        %v4578 = vsub.s32 6, %v4577
        %v4579 = vrot.slane %v1244, %v4578
        %s4581 = sor.u32 256, 64
        %4582 = vbcast.lane.b32.xlu0 %v4579, %s4581
        %v4583 = vpop.permute.xlu0 %4582
        %v4584 = vlaneseq
        %v4585 = vshrl.u32 %v4584, 7
        %v4586 = vsub.s32 7, %v4585
        %v4587 = vrot.slane %v1244, %v4586
        %s4589 = sor.u32 256, 64
        %4590 = vbcast.lane.b32.xlu0 %v4587, %s4589
        %v4591 = vpop.permute.xlu0 %4590
        %v4592 = vlaneseq
        %v4593 = vshrl.u32 %v4592, 7
        %v4594 = vsub.s32 0, %v4593
        %v4595 = vrot.slane %v1249, %v4594
        %s4597 = sor.u32 256, 64
        %4598 = vbcast.lane.b32.xlu0 %v4595, %s4597
        %v4599 = vpop.permute.xlu0 %4598
        %v4600 = vlaneseq
        %v4601 = vshrl.u32 %v4600, 7
        %v4602 = vsub.s32 1, %v4601
        %v4603 = vrot.slane %v1249, %v4602
        %s4605 = sor.u32 256, 64
        %4606 = vbcast.lane.b32.xlu0 %v4603, %s4605
        %v4607 = vpop.permute.xlu0 %4606
        %v4608 = vlaneseq
        %v4609 = vshrl.u32 %v4608, 7
        %v4610 = vsub.s32 2, %v4609
        %v4611 = vrot.slane %v1249, %v4610
        %s4613 = sor.u32 256, 64
        %4614 = vbcast.lane.b32.xlu0 %v4611, %s4613
        %v4615 = vpop.permute.xlu0 %4614
        %v4616 = vlaneseq
        %v4617 = vshrl.u32 %v4616, 7
        %v4618 = vsub.s32 3, %v4617
        %v4619 = vrot.slane %v1249, %v4618
        %s4621 = sor.u32 256, 64
        %4622 = vbcast.lane.b32.xlu0 %v4619, %s4621
        %v4623 = vpop.permute.xlu0 %4622
        %v4624 = vlaneseq
        %v4625 = vshrl.u32 %v4624, 7
        %v4626 = vsub.s32 4, %v4625
        %v4627 = vrot.slane %v1249, %v4626
        %s4629 = sor.u32 256, 64
        %4630 = vbcast.lane.b32.xlu0 %v4627, %s4629
        %v4631 = vpop.permute.xlu0 %4630
        %v4632 = vlaneseq
        %v4633 = vshrl.u32 %v4632, 7
        %v4634 = vsub.s32 5, %v4633
        %v4635 = vrot.slane %v1249, %v4634
        %s4637 = sor.u32 256, 64
        %4638 = vbcast.lane.b32.xlu0 %v4635, %s4637
        %v4639 = vpop.permute.xlu0 %4638
        %v4640 = vlaneseq
        %v4641 = vshrl.u32 %v4640, 7
        %v4642 = vsub.s32 6, %v4641
        %v4643 = vrot.slane %v1249, %v4642
        %s4645 = sor.u32 256, 64
        %4646 = vbcast.lane.b32.xlu0 %v4643, %s4645
        %v4647 = vpop.permute.xlu0 %4646
        %v4648 = vlaneseq
        %v4649 = vshrl.u32 %v4648, 7
        %v4650 = vsub.s32 7, %v4649
        %v4651 = vrot.slane %v1249, %v4650
        %s4653 = sor.u32 256, 64
        %4654 = vbcast.lane.b32.xlu0 %v4651, %s4653
        %v4655 = vpop.permute.xlu0 %4654
        %v4656 = vlaneseq
        %v4657 = vshrl.u32 %v4656, 7
        %v4658 = vsub.s32 0, %v4657
        %v4659 = vrot.slane %v1252, %v4658
        %s4661 = sor.u32 256, 64
        %4662 = vbcast.lane.b32.xlu0 %v4659, %s4661
        %v4663 = vpop.permute.xlu0 %4662
        %v4664 = vlaneseq
        %v4665 = vshrl.u32 %v4664, 7
        %v4666 = vsub.s32 1, %v4665
        %v4667 = vrot.slane %v1252, %v4666
        %s4669 = sor.u32 256, 64
        %4670 = vbcast.lane.b32.xlu0 %v4667, %s4669
        %v4671 = vpop.permute.xlu0 %4670
        %v4672 = vlaneseq
        %v4673 = vshrl.u32 %v4672, 7
        %v4674 = vsub.s32 2, %v4673
        %v4675 = vrot.slane %v1252, %v4674
        %s4677 = sor.u32 256, 64
        %4678 = vbcast.lane.b32.xlu0 %v4675, %s4677
        %v4679 = vpop.permute.xlu0 %4678
        %v4680 = vlaneseq
        %v4681 = vshrl.u32 %v4680, 7
        %v4682 = vsub.s32 3, %v4681
        %v4683 = vrot.slane %v1252, %v4682
        %s4685 = sor.u32 256, 64
        %4686 = vbcast.lane.b32.xlu0 %v4683, %s4685
        %v4687 = vpop.permute.xlu0 %4686
        %v4688 = vlaneseq
        %v4689 = vshrl.u32 %v4688, 7
        %v4690 = vsub.s32 4, %v4689
        %v4691 = vrot.slane %v1252, %v4690
        %s4693 = sor.u32 256, 64
        %4694 = vbcast.lane.b32.xlu0 %v4691, %s4693
        %v4695 = vpop.permute.xlu0 %4694
        %v4696 = vlaneseq
        %v4697 = vshrl.u32 %v4696, 7
        %v4698 = vsub.s32 5, %v4697
        %v4699 = vrot.slane %v1252, %v4698
        %s4701 = sor.u32 256, 64
        %4702 = vbcast.lane.b32.xlu0 %v4699, %s4701
        %v4703 = vpop.permute.xlu0 %4702
        %v4704 = vlaneseq
        %v4705 = vshrl.u32 %v4704, 7
        %v4706 = vsub.s32 6, %v4705
        %v4707 = vrot.slane %v1252, %v4706
        %s4709 = sor.u32 256, 64
        %4710 = vbcast.lane.b32.xlu0 %v4707, %s4709
        %v4711 = vpop.permute.xlu0 %4710
        %v4712 = vlaneseq
        %v4713 = vshrl.u32 %v4712, 7
        %v4714 = vsub.s32 7, %v4713
        %v4715 = vrot.slane %v1252, %v4714
        %s4717 = sor.u32 256, 64
        %4718 = vbcast.lane.b32.xlu0 %v4715, %s4717
        %v4719 = vpop.permute.xlu0 %4718
        %v4720 = vlaneseq
        %v4721 = vshrl.u32 %v4720, 7
        %v4722 = vsub.s32 0, %v4721
        %v4723 = vrot.slane %v1257, %v4722
        %s4725 = sor.u32 256, 64
        %4726 = vbcast.lane.b32.xlu0 %v4723, %s4725
        %v4727 = vpop.permute.xlu0 %4726
        %v4728 = vlaneseq
        %v4729 = vshrl.u32 %v4728, 7
        %v4730 = vsub.s32 1, %v4729
        %v4731 = vrot.slane %v1257, %v4730
        %s4733 = sor.u32 256, 64
        %4734 = vbcast.lane.b32.xlu0 %v4731, %s4733
        %v4735 = vpop.permute.xlu0 %4734
        %v4736 = vlaneseq
        %v4737 = vshrl.u32 %v4736, 7
        %v4738 = vsub.s32 2, %v4737
        %v4739 = vrot.slane %v1257, %v4738
        %s4741 = sor.u32 256, 64
        %4742 = vbcast.lane.b32.xlu0 %v4739, %s4741
        %v4743 = vpop.permute.xlu0 %4742
        %v4744 = vlaneseq
        %v4745 = vshrl.u32 %v4744, 7
        %v4746 = vsub.s32 3, %v4745
        %v4747 = vrot.slane %v1257, %v4746
        %s4749 = sor.u32 256, 64
        %4750 = vbcast.lane.b32.xlu0 %v4747, %s4749
        %v4751 = vpop.permute.xlu0 %4750
        %v4752 = vlaneseq
        %v4753 = vshrl.u32 %v4752, 7
        %v4754 = vsub.s32 4, %v4753
        %v4755 = vrot.slane %v1257, %v4754
        %s4757 = sor.u32 256, 64
        %4758 = vbcast.lane.b32.xlu0 %v4755, %s4757
        %v4759 = vpop.permute.xlu0 %4758
        %v4760 = vlaneseq
        %v4761 = vshrl.u32 %v4760, 7
        %v4762 = vsub.s32 5, %v4761
        %v4763 = vrot.slane %v1257, %v4762
        %s4765 = sor.u32 256, 64
        %4766 = vbcast.lane.b32.xlu0 %v4763, %s4765
        %v4767 = vpop.permute.xlu0 %4766
        %v4768 = vlaneseq
        %v4769 = vshrl.u32 %v4768, 7
        %v4770 = vsub.s32 6, %v4769
        %v4771 = vrot.slane %v1257, %v4770
        %s4773 = sor.u32 256, 64
        %4774 = vbcast.lane.b32.xlu0 %v4771, %s4773
        %v4775 = vpop.permute.xlu0 %4774
        %v4776 = vlaneseq
        %v4777 = vshrl.u32 %v4776, 7
        %v4778 = vsub.s32 7, %v4777
        %v4779 = vrot.slane %v1257, %v4778
        %s4781 = sor.u32 256, 64
        %4782 = vbcast.lane.b32.xlu0 %v4779, %s4781
        %v4783 = vpop.permute.xlu0 %4782
        %v4784 = vlaneseq
        %v4785 = vshrl.u32 %v4784, 7
        %v4786 = vsub.s32 0, %v4785
        %v4787 = vrot.slane %v1260, %v4786
        %s4789 = sor.u32 256, 64
        %4790 = vbcast.lane.b32.xlu0 %v4787, %s4789
        %v4791 = vpop.permute.xlu0 %4790
        %v4792 = vlaneseq
        %v4793 = vshrl.u32 %v4792, 7
        %v4794 = vsub.s32 1, %v4793
        %v4795 = vrot.slane %v1260, %v4794
        %s4797 = sor.u32 256, 64
        %4798 = vbcast.lane.b32.xlu0 %v4795, %s4797
        %v4799 = vpop.permute.xlu0 %4798
        %v4800 = vlaneseq
        %v4801 = vshrl.u32 %v4800, 7
        %v4802 = vsub.s32 2, %v4801
        %v4803 = vrot.slane %v1260, %v4802
        %s4805 = sor.u32 256, 64
        %4806 = vbcast.lane.b32.xlu0 %v4803, %s4805
        %v4807 = vpop.permute.xlu0 %4806
        %v4808 = vlaneseq
        %v4809 = vshrl.u32 %v4808, 7
        %v4810 = vsub.s32 3, %v4809
        %v4811 = vrot.slane %v1260, %v4810
        %s4813 = sor.u32 256, 64
        %4814 = vbcast.lane.b32.xlu0 %v4811, %s4813
        %v4815 = vpop.permute.xlu0 %4814
        %v4816 = vlaneseq
        %v4817 = vshrl.u32 %v4816, 7
        %v4818 = vsub.s32 4, %v4817
        %v4819 = vrot.slane %v1260, %v4818
        %s4821 = sor.u32 256, 64
        %4822 = vbcast.lane.b32.xlu0 %v4819, %s4821
        %v4823 = vpop.permute.xlu0 %4822
        %v4824 = vlaneseq
        %v4825 = vshrl.u32 %v4824, 7
        %v4826 = vsub.s32 5, %v4825
        %v4827 = vrot.slane %v1260, %v4826
        %s4829 = sor.u32 256, 64
        %4830 = vbcast.lane.b32.xlu0 %v4827, %s4829
        %v4831 = vpop.permute.xlu0 %4830
        %v4832 = vlaneseq
        %v4833 = vshrl.u32 %v4832, 7
        %v4834 = vsub.s32 6, %v4833
        %v4835 = vrot.slane %v1260, %v4834
        %s4837 = sor.u32 256, 64
        %4838 = vbcast.lane.b32.xlu0 %v4835, %s4837
        %v4839 = vpop.permute.xlu0 %4838
        %v4840 = vlaneseq
        %v4841 = vshrl.u32 %v4840, 7
        %v4842 = vsub.s32 7, %v4841
        %v4843 = vrot.slane %v1260, %v4842
        %s4845 = sor.u32 256, 64
        %4846 = vbcast.lane.b32.xlu0 %v4843, %s4845
        %v4847 = vpop.permute.xlu0 %4846
        %v4848 = vlaneseq
        %v4849 = vshrl.u32 %v4848, 7
        %v4850 = vsub.s32 0, %v4849
        %v4851 = vrot.slane %v1265, %v4850
        %s4853 = sor.u32 256, 64
        %4854 = vbcast.lane.b32.xlu0 %v4851, %s4853
        %v4855 = vpop.permute.xlu0 %4854
        %v4856 = vlaneseq
        %v4857 = vshrl.u32 %v4856, 7
        %v4858 = vsub.s32 1, %v4857
        %v4859 = vrot.slane %v1265, %v4858
        %s4861 = sor.u32 256, 64
        %4862 = vbcast.lane.b32.xlu0 %v4859, %s4861
        %v4863 = vpop.permute.xlu0 %4862
        %v4864 = vlaneseq
        %v4865 = vshrl.u32 %v4864, 7
        %v4866 = vsub.s32 2, %v4865
        %v4867 = vrot.slane %v1265, %v4866
        %s4869 = sor.u32 256, 64
        %4870 = vbcast.lane.b32.xlu0 %v4867, %s4869
        %v4871 = vpop.permute.xlu0 %4870
        %v4872 = vlaneseq
        %v4873 = vshrl.u32 %v4872, 7
        %v4874 = vsub.s32 3, %v4873
        %v4875 = vrot.slane %v1265, %v4874
        %s4877 = sor.u32 256, 64
        %4878 = vbcast.lane.b32.xlu0 %v4875, %s4877
        %v4879 = vpop.permute.xlu0 %4878
        %v4880 = vlaneseq
        %v4881 = vshrl.u32 %v4880, 7
        %v4882 = vsub.s32 4, %v4881
        %v4883 = vrot.slane %v1265, %v4882
        %s4885 = sor.u32 256, 64
        %4886 = vbcast.lane.b32.xlu0 %v4883, %s4885
        %v4887 = vpop.permute.xlu0 %4886
        %v4888 = vlaneseq
        %v4889 = vshrl.u32 %v4888, 7
        %v4890 = vsub.s32 5, %v4889
        %v4891 = vrot.slane %v1265, %v4890
        %s4893 = sor.u32 256, 64
        %4894 = vbcast.lane.b32.xlu0 %v4891, %s4893
        %v4895 = vpop.permute.xlu0 %4894
        %v4896 = vlaneseq
        %v4897 = vshrl.u32 %v4896, 7
        %v4898 = vsub.s32 6, %v4897
        %v4899 = vrot.slane %v1265, %v4898
        %s4901 = sor.u32 256, 64
        %4902 = vbcast.lane.b32.xlu0 %v4899, %s4901
        %v4903 = vpop.permute.xlu0 %4902
        %v4904 = vlaneseq
        %v4905 = vshrl.u32 %v4904, 7
        %v4906 = vsub.s32 7, %v4905
        %v4907 = vrot.slane %v1265, %v4906
        %s4909 = sor.u32 256, 64
        %4910 = vbcast.lane.b32.xlu0 %v4907, %s4909
        %v4911 = vpop.permute.xlu0 %4910
        %v4912 = vlaneseq
        %v4913 = vshrl.u32 %v4912, 7
        %v4914 = vsub.s32 0, %v4913
        %v4915 = vrot.slane %v1268, %v4914
        %s4917 = sor.u32 256, 64
        %4918 = vbcast.lane.b32.xlu0 %v4915, %s4917
        %v4919 = vpop.permute.xlu0 %4918
        %v4920 = vlaneseq
        %v4921 = vshrl.u32 %v4920, 7
        %v4922 = vsub.s32 1, %v4921
        %v4923 = vrot.slane %v1268, %v4922
        %s4925 = sor.u32 256, 64
        %4926 = vbcast.lane.b32.xlu0 %v4923, %s4925
        %v4927 = vpop.permute.xlu0 %4926
        %v4928 = vlaneseq
        %v4929 = vshrl.u32 %v4928, 7
        %v4930 = vsub.s32 2, %v4929
        %v4931 = vrot.slane %v1268, %v4930
        %s4933 = sor.u32 256, 64
        %4934 = vbcast.lane.b32.xlu0 %v4931, %s4933
        %v4935 = vpop.permute.xlu0 %4934
        %v4936 = vlaneseq
        %v4937 = vshrl.u32 %v4936, 7
        %v4938 = vsub.s32 3, %v4937
        %v4939 = vrot.slane %v1268, %v4938
        %s4941 = sor.u32 256, 64
        %4942 = vbcast.lane.b32.xlu0 %v4939, %s4941
        %v4943 = vpop.permute.xlu0 %4942
        %v4944 = vlaneseq
        %v4945 = vshrl.u32 %v4944, 7
        %v4946 = vsub.s32 4, %v4945
        %v4947 = vrot.slane %v1268, %v4946
        %s4949 = sor.u32 256, 64
        %4950 = vbcast.lane.b32.xlu0 %v4947, %s4949
        %v4951 = vpop.permute.xlu0 %4950
        %v4952 = vlaneseq
        %v4953 = vshrl.u32 %v4952, 7
        %v4954 = vsub.s32 5, %v4953
        %v4955 = vrot.slane %v1268, %v4954
        %s4957 = sor.u32 256, 64
        %4958 = vbcast.lane.b32.xlu0 %v4955, %s4957
        %v4959 = vpop.permute.xlu0 %4958
        %v4960 = vlaneseq
        %v4961 = vshrl.u32 %v4960, 7
        %v4962 = vsub.s32 6, %v4961
        %v4963 = vrot.slane %v1268, %v4962
        %s4965 = sor.u32 256, 64
        %4966 = vbcast.lane.b32.xlu0 %v4963, %s4965
        %v4967 = vpop.permute.xlu0 %4966
        %v4968 = vlaneseq
        %v4969 = vshrl.u32 %v4968, 7
        %v4970 = vsub.s32 7, %v4969
        %v4971 = vrot.slane %v1268, %v4970
        %s4973 = sor.u32 256, 64
        %4974 = vbcast.lane.b32.xlu0 %v4971, %s4973
        %v4975 = vpop.permute.xlu0 %4974
        %v4976 = vlaneseq
        %v4977 = vshrl.u32 %v4976, 7
        %v4978 = vsub.s32 0, %v4977
        %v4979 = vrot.slane %v1273, %v4978
        %s4981 = sor.u32 256, 64
        %4982 = vbcast.lane.b32.xlu0 %v4979, %s4981
        %v4983 = vpop.permute.xlu0 %4982
        %v4984 = vlaneseq
        %v4985 = vshrl.u32 %v4984, 7
        %v4986 = vsub.s32 1, %v4985
        %v4987 = vrot.slane %v1273, %v4986
        %s4989 = sor.u32 256, 64
        %4990 = vbcast.lane.b32.xlu0 %v4987, %s4989
        %v4991 = vpop.permute.xlu0 %4990
        %v4992 = vlaneseq
        %v4993 = vshrl.u32 %v4992, 7
        %v4994 = vsub.s32 2, %v4993
        %v4995 = vrot.slane %v1273, %v4994
        %s4997 = sor.u32 256, 64
        %4998 = vbcast.lane.b32.xlu0 %v4995, %s4997
        %v4999 = vpop.permute.xlu0 %4998
        %v5000 = vlaneseq
        %v5001 = vshrl.u32 %v5000, 7
        %v5002 = vsub.s32 3, %v5001
        %v5003 = vrot.slane %v1273, %v5002
        %s5005 = sor.u32 256, 64
        %5006 = vbcast.lane.b32.xlu0 %v5003, %s5005
        %v5007 = vpop.permute.xlu0 %5006
        %v5008 = vlaneseq
        %v5009 = vshrl.u32 %v5008, 7
        %v5010 = vsub.s32 4, %v5009
        %v5011 = vrot.slane %v1273, %v5010
        %s5013 = sor.u32 256, 64
        %5014 = vbcast.lane.b32.xlu0 %v5011, %s5013
        %v5015 = vpop.permute.xlu0 %5014
        %v5016 = vlaneseq
        %v5017 = vshrl.u32 %v5016, 7
        %v5018 = vsub.s32 5, %v5017
        %v5019 = vrot.slane %v1273, %v5018
        %s5021 = sor.u32 256, 64
        %5022 = vbcast.lane.b32.xlu0 %v5019, %s5021
        %v5023 = vpop.permute.xlu0 %5022
        %v5024 = vlaneseq
        %v5025 = vshrl.u32 %v5024, 7
        %v5026 = vsub.s32 6, %v5025
        %v5027 = vrot.slane %v1273, %v5026
        %s5029 = sor.u32 256, 64
        %5030 = vbcast.lane.b32.xlu0 %v5027, %s5029
        %v5031 = vpop.permute.xlu0 %5030
        %v5032 = vlaneseq
        %v5033 = vshrl.u32 %v5032, 7
        %v5034 = vsub.s32 7, %v5033
        %v5035 = vrot.slane %v1273, %v5034
        %s5037 = sor.u32 256, 64
        %5038 = vbcast.lane.b32.xlu0 %v5035, %s5037
        %v5039 = vpop.permute.xlu0 %5038
        %v5040 = vlaneseq
        %v5041 = vshrl.u32 %v5040, 7
        %v5042 = vsub.s32 0, %v5041
        %v5043 = vrot.slane %v1276, %v5042
        %s5045 = sor.u32 256, 64
        %5046 = vbcast.lane.b32.xlu0 %v5043, %s5045
        %v5047 = vpop.permute.xlu0 %5046
        %v5048 = vlaneseq
        %v5049 = vshrl.u32 %v5048, 7
        %v5050 = vsub.s32 1, %v5049
        %v5051 = vrot.slane %v1276, %v5050
        %s5053 = sor.u32 256, 64
        %5054 = vbcast.lane.b32.xlu0 %v5051, %s5053
        %v5055 = vpop.permute.xlu0 %5054
        %v5056 = vlaneseq
        %v5057 = vshrl.u32 %v5056, 7
        %v5058 = vsub.s32 2, %v5057
        %v5059 = vrot.slane %v1276, %v5058
        %s5061 = sor.u32 256, 64
        %5062 = vbcast.lane.b32.xlu0 %v5059, %s5061
        %v5063 = vpop.permute.xlu0 %5062
        %v5064 = vlaneseq
        %v5065 = vshrl.u32 %v5064, 7
        %v5066 = vsub.s32 3, %v5065
        %v5067 = vrot.slane %v1276, %v5066
        %s5069 = sor.u32 256, 64
        %5070 = vbcast.lane.b32.xlu0 %v5067, %s5069
        %v5071 = vpop.permute.xlu0 %5070
        %v5072 = vlaneseq
        %v5073 = vshrl.u32 %v5072, 7
        %v5074 = vsub.s32 4, %v5073
        %v5075 = vrot.slane %v1276, %v5074
        %s5077 = sor.u32 256, 64
        %5078 = vbcast.lane.b32.xlu0 %v5075, %s5077
        %v5079 = vpop.permute.xlu0 %5078
        %v5080 = vlaneseq
        %v5081 = vshrl.u32 %v5080, 7
        %v5082 = vsub.s32 5, %v5081
        %v5083 = vrot.slane %v1276, %v5082
        %s5085 = sor.u32 256, 64
        %5086 = vbcast.lane.b32.xlu0 %v5083, %s5085
        %v5087 = vpop.permute.xlu0 %5086
        %v5088 = vlaneseq
        %v5089 = vshrl.u32 %v5088, 7
        %v5090 = vsub.s32 6, %v5089
        %v5091 = vrot.slane %v1276, %v5090
        %s5093 = sor.u32 256, 64
        %5094 = vbcast.lane.b32.xlu0 %v5091, %s5093
        %v5095 = vpop.permute.xlu0 %5094
        %v5096 = vlaneseq
        %v5097 = vshrl.u32 %v5096, 7
        %v5098 = vsub.s32 7, %v5097
        %v5099 = vrot.slane %v1276, %v5098
        %s5101 = sor.u32 256, 64
        %5102 = vbcast.lane.b32.xlu0 %v5099, %s5101
        %v5103 = vpop.permute.xlu0 %5102
        %v5104 = vlaneseq
        %v5105 = vshrl.u32 %v5104, 7
        %v5106 = vsub.s32 0, %v5105
        %v5107 = vrot.slane %v1281, %v5106
        %s5109 = sor.u32 256, 64
        %5110 = vbcast.lane.b32.xlu0 %v5107, %s5109
        %v5111 = vpop.permute.xlu0 %5110
        %v5112 = vlaneseq
        %v5113 = vshrl.u32 %v5112, 7
        %v5114 = vsub.s32 1, %v5113
        %v5115 = vrot.slane %v1281, %v5114
        %s5117 = sor.u32 256, 64
        %5118 = vbcast.lane.b32.xlu0 %v5115, %s5117
        %v5119 = vpop.permute.xlu0 %5118
        %v5120 = vlaneseq
        %v5121 = vshrl.u32 %v5120, 7
        %v5122 = vsub.s32 2, %v5121
        %v5123 = vrot.slane %v1281, %v5122
        %s5125 = sor.u32 256, 64
        %5126 = vbcast.lane.b32.xlu0 %v5123, %s5125
        %v5127 = vpop.permute.xlu0 %5126
        %v5128 = vlaneseq
        %v5129 = vshrl.u32 %v5128, 7
        %v5130 = vsub.s32 3, %v5129
        %v5131 = vrot.slane %v1281, %v5130
        %s5133 = sor.u32 256, 64
        %5134 = vbcast.lane.b32.xlu0 %v5131, %s5133
        %v5135 = vpop.permute.xlu0 %5134
        %v5136 = vlaneseq
        %v5137 = vshrl.u32 %v5136, 7
        %v5138 = vsub.s32 4, %v5137
        %v5139 = vrot.slane %v1281, %v5138
        %s5141 = sor.u32 256, 64
        %5142 = vbcast.lane.b32.xlu0 %v5139, %s5141
        %v5143 = vpop.permute.xlu0 %5142
        %v5144 = vlaneseq
        %v5145 = vshrl.u32 %v5144, 7
        %v5146 = vsub.s32 5, %v5145
        %v5147 = vrot.slane %v1281, %v5146
        %s5149 = sor.u32 256, 64
        %5150 = vbcast.lane.b32.xlu0 %v5147, %s5149
        %v5151 = vpop.permute.xlu0 %5150
        %v5152 = vlaneseq
        %v5153 = vshrl.u32 %v5152, 7
        %v5154 = vsub.s32 6, %v5153
        %v5155 = vrot.slane %v1281, %v5154
        %s5157 = sor.u32 256, 64
        %5158 = vbcast.lane.b32.xlu0 %v5155, %s5157
        %v5159 = vpop.permute.xlu0 %5158
        %v5160 = vlaneseq
        %v5161 = vshrl.u32 %v5160, 7
        %v5162 = vsub.s32 7, %v5161
        %v5163 = vrot.slane %v1281, %v5162
        %s5165 = sor.u32 256, 64
        %5166 = vbcast.lane.b32.xlu0 %v5163, %s5165
        %v5167 = vpop.permute.xlu0 %5166
        %v5168 = vlaneseq
        %v5169 = vshrl.u32 %v5168, 7
        %v5170 = vsub.s32 0, %v5169
        %v5171 = vrot.slane %v1284, %v5170
        %s5173 = sor.u32 256, 64
        %5174 = vbcast.lane.b32.xlu0 %v5171, %s5173
        %v5175 = vpop.permute.xlu0 %5174
        %v5176 = vlaneseq
        %v5177 = vshrl.u32 %v5176, 7
        %v5178 = vsub.s32 1, %v5177
        %v5179 = vrot.slane %v1284, %v5178
        %s5181 = sor.u32 256, 64
        %5182 = vbcast.lane.b32.xlu0 %v5179, %s5181
        %v5183 = vpop.permute.xlu0 %5182
        %v5184 = vlaneseq
        %v5185 = vshrl.u32 %v5184, 7
        %v5186 = vsub.s32 2, %v5185
        %v5187 = vrot.slane %v1284, %v5186
        %s5189 = sor.u32 256, 64
        %5190 = vbcast.lane.b32.xlu0 %v5187, %s5189
        %v5191 = vpop.permute.xlu0 %5190
        %v5192 = vlaneseq
        %v5193 = vshrl.u32 %v5192, 7
        %v5194 = vsub.s32 3, %v5193
        %v5195 = vrot.slane %v1284, %v5194
        %s5197 = sor.u32 256, 64
        %5198 = vbcast.lane.b32.xlu0 %v5195, %s5197
        %v5199 = vpop.permute.xlu0 %5198
        %v5200 = vlaneseq
        %v5201 = vshrl.u32 %v5200, 7
        %v5202 = vsub.s32 4, %v5201
        %v5203 = vrot.slane %v1284, %v5202
        %s5205 = sor.u32 256, 64
        %5206 = vbcast.lane.b32.xlu0 %v5203, %s5205
        %v5207 = vpop.permute.xlu0 %5206
        %v5208 = vlaneseq
        %v5209 = vshrl.u32 %v5208, 7
        %v5210 = vsub.s32 5, %v5209
        %v5211 = vrot.slane %v1284, %v5210
        %s5213 = sor.u32 256, 64
        %5214 = vbcast.lane.b32.xlu0 %v5211, %s5213
        %v5215 = vpop.permute.xlu0 %5214
        %v5216 = vlaneseq
        %v5217 = vshrl.u32 %v5216, 7
        %v5218 = vsub.s32 6, %v5217
        %v5219 = vrot.slane %v1284, %v5218
        %s5221 = sor.u32 256, 64
        %5222 = vbcast.lane.b32.xlu0 %v5219, %s5221
        %v5223 = vpop.permute.xlu0 %5222
        %v5224 = vlaneseq
        %v5225 = vshrl.u32 %v5224, 7
        %v5226 = vsub.s32 7, %v5225
        %v5227 = vrot.slane %v1284, %v5226
        %s5229 = sor.u32 256, 64
        %5230 = vbcast.lane.b32.xlu0 %v5227, %s5229
        %v5231 = vpop.permute.xlu0 %5230
        %v5232 = vlaneseq
        %v5233 = vshrl.u32 %v5232, 7
        %v5234 = vsub.s32 0, %v5233
        %v5235 = vrot.slane %v1289, %v5234
        %s5237 = sor.u32 256, 64
        %5238 = vbcast.lane.b32.xlu0 %v5235, %s5237
        %v5239 = vpop.permute.xlu0 %5238
        %v5240 = vlaneseq
        %v5241 = vshrl.u32 %v5240, 7
        %v5242 = vsub.s32 1, %v5241
        %v5243 = vrot.slane %v1289, %v5242
        %s5245 = sor.u32 256, 64
        %5246 = vbcast.lane.b32.xlu0 %v5243, %s5245
        %v5247 = vpop.permute.xlu0 %5246
        %v5248 = vlaneseq
        %v5249 = vshrl.u32 %v5248, 7
        %v5250 = vsub.s32 2, %v5249
        %v5251 = vrot.slane %v1289, %v5250
        %s5253 = sor.u32 256, 64
        %5254 = vbcast.lane.b32.xlu0 %v5251, %s5253
        %v5255 = vpop.permute.xlu0 %5254
        %v5256 = vlaneseq
        %v5257 = vshrl.u32 %v5256, 7
        %v5258 = vsub.s32 3, %v5257
        %v5259 = vrot.slane %v1289, %v5258
        %s5261 = sor.u32 256, 64
        %5262 = vbcast.lane.b32.xlu0 %v5259, %s5261
        %v5263 = vpop.permute.xlu0 %5262
        %v5264 = vlaneseq
        %v5265 = vshrl.u32 %v5264, 7
        %v5266 = vsub.s32 4, %v5265
        %v5267 = vrot.slane %v1289, %v5266
        %s5269 = sor.u32 256, 64
        %5270 = vbcast.lane.b32.xlu0 %v5267, %s5269
        %v5271 = vpop.permute.xlu0 %5270
        %v5272 = vlaneseq
        %v5273 = vshrl.u32 %v5272, 7
        %v5274 = vsub.s32 5, %v5273
        %v5275 = vrot.slane %v1289, %v5274
        %s5277 = sor.u32 256, 64
        %5278 = vbcast.lane.b32.xlu0 %v5275, %s5277
        %v5279 = vpop.permute.xlu0 %5278
        %v5280 = vlaneseq
        %v5281 = vshrl.u32 %v5280, 7
        %v5282 = vsub.s32 6, %v5281
        %v5283 = vrot.slane %v1289, %v5282
        %s5285 = sor.u32 256, 64
        %5286 = vbcast.lane.b32.xlu0 %v5283, %s5285
        %v5287 = vpop.permute.xlu0 %5286
        %v5288 = vlaneseq
        %v5289 = vshrl.u32 %v5288, 7
        %v5290 = vsub.s32 7, %v5289
        %v5291 = vrot.slane %v1289, %v5290
        %s5293 = sor.u32 256, 64
        %5294 = vbcast.lane.b32.xlu0 %v5291, %s5293
        %v5295 = vpop.permute.xlu0 %5294
        %v5296 = vlaneseq
        %v5297 = vshrl.u32 %v5296, 7
        %v5298 = vsub.s32 0, %v5297
        %v5299 = vrot.slane %v1292, %v5298
        %s5301 = sor.u32 256, 64
        %5302 = vbcast.lane.b32.xlu0 %v5299, %s5301
        %v5303 = vpop.permute.xlu0 %5302
        %v5304 = vlaneseq
        %v5305 = vshrl.u32 %v5304, 7
        %v5306 = vsub.s32 1, %v5305
        %v5307 = vrot.slane %v1292, %v5306
        %s5309 = sor.u32 256, 64
        %5310 = vbcast.lane.b32.xlu0 %v5307, %s5309
        %v5311 = vpop.permute.xlu0 %5310
        %v5312 = vlaneseq
        %v5313 = vshrl.u32 %v5312, 7
        %v5314 = vsub.s32 2, %v5313
        %v5315 = vrot.slane %v1292, %v5314
        %s5317 = sor.u32 256, 64
        %5318 = vbcast.lane.b32.xlu0 %v5315, %s5317
        %v5319 = vpop.permute.xlu0 %5318
        %v5320 = vlaneseq
        %v5321 = vshrl.u32 %v5320, 7
        %v5322 = vsub.s32 3, %v5321
        %v5323 = vrot.slane %v1292, %v5322
        %s5325 = sor.u32 256, 64
        %5326 = vbcast.lane.b32.xlu0 %v5323, %s5325
        %v5327 = vpop.permute.xlu0 %5326
        %v5328 = vlaneseq
        %v5329 = vshrl.u32 %v5328, 7
        %v5330 = vsub.s32 4, %v5329
        %v5331 = vrot.slane %v1292, %v5330
        %s5333 = sor.u32 256, 64
        %5334 = vbcast.lane.b32.xlu0 %v5331, %s5333
        %v5335 = vpop.permute.xlu0 %5334
        %v5336 = vlaneseq
        %v5337 = vshrl.u32 %v5336, 7
        %v5338 = vsub.s32 5, %v5337
        %v5339 = vrot.slane %v1292, %v5338
        %s5341 = sor.u32 256, 64
        %5342 = vbcast.lane.b32.xlu0 %v5339, %s5341
        %v5343 = vpop.permute.xlu0 %5342
        %v5344 = vlaneseq
        %v5345 = vshrl.u32 %v5344, 7
        %v5346 = vsub.s32 6, %v5345
        %v5347 = vrot.slane %v1292, %v5346
        %s5349 = sor.u32 256, 64
        %5350 = vbcast.lane.b32.xlu0 %v5347, %s5349
        %v5351 = vpop.permute.xlu0 %5350
        %v5352 = vlaneseq
        %v5353 = vshrl.u32 %v5352, 7
        %v5354 = vsub.s32 7, %v5353
        %v5355 = vrot.slane %v1292, %v5354
        %s5357 = sor.u32 256, 64
        %5358 = vbcast.lane.b32.xlu0 %v5355, %s5357
        %v5359 = vpop.permute.xlu0 %5358
        %v5360 = vlaneseq
        %v5361 = vshrl.u32 %v5360, 7
        %v5362 = vsub.s32 0, %v5361
        %v5363 = vrot.slane %v1297, %v5362
        %s5365 = sor.u32 256, 64
        %5366 = vbcast.lane.b32.xlu0 %v5363, %s5365
        %v5367 = vpop.permute.xlu0 %5366
        %v5368 = vlaneseq
        %v5369 = vshrl.u32 %v5368, 7
        %v5370 = vsub.s32 1, %v5369
        %v5371 = vrot.slane %v1297, %v5370
        %s5373 = sor.u32 256, 64
        %5374 = vbcast.lane.b32.xlu0 %v5371, %s5373
        %v5375 = vpop.permute.xlu0 %5374
        %v5376 = vlaneseq
        %v5377 = vshrl.u32 %v5376, 7
        %v5378 = vsub.s32 2, %v5377
        %v5379 = vrot.slane %v1297, %v5378
        %s5381 = sor.u32 256, 64
        %5382 = vbcast.lane.b32.xlu0 %v5379, %s5381
        %v5383 = vpop.permute.xlu0 %5382
        %v5384 = vlaneseq
        %v5385 = vshrl.u32 %v5384, 7
        %v5386 = vsub.s32 3, %v5385
        %v5387 = vrot.slane %v1297, %v5386
        %s5389 = sor.u32 256, 64
        %5390 = vbcast.lane.b32.xlu0 %v5387, %s5389
        %v5391 = vpop.permute.xlu0 %5390
        %v5392 = vlaneseq
        %v5393 = vshrl.u32 %v5392, 7
        %v5394 = vsub.s32 4, %v5393
        %v5395 = vrot.slane %v1297, %v5394
        %s5397 = sor.u32 256, 64
        %5398 = vbcast.lane.b32.xlu0 %v5395, %s5397
        %v5399 = vpop.permute.xlu0 %5398
        %v5400 = vlaneseq
        %v5401 = vshrl.u32 %v5400, 7
        %v5402 = vsub.s32 5, %v5401
        %v5403 = vrot.slane %v1297, %v5402
        %s5405 = sor.u32 256, 64
        %5406 = vbcast.lane.b32.xlu0 %v5403, %s5405
        %v5407 = vpop.permute.xlu0 %5406
        %v5408 = vlaneseq
        %v5409 = vshrl.u32 %v5408, 7
        %v5410 = vsub.s32 6, %v5409
        %v5411 = vrot.slane %v1297, %v5410
        %s5413 = sor.u32 256, 64
        %5414 = vbcast.lane.b32.xlu0 %v5411, %s5413
        %v5415 = vpop.permute.xlu0 %5414
        %v5416 = vlaneseq
        %v5417 = vshrl.u32 %v5416, 7
        %v5418 = vsub.s32 7, %v5417
        %v5419 = vrot.slane %v1297, %v5418
        %s5421 = sor.u32 256, 64
        %5422 = vbcast.lane.b32.xlu0 %v5419, %s5421
        %v5423 = vpop.permute.xlu0 %5422
        %v5424 = vlaneseq
        %v5425 = vshrl.u32 %v5424, 7
        %v5426 = vsub.s32 0, %v5425
        %v5427 = vrot.slane %v1300, %v5426
        %s5429 = sor.u32 256, 64
        %5430 = vbcast.lane.b32.xlu0 %v5427, %s5429
        %v5431 = vpop.permute.xlu0 %5430
        %v5432 = vlaneseq
        %v5433 = vshrl.u32 %v5432, 7
        %v5434 = vsub.s32 1, %v5433
        %v5435 = vrot.slane %v1300, %v5434
        %s5437 = sor.u32 256, 64
        %5438 = vbcast.lane.b32.xlu0 %v5435, %s5437
        %v5439 = vpop.permute.xlu0 %5438
        %v5440 = vlaneseq
        %v5441 = vshrl.u32 %v5440, 7
        %v5442 = vsub.s32 2, %v5441
        %v5443 = vrot.slane %v1300, %v5442
        %s5445 = sor.u32 256, 64
        %5446 = vbcast.lane.b32.xlu0 %v5443, %s5445
        %v5447 = vpop.permute.xlu0 %5446
        %v5448 = vlaneseq
        %v5449 = vshrl.u32 %v5448, 7
        %v5450 = vsub.s32 3, %v5449
        %v5451 = vrot.slane %v1300, %v5450
        %s5453 = sor.u32 256, 64
        %5454 = vbcast.lane.b32.xlu0 %v5451, %s5453
        %v5455 = vpop.permute.xlu0 %5454
        %v5456 = vlaneseq
        %v5457 = vshrl.u32 %v5456, 7
        %v5458 = vsub.s32 4, %v5457
        %v5459 = vrot.slane %v1300, %v5458
        %s5461 = sor.u32 256, 64
        %5462 = vbcast.lane.b32.xlu0 %v5459, %s5461
        %v5463 = vpop.permute.xlu0 %5462
        %v5464 = vlaneseq
        %v5465 = vshrl.u32 %v5464, 7
        %v5466 = vsub.s32 5, %v5465
        %v5467 = vrot.slane %v1300, %v5466
        %s5469 = sor.u32 256, 64
        %5470 = vbcast.lane.b32.xlu0 %v5467, %s5469
        %v5471 = vpop.permute.xlu0 %5470
        %v5472 = vlaneseq
        %v5473 = vshrl.u32 %v5472, 7
        %v5474 = vsub.s32 6, %v5473
        %v5475 = vrot.slane %v1300, %v5474
        %s5477 = sor.u32 256, 64
        %5478 = vbcast.lane.b32.xlu0 %v5475, %s5477
        %v5479 = vpop.permute.xlu0 %5478
        %v5480 = vlaneseq
        %v5481 = vshrl.u32 %v5480, 7
        %v5482 = vsub.s32 7, %v5481
        %v5483 = vrot.slane %v1300, %v5482
        %s5485 = sor.u32 256, 64
        %5486 = vbcast.lane.b32.xlu0 %v5483, %s5485
        %v5487 = vpop.permute.xlu0 %5486
        %v5488 = vlaneseq
        %v5489 = vshrl.u32 %v5488, 7
        %v5490 = vsub.s32 0, %v5489
        %v5491 = vrot.slane %v3703, %v5490
        %v5492 = vlaneseq
        %v5493 = vshrl.u32 %v5492, 7
        %v5494 = vsub.s32 0, %v5493
        %v5495 = vrot.slane %v3717, %v5494
        %v5496 = vlaneseq
        %v5497 = vshrl.u32 %v5496, 7
        %v5498 = vsub.s32 0, %v5497
        %v5499 = vrot.slane %v3725, %v5498
        %v5500 = vlaneseq
        %v5501 = vshrl.u32 %v5500, 7
        %v5502 = vsub.s32 0, %v5501
        %v5503 = vrot.slane %v3727, %v5502
        %v5504 = vlaneseq
        %v5505 = vshrl.u32 %v5504, 7
        %v5506 = vsub.s32 0, %v5505
        %v5507 = vrot.slane %v3710, %v5506
        %v5508 = vlaneseq
        %v5509 = vshrl.u32 %v5508, 7
        %v5510 = vsub.s32 0, %v5509
        %v5511 = vrot.slane %v3724, %v5510
        %v5512 = vlaneseq
        %v5513 = vshrl.u32 %v5512, 7
        %v5514 = vsub.s32 0, %v5513
        %v5515 = vrot.slane %v3726, %v5514
        %v5516 = vlaneseq
        %v5517 = vshrl.u32 %v5516, 7
        %v5518 = vsub.s32 0, %v5517
        %v5519 = vrot.slane %v3728, %v5518
        %v5520 = vlaneseq
        %v5521 = vshrl.u32 %v5520, 7
        %v5522 = vsub.s32 0, %v5521
        %v5523 = vrot.slane %v3752, %v5522
        %v5524 = vlaneseq
        %v5525 = vshrl.u32 %v5524, 7
        %v5526 = vsub.s32 0, %v5525
        %v5527 = vrot.slane %v3766, %v5526
        %v5528 = vlaneseq
        %v5529 = vshrl.u32 %v5528, 7
        %v5530 = vsub.s32 0, %v5529
        %v5531 = vrot.slane %v3774, %v5530
        %v5532 = vlaneseq
        %v5533 = vshrl.u32 %v5532, 7
        %v5534 = vsub.s32 0, %v5533
        %v5535 = vrot.slane %v3776, %v5534
        %v5536 = vlaneseq
        %v5537 = vshrl.u32 %v5536, 7
        %v5538 = vsub.s32 0, %v5537
        %v5539 = vrot.slane %v3759, %v5538
        %v5540 = vlaneseq
        %v5541 = vshrl.u32 %v5540, 7
        %v5542 = vsub.s32 0, %v5541
        %v5543 = vrot.slane %v3773, %v5542
        %v5544 = vlaneseq
        %v5545 = vshrl.u32 %v5544, 7
        %v5546 = vsub.s32 0, %v5545
        %v5547 = vrot.slane %v3775, %v5546
        %v5548 = vlaneseq
        %v5549 = vshrl.u32 %v5548, 7
        %v5550 = vsub.s32 0, %v5549
        %v5551 = vrot.slane %v3777, %v5550
        %v5552 = vlaneseq
        %v5553 = vshrl.u32 %v5552, 7
        %v5554 = vsub.s32 0, %v5553
        %v5555 = vrot.slane %v3801, %v5554
        %v5556 = vlaneseq
        %v5557 = vshrl.u32 %v5556, 7
        %v5558 = vsub.s32 0, %v5557
        %v5559 = vrot.slane %v3815, %v5558
        %v5560 = vlaneseq
        %v5561 = vshrl.u32 %v5560, 7
        %v5562 = vsub.s32 0, %v5561
        %v5563 = vrot.slane %v3823, %v5562
        %v5564 = vlaneseq
        %v5565 = vshrl.u32 %v5564, 7
        %v5566 = vsub.s32 0, %v5565
        %v5567 = vrot.slane %v3825, %v5566
        %v5568 = vlaneseq
        %v5569 = vshrl.u32 %v5568, 7
        %v5570 = vsub.s32 0, %v5569
        %v5571 = vrot.slane %v3808, %v5570
        %v5572 = vlaneseq
        %v5573 = vshrl.u32 %v5572, 7
        %v5574 = vsub.s32 0, %v5573
        %v5575 = vrot.slane %v3822, %v5574
        %v5576 = vlaneseq
        %v5577 = vshrl.u32 %v5576, 7
        %v5578 = vsub.s32 0, %v5577
        %v5579 = vrot.slane %v3824, %v5578
        %v5580 = vlaneseq
        %v5581 = vshrl.u32 %v5580, 7
        %v5582 = vsub.s32 0, %v5581
        %v5583 = vrot.slane %v3826, %v5582
        %v5584 = vlaneseq
        %v5585 = vshrl.u32 %v5584, 7
        %v5586 = vsub.s32 0, %v5585
        %v5587 = vrot.slane %v3850, %v5586
        %v5588 = vlaneseq
        %v5589 = vshrl.u32 %v5588, 7
        %v5590 = vsub.s32 0, %v5589
        %v5591 = vrot.slane %v3864, %v5590
        %v5592 = vlaneseq
        %v5593 = vshrl.u32 %v5592, 7
        %v5594 = vsub.s32 0, %v5593
        %v5595 = vrot.slane %v3872, %v5594
        %v5596 = vlaneseq
        %v5597 = vshrl.u32 %v5596, 7
        %v5598 = vsub.s32 0, %v5597
        %v5599 = vrot.slane %v3874, %v5598
        %v5600 = vlaneseq
        %v5601 = vshrl.u32 %v5600, 7
        %v5602 = vsub.s32 0, %v5601
        %v5603 = vrot.slane %v3857, %v5602
        %v5604 = vlaneseq
        %v5605 = vshrl.u32 %v5604, 7
        %v5606 = vsub.s32 0, %v5605
        %v5607 = vrot.slane %v3871, %v5606
        %v5608 = vlaneseq
        %v5609 = vshrl.u32 %v5608, 7
        %v5610 = vsub.s32 0, %v5609
        %v5611 = vrot.slane %v3873, %v5610
        %v5612 = vlaneseq
        %v5613 = vshrl.u32 %v5612, 7
        %v5614 = vsub.s32 0, %v5613
        %v5615 = vrot.slane %v3875, %v5614
        %v5616 = vlaneseq
        %v5617 = vshrl.u32 %v5616, 7
        %v5618 = vsub.s32 0, %v5617
        %v5619 = vrot.slane %v3899, %v5618
        %v5620 = vlaneseq
        %v5621 = vshrl.u32 %v5620, 7
        %v5622 = vsub.s32 0, %v5621
        %v5623 = vrot.slane %v3913, %v5622
        %v5624 = vlaneseq
        %v5625 = vshrl.u32 %v5624, 7
        %v5626 = vsub.s32 0, %v5625
        %v5627 = vrot.slane %v3921, %v5626
        %v5628 = vlaneseq
        %v5629 = vshrl.u32 %v5628, 7
        %v5630 = vsub.s32 0, %v5629
        %v5631 = vrot.slane %v3923, %v5630
        %v5632 = vlaneseq
        %v5633 = vshrl.u32 %v5632, 7
        %v5634 = vsub.s32 0, %v5633
        %v5635 = vrot.slane %v3906, %v5634
        %v5636 = vlaneseq
        %v5637 = vshrl.u32 %v5636, 7
        %v5638 = vsub.s32 0, %v5637
        %v5639 = vrot.slane %v3920, %v5638
        %v5640 = vlaneseq
        %v5641 = vshrl.u32 %v5640, 7
        %v5642 = vsub.s32 0, %v5641
        %v5643 = vrot.slane %v3922, %v5642
        %v5644 = vlaneseq
        %v5645 = vshrl.u32 %v5644, 7
        %v5646 = vsub.s32 0, %v5645
        %v5647 = vrot.slane %v3924, %v5646
        %v5648 = vlaneseq
        %v5649 = vshrl.u32 %v5648, 7
        %v5650 = vsub.s32 0, %v5649
        %v5651 = vrot.slane %v3948, %v5650
        %v5652 = vlaneseq
        %v5653 = vshrl.u32 %v5652, 7
        %v5654 = vsub.s32 0, %v5653
        %v5655 = vrot.slane %v3962, %v5654
        %v5656 = vlaneseq
        %v5657 = vshrl.u32 %v5656, 7
        %v5658 = vsub.s32 0, %v5657
        %v5659 = vrot.slane %v3970, %v5658
        %v5660 = vlaneseq
        %v5661 = vshrl.u32 %v5660, 7
        %v5662 = vsub.s32 0, %v5661
        %v5663 = vrot.slane %v3972, %v5662
        %v5664 = vlaneseq
        %v5665 = vshrl.u32 %v5664, 7
        %v5666 = vsub.s32 0, %v5665
        %v5667 = vrot.slane %v3955, %v5666
        %v5668 = vlaneseq
        %v5669 = vshrl.u32 %v5668, 7
        %v5670 = vsub.s32 0, %v5669
        %v5671 = vrot.slane %v3969, %v5670
        %v5672 = vlaneseq
        %v5673 = vshrl.u32 %v5672, 7
        %v5674 = vsub.s32 0, %v5673
        %v5675 = vrot.slane %v3971, %v5674
        %v5676 = vlaneseq
        %v5677 = vshrl.u32 %v5676, 7
        %v5678 = vsub.s32 0, %v5677
        %v5679 = vrot.slane %v3973, %v5678
        %v5680 = vlaneseq
        %v5681 = vshrl.u32 %v5680, 7
        %v5682 = vsub.s32 0, %v5681
        %v5683 = vrot.slane %v3997, %v5682
        %v5684 = vlaneseq
        %v5685 = vshrl.u32 %v5684, 7
        %v5686 = vsub.s32 0, %v5685
        %v5687 = vrot.slane %v4011, %v5686
        %v5688 = vlaneseq
        %v5689 = vshrl.u32 %v5688, 7
        %v5690 = vsub.s32 0, %v5689
        %v5691 = vrot.slane %v4019, %v5690
        %v5692 = vlaneseq
        %v5693 = vshrl.u32 %v5692, 7
        %v5694 = vsub.s32 0, %v5693
        %v5695 = vrot.slane %v4021, %v5694
        %v5696 = vlaneseq
        %v5697 = vshrl.u32 %v5696, 7
        %v5698 = vsub.s32 0, %v5697
        %v5699 = vrot.slane %v4004, %v5698
        %v5700 = vlaneseq
        %v5701 = vshrl.u32 %v5700, 7
        %v5702 = vsub.s32 0, %v5701
        %v5703 = vrot.slane %v4018, %v5702
        %v5704 = vlaneseq
        %v5705 = vshrl.u32 %v5704, 7
        %v5706 = vsub.s32 0, %v5705
        %v5707 = vrot.slane %v4020, %v5706
        %v5708 = vlaneseq
        %v5709 = vshrl.u32 %v5708, 7
        %v5710 = vsub.s32 0, %v5709
        %v5711 = vrot.slane %v4022, %v5710
        %v5712 = vlaneseq
        %v5713 = vshrl.u32 %v5712, 7
        %v5714 = vsub.s32 0, %v5713
        %v5715 = vrot.slane %v4046, %v5714
        %v5716 = vlaneseq
        %v5717 = vshrl.u32 %v5716, 7
        %v5718 = vsub.s32 0, %v5717
        %v5719 = vrot.slane %v4060, %v5718
        %v5720 = vlaneseq
        %v5721 = vshrl.u32 %v5720, 7
        %v5722 = vsub.s32 0, %v5721
        %v5723 = vrot.slane %v4068, %v5722
        %v5724 = vlaneseq
        %v5725 = vshrl.u32 %v5724, 7
        %v5726 = vsub.s32 0, %v5725
        %v5727 = vrot.slane %v4070, %v5726
        %v5728 = vlaneseq
        %v5729 = vshrl.u32 %v5728, 7
        %v5730 = vsub.s32 0, %v5729
        %v5731 = vrot.slane %v4053, %v5730
        %v5732 = vlaneseq
        %v5733 = vshrl.u32 %v5732, 7
        %v5734 = vsub.s32 0, %v5733
        %v5735 = vrot.slane %v4067, %v5734
        %v5736 = vlaneseq
        %v5737 = vshrl.u32 %v5736, 7
        %v5738 = vsub.s32 0, %v5737
        %v5739 = vrot.slane %v4069, %v5738
        %v5740 = vlaneseq
        %v5741 = vshrl.u32 %v5740, 7
        %v5742 = vsub.s32 0, %v5741
        %v5743 = vrot.slane %v4071, %v5742
        %v5744 = vlaneseq
        %v5745 = vshrl.u32 %v5744, 7
        %v5746 = vsub.s32 0, %v5745
        %v5747 = vrot.slane %v4095, %v5746
        %v5748 = vlaneseq
        %v5749 = vshrl.u32 %v5748, 7
        %v5750 = vsub.s32 0, %v5749
        %v5751 = vrot.slane %v4109, %v5750
        %v5752 = vlaneseq
        %v5753 = vshrl.u32 %v5752, 7
        %v5754 = vsub.s32 0, %v5753
        %v5755 = vrot.slane %v4117, %v5754
        %v5756 = vlaneseq
        %v5757 = vshrl.u32 %v5756, 7
        %v5758 = vsub.s32 0, %v5757
        %v5759 = vrot.slane %v4119, %v5758
        %v5760 = vlaneseq
        %v5761 = vshrl.u32 %v5760, 7
        %v5762 = vsub.s32 0, %v5761
        %v5763 = vrot.slane %v4102, %v5762
        %v5764 = vlaneseq
        %v5765 = vshrl.u32 %v5764, 7
        %v5766 = vsub.s32 0, %v5765
        %v5767 = vrot.slane %v4116, %v5766
        %v5768 = vlaneseq
        %v5769 = vshrl.u32 %v5768, 7
        %v5770 = vsub.s32 0, %v5769
        %v5771 = vrot.slane %v4118, %v5770
        %v5772 = vlaneseq
        %v5773 = vshrl.u32 %v5772, 7
        %v5774 = vsub.s32 0, %v5773
        %v5775 = vrot.slane %v4120, %v5774
        %v5776 = vlaneseq
        %v5777 = vshrl.u32 %v5776, 7
        %v5778 = vsub.s32 0, %v5777
        %v5779 = vrot.slane %v4144, %v5778
        %v5780 = vlaneseq
        %v5781 = vshrl.u32 %v5780, 7
        %v5782 = vsub.s32 0, %v5781
        %v5783 = vrot.slane %v4158, %v5782
        %v5784 = vlaneseq
        %v5785 = vshrl.u32 %v5784, 7
        %v5786 = vsub.s32 0, %v5785
        %v5787 = vrot.slane %v4166, %v5786
        %v5788 = vlaneseq
        %v5789 = vshrl.u32 %v5788, 7
        %v5790 = vsub.s32 0, %v5789
        %v5791 = vrot.slane %v4168, %v5790
        %v5792 = vlaneseq
        %v5793 = vshrl.u32 %v5792, 7
        %v5794 = vsub.s32 0, %v5793
        %v5795 = vrot.slane %v4151, %v5794
        %v5796 = vlaneseq
        %v5797 = vshrl.u32 %v5796, 7
        %v5798 = vsub.s32 0, %v5797
        %v5799 = vrot.slane %v4165, %v5798
        %v5800 = vlaneseq
        %v5801 = vshrl.u32 %v5800, 7
        %v5802 = vsub.s32 0, %v5801
        %v5803 = vrot.slane %v4167, %v5802
        %v5804 = vlaneseq
        %v5805 = vshrl.u32 %v5804, 7
        %v5806 = vsub.s32 0, %v5805
        %v5807 = vrot.slane %v4169, %v5806
        %v5808 = vlaneseq
        %v5809 = vshrl.u32 %v5808, 7
        %v5810 = vsub.s32 0, %v5809
        %v5811 = vrot.slane %v4193, %v5810
        %v5812 = vlaneseq
        %v5813 = vshrl.u32 %v5812, 7
        %v5814 = vsub.s32 0, %v5813
        %v5815 = vrot.slane %v4207, %v5814
        %v5816 = vlaneseq
        %v5817 = vshrl.u32 %v5816, 7
        %v5818 = vsub.s32 0, %v5817
        %v5819 = vrot.slane %v4215, %v5818
        %v5820 = vlaneseq
        %v5821 = vshrl.u32 %v5820, 7
        %v5822 = vsub.s32 0, %v5821
        %v5823 = vrot.slane %v4217, %v5822
        %v5824 = vlaneseq
        %v5825 = vshrl.u32 %v5824, 7
        %v5826 = vsub.s32 0, %v5825
        %v5827 = vrot.slane %v4200, %v5826
        %v5828 = vlaneseq
        %v5829 = vshrl.u32 %v5828, 7
        %v5830 = vsub.s32 0, %v5829
        %v5831 = vrot.slane %v4214, %v5830
        %v5832 = vlaneseq
        %v5833 = vshrl.u32 %v5832, 7
        %v5834 = vsub.s32 0, %v5833
        %v5835 = vrot.slane %v4216, %v5834
        %v5836 = vlaneseq
        %v5837 = vshrl.u32 %v5836, 7
        %v5838 = vsub.s32 0, %v5837
        %v5839 = vrot.slane %v4218, %v5838
        %v5840 = vlaneseq
        %v5841 = vshrl.u32 %v5840, 7
        %v5842 = vsub.s32 0, %v5841
        %v5843 = vrot.slane %v4242, %v5842
        %v5844 = vlaneseq
        %v5845 = vshrl.u32 %v5844, 7
        %v5846 = vsub.s32 0, %v5845
        %v5847 = vrot.slane %v4256, %v5846
        %v5848 = vlaneseq
        %v5849 = vshrl.u32 %v5848, 7
        %v5850 = vsub.s32 0, %v5849
        %v5851 = vrot.slane %v4264, %v5850
        %v5852 = vlaneseq
        %v5853 = vshrl.u32 %v5852, 7
        %v5854 = vsub.s32 0, %v5853
        %v5855 = vrot.slane %v4266, %v5854
        %v5856 = vlaneseq
        %v5857 = vshrl.u32 %v5856, 7
        %v5858 = vsub.s32 0, %v5857
        %v5859 = vrot.slane %v4249, %v5858
        %v5860 = vlaneseq
        %v5861 = vshrl.u32 %v5860, 7
        %v5862 = vsub.s32 0, %v5861
        %v5863 = vrot.slane %v4263, %v5862
        %v5864 = vlaneseq
        %v5865 = vshrl.u32 %v5864, 7
        %v5866 = vsub.s32 0, %v5865
        %v5867 = vrot.slane %v4265, %v5866
        %v5868 = vlaneseq
        %v5869 = vshrl.u32 %v5868, 7
        %v5870 = vsub.s32 0, %v5869
        %v5871 = vrot.slane %v4267, %v5870
        %v5872 = vlaneseq
        %v5873 = vshrl.u32 %v5872, 7
        %v5874 = vsub.s32 0, %v5873
        %v5875 = vrot.slane %v4291, %v5874
        %v5876 = vlaneseq
        %v5877 = vshrl.u32 %v5876, 7
        %v5878 = vsub.s32 0, %v5877
        %v5879 = vrot.slane %v4305, %v5878
        %v5880 = vlaneseq
        %v5881 = vshrl.u32 %v5880, 7
        %v5882 = vsub.s32 0, %v5881
        %v5883 = vrot.slane %v4313, %v5882
        %v5884 = vlaneseq
        %v5885 = vshrl.u32 %v5884, 7
        %v5886 = vsub.s32 0, %v5885
        %v5887 = vrot.slane %v4315, %v5886
        %v5888 = vlaneseq
        %v5889 = vshrl.u32 %v5888, 7
        %v5890 = vsub.s32 0, %v5889
        %v5891 = vrot.slane %v4298, %v5890
        %v5892 = vlaneseq
        %v5893 = vshrl.u32 %v5892, 7
        %v5894 = vsub.s32 0, %v5893
        %v5895 = vrot.slane %v4312, %v5894
        %v5896 = vlaneseq
        %v5897 = vshrl.u32 %v5896, 7
        %v5898 = vsub.s32 0, %v5897
        %v5899 = vrot.slane %v4314, %v5898
        %v5900 = vlaneseq
        %v5901 = vshrl.u32 %v5900, 7
        %v5902 = vsub.s32 0, %v5901
        %v5903 = vrot.slane %v4316, %v5902
        %v5904 = vlaneseq
        %v5905 = vshrl.u32 %v5904, 7
        %v5906 = vsub.s32 0, %v5905
        %v5907 = vrot.slane %v4340, %v5906
        %v5908 = vlaneseq
        %v5909 = vshrl.u32 %v5908, 7
        %v5910 = vsub.s32 0, %v5909
        %v5911 = vrot.slane %v4354, %v5910
        %v5912 = vlaneseq
        %v5913 = vshrl.u32 %v5912, 7
        %v5914 = vsub.s32 0, %v5913
        %v5915 = vrot.slane %v4362, %v5914
        %v5916 = vlaneseq
        %v5917 = vshrl.u32 %v5916, 7
        %v5918 = vsub.s32 0, %v5917
        %v5919 = vrot.slane %v4364, %v5918
        %v5920 = vlaneseq
        %v5921 = vshrl.u32 %v5920, 7
        %v5922 = vsub.s32 0, %v5921
        %v5923 = vrot.slane %v4347, %v5922
        %v5924 = vlaneseq
        %v5925 = vshrl.u32 %v5924, 7
        %v5926 = vsub.s32 0, %v5925
        %v5927 = vrot.slane %v4361, %v5926
        %v5928 = vlaneseq
        %v5929 = vshrl.u32 %v5928, 7
        %v5930 = vsub.s32 0, %v5929
        %v5931 = vrot.slane %v4363, %v5930
        %v5932 = vlaneseq
        %v5933 = vshrl.u32 %v5932, 7
        %v5934 = vsub.s32 0, %v5933
        %v5935 = vrot.slane %v4365, %v5934
        %v5936 = vlaneseq
        %v5937 = vshrl.u32 %v5936, 7
        %v5938 = vsub.s32 0, %v5937
        %v5939 = vrot.slane %v4389, %v5938
        %v5940 = vlaneseq
        %v5941 = vshrl.u32 %v5940, 7
        %v5942 = vsub.s32 0, %v5941
        %v5943 = vrot.slane %v4403, %v5942
        %v5944 = vlaneseq
        %v5945 = vshrl.u32 %v5944, 7
        %v5946 = vsub.s32 0, %v5945
        %v5947 = vrot.slane %v4411, %v5946
        %v5948 = vlaneseq
        %v5949 = vshrl.u32 %v5948, 7
        %v5950 = vsub.s32 0, %v5949
        %v5951 = vrot.slane %v4413, %v5950
        %v5952 = vlaneseq
        %v5953 = vshrl.u32 %v5952, 7
        %v5954 = vsub.s32 0, %v5953
        %v5955 = vrot.slane %v4396, %v5954
        %v5956 = vlaneseq
        %v5957 = vshrl.u32 %v5956, 7
        %v5958 = vsub.s32 0, %v5957
        %v5959 = vrot.slane %v4410, %v5958
        %v5960 = vlaneseq
        %v5961 = vshrl.u32 %v5960, 7
        %v5962 = vsub.s32 0, %v5961
        %v5963 = vrot.slane %v4412, %v5962
        %v5964 = vlaneseq
        %v5965 = vshrl.u32 %v5964, 7
        %v5966 = vsub.s32 0, %v5965
        %v5967 = vrot.slane %v4414, %v5966
        %v5968 = vlaneseq
        %v5969 = vshrl.u32 %v5968, 7
        %v5970 = vsub.s32 0, %v5969
        %v5971 = vrot.slane %v4438, %v5970
        %v5972 = vlaneseq
        %v5973 = vshrl.u32 %v5972, 7
        %v5974 = vsub.s32 0, %v5973
        %v5975 = vrot.slane %v4452, %v5974
        %v5976 = vlaneseq
        %v5977 = vshrl.u32 %v5976, 7
        %v5978 = vsub.s32 0, %v5977
        %v5979 = vrot.slane %v4460, %v5978
        %v5980 = vlaneseq
        %v5981 = vshrl.u32 %v5980, 7
        %v5982 = vsub.s32 0, %v5981
        %v5983 = vrot.slane %v4462, %v5982
        %v5984 = vlaneseq
        %v5985 = vshrl.u32 %v5984, 7
        %v5986 = vsub.s32 0, %v5985
        %v5987 = vrot.slane %v4445, %v5986
        %v5988 = vlaneseq
        %v5989 = vshrl.u32 %v5988, 7
        %v5990 = vsub.s32 0, %v5989
        %v5991 = vrot.slane %v4459, %v5990
        %v5992 = vlaneseq
        %v5993 = vshrl.u32 %v5992, 7
        %v5994 = vsub.s32 0, %v5993
        %v5995 = vrot.slane %v4461, %v5994
        %v5996 = vlaneseq
        %v5997 = vshrl.u32 %v5996, 7
        %v5998 = vsub.s32 0, %v5997
        %v5999 = vrot.slane %v4463, %v5998
        %v6128 = vmul.f32 %v5491, %v4471
        %v6129 = vmul.f32 %v5495, %v4479
        %v6130 = vmul.f32 %v5499, %v4487
        %v6131 = vmul.f32 %v5503, %v4495
        %v6132 = vmul.f32 %v5507, %v4503
        %v6133 = vmul.f32 %v5511, %v4511
        %v6134 = vmul.f32 %v5515, %v4519
        %v6135 = vmul.f32 %v5519, %v4527
        %v6136 = vmul.f32 %v5523, %v4535
        %v6137 = vmul.f32 %v5527, %v4543
        %v6138 = vmul.f32 %v5531, %v4551
        %v6139 = vmul.f32 %v5535, %v4559
        %v6140 = vmul.f32 %v5539, %v4567
        %v6141 = vmul.f32 %v5543, %v4575
        %v6142 = vmul.f32 %v5547, %v4583
        %v6143 = vmul.f32 %v5551, %v4591
        %v6144 = vmul.f32 %v5555, %v4599
        %v6145 = vmul.f32 %v5559, %v4607
        %v6146 = vmul.f32 %v5563, %v4615
        %v6147 = vmul.f32 %v5567, %v4623
        %v6148 = vmul.f32 %v5571, %v4631
        %v6149 = vmul.f32 %v5575, %v4639
        %v6150 = vmul.f32 %v5579, %v4647
        %v6151 = vmul.f32 %v5583, %v4655
        %v6152 = vmul.f32 %v5587, %v4663
        %v6153 = vmul.f32 %v5591, %v4671
        %v6154 = vmul.f32 %v5595, %v4679
        %v6155 = vmul.f32 %v5599, %v4687
        %v6156 = vmul.f32 %v5603, %v4695
        %v6157 = vmul.f32 %v5607, %v4703
        %v6158 = vmul.f32 %v5611, %v4711
        %v6159 = vmul.f32 %v5615, %v4719
        %v6160 = vmul.f32 %v5619, %v4727
        %v6161 = vmul.f32 %v5623, %v4735
        %v6162 = vmul.f32 %v5627, %v4743
        %v6163 = vmul.f32 %v5631, %v4751
        %v6164 = vmul.f32 %v5635, %v4759
        %v6165 = vmul.f32 %v5639, %v4767
        %v6166 = vmul.f32 %v5643, %v4775
        %v6167 = vmul.f32 %v5647, %v4783
        %v6168 = vmul.f32 %v5651, %v4791
        %v6169 = vmul.f32 %v5655, %v4799
        %v6170 = vmul.f32 %v5659, %v4807
        %v6171 = vmul.f32 %v5663, %v4815
        %v6172 = vmul.f32 %v5667, %v4823
        %v6173 = vmul.f32 %v5671, %v4831
        %v6174 = vmul.f32 %v5675, %v4839
        %v6175 = vmul.f32 %v5679, %v4847
        %v6176 = vmul.f32 %v5683, %v4855
        %v6177 = vmul.f32 %v5687, %v4863
        %v6178 = vmul.f32 %v5691, %v4871
        %v6179 = vmul.f32 %v5695, %v4879
        %v6180 = vmul.f32 %v5699, %v4887
        %v6181 = vmul.f32 %v5703, %v4895
        %v6182 = vmul.f32 %v5707, %v4903
        %v6183 = vmul.f32 %v5711, %v4911
        %v6184 = vmul.f32 %v5715, %v4919
        %v6185 = vmul.f32 %v5719, %v4927
        %v6186 = vmul.f32 %v5723, %v4935
        %v6187 = vmul.f32 %v5727, %v4943
        %v6188 = vmul.f32 %v5731, %v4951
        %v6189 = vmul.f32 %v5735, %v4959
        %v6190 = vmul.f32 %v5739, %v4967
        %v6191 = vmul.f32 %v5743, %v4975
        %v6192 = vmul.f32 %v5747, %v4983
        %v6193 = vmul.f32 %v5751, %v4991
        %v6194 = vmul.f32 %v5755, %v4999
        %v6195 = vmul.f32 %v5759, %v5007
        %v6196 = vmul.f32 %v5763, %v5015
        %v6197 = vmul.f32 %v5767, %v5023
        %v6198 = vmul.f32 %v5771, %v5031
        %v6199 = vmul.f32 %v5775, %v5039
        %v6200 = vmul.f32 %v5779, %v5047
        %v6201 = vmul.f32 %v5783, %v5055
        %v6202 = vmul.f32 %v5787, %v5063
        %v6203 = vmul.f32 %v5791, %v5071
        %v6204 = vmul.f32 %v5795, %v5079
        %v6205 = vmul.f32 %v5799, %v5087
        %v6206 = vmul.f32 %v5803, %v5095
        %v6207 = vmul.f32 %v5807, %v5103
        %v6208 = vmul.f32 %v5811, %v5111
        %v6209 = vmul.f32 %v5815, %v5119
        %v6210 = vmul.f32 %v5819, %v5127
        %v6211 = vmul.f32 %v5823, %v5135
        %v6212 = vmul.f32 %v5827, %v5143
        %v6213 = vmul.f32 %v5831, %v5151
        %v6214 = vmul.f32 %v5835, %v5159
        %v6215 = vmul.f32 %v5839, %v5167
        %v6216 = vmul.f32 %v5843, %v5175
        %v6217 = vmul.f32 %v5847, %v5183
        %v6218 = vmul.f32 %v5851, %v5191
        %v6219 = vmul.f32 %v5855, %v5199
        %v6220 = vmul.f32 %v5859, %v5207
        %v6221 = vmul.f32 %v5863, %v5215
        %v6222 = vmul.f32 %v5867, %v5223
        %v6223 = vmul.f32 %v5871, %v5231
        %v6224 = vmul.f32 %v5875, %v5239
        %v6225 = vmul.f32 %v5879, %v5247
        %v6226 = vmul.f32 %v5883, %v5255
        %v6227 = vmul.f32 %v5887, %v5263
        %v6228 = vmul.f32 %v5891, %v5271
        %v6229 = vmul.f32 %v5895, %v5279
        %v6230 = vmul.f32 %v5899, %v5287
        %v6231 = vmul.f32 %v5903, %v5295
        %v6232 = vmul.f32 %v5907, %v5303
        %v6233 = vmul.f32 %v5911, %v5311
        %v6234 = vmul.f32 %v5915, %v5319
        %v6235 = vmul.f32 %v5919, %v5327
        %v6236 = vmul.f32 %v5923, %v5335
        %v6237 = vmul.f32 %v5927, %v5343
        %v6238 = vmul.f32 %v5931, %v5351
        %v6239 = vmul.f32 %v5935, %v5359
        %v6240 = vmul.f32 %v5939, %v5367
        %v6241 = vmul.f32 %v5943, %v5375
        %v6242 = vmul.f32 %v5947, %v5383
        %v6243 = vmul.f32 %v5951, %v5391
        %v6244 = vmul.f32 %v5955, %v5399
        %v6245 = vmul.f32 %v5959, %v5407
        %v6246 = vmul.f32 %v5963, %v5415
        %v6247 = vmul.f32 %v5967, %v5423
        %v6248 = vmul.f32 %v5971, %v5431
        %v6249 = vmul.f32 %v5975, %v5439
        %v6250 = vmul.f32 %v5979, %v5447
        %v6251 = vmul.f32 %v5983, %v5455
        %v6252 = vmul.f32 %v5987, %v5463
        %v6253 = vmul.f32 %v5991, %v5471
        %v6254 = vmul.f32 %v5995, %v5479
        %v6255 = vmul.f32 %v5999, %v5487
        %6256 = vst.msk [vmem:[#allocation7] sm:$0xff] %vm739, %v6128
        %6257 = vst.msk [vmem:[#allocation7 + $0x8] sm:$0xff] %vm739, %v6129
        %6258 = vst.msk [vmem:[#allocation7 + $0x10] sm:$0xff] %vm739, %v6130
        %6259 = vst.msk [vmem:[#allocation7 + $0x18] sm:$0xff] %vm739, %v6131
        %6260 = vst.msk [vmem:[#allocation7 + $0x20] sm:$0xff] %vm739, %v6132
        %6261 = vst.msk [vmem:[#allocation7 + $0x28] sm:$0xff] %vm739, %v6133
        %6262 = vst.msk [vmem:[#allocation7 + $0x30] sm:$0xff] %vm739, %v6134
        %6263 = vst.msk [vmem:[#allocation7 + $0x38] sm:$0xff] %vm739, %v6135
        %6264 = vst.msk [vmem:[#allocation7 + $0x40] sm:$0xff] %vm739, %v6136
        %6265 = vst.msk [vmem:[#allocation7 + $0x48] sm:$0xff] %vm739, %v6137
        %6266 = vst.msk [vmem:[#allocation7 + $0x50] sm:$0xff] %vm739, %v6138
        %6267 = vst.msk [vmem:[#allocation7 + $0x58] sm:$0xff] %vm739, %v6139
        %6268 = vst.msk [vmem:[#allocation7 + $0x60] sm:$0xff] %vm739, %v6140
        %6269 = vst.msk [vmem:[#allocation7 + $0x68] sm:$0xff] %vm739, %v6141
        %6270 = vst.msk [vmem:[#allocation7 + $0x70] sm:$0xff] %vm739, %v6142
        %6271 = vst.msk [vmem:[#allocation7 + $0x78] sm:$0xff] %vm739, %v6143
        %6272 = vst.msk [vmem:[#allocation7 + $0x80] sm:$0xff] %vm739, %v6144
        %6273 = vst.msk [vmem:[#allocation7 + $0x88] sm:$0xff] %vm739, %v6145
        %6274 = vst.msk [vmem:[#allocation7 + $0x90] sm:$0xff] %vm739, %v6146
        %6275 = vst.msk [vmem:[#allocation7 + $0x98] sm:$0xff] %vm739, %v6147
        %6276 = vst.msk [vmem:[#allocation7 + $0xa0] sm:$0xff] %vm739, %v6148
        %6277 = vst.msk [vmem:[#allocation7 + $0xa8] sm:$0xff] %vm739, %v6149
        %6278 = vst.msk [vmem:[#allocation7 + $0xb0] sm:$0xff] %vm739, %v6150
        %6279 = vst.msk [vmem:[#allocation7 + $0xb8] sm:$0xff] %vm739, %v6151
        %6280 = vst.msk [vmem:[#allocation7 + $0xc0] sm:$0xff] %vm739, %v6152
        %6281 = vst.msk [vmem:[#allocation7 + $0xc8] sm:$0xff] %vm739, %v6153
        %6282 = vst.msk [vmem:[#allocation7 + $0xd0] sm:$0xff] %vm739, %v6154
        %6283 = vst.msk [vmem:[#allocation7 + $0xd8] sm:$0xff] %vm739, %v6155
        %6284 = vst.msk [vmem:[#allocation7 + $0xe0] sm:$0xff] %vm739, %v6156
        %6285 = vst.msk [vmem:[#allocation7 + $0xe8] sm:$0xff] %vm739, %v6157
        %6286 = vst.msk [vmem:[#allocation7 + $0xf0] sm:$0xff] %vm739, %v6158
        %6287 = vst.msk [vmem:[#allocation7 + $0xf8] sm:$0xff] %vm739, %v6159
        %6288 = vst.msk [vmem:[#allocation7 + $0x100] sm:$0xff] %vm739, %v6160
        %6289 = vst.msk [vmem:[#allocation7 + $0x108] sm:$0xff] %vm739, %v6161
        %6290 = vst.msk [vmem:[#allocation7 + $0x110] sm:$0xff] %vm739, %v6162
        %6291 = vst.msk [vmem:[#allocation7 + $0x118] sm:$0xff] %vm739, %v6163
        %6292 = vst.msk [vmem:[#allocation7 + $0x120] sm:$0xff] %vm739, %v6164
        %6293 = vst.msk [vmem:[#allocation7 + $0x128] sm:$0xff] %vm739, %v6165
        %6294 = vst.msk [vmem:[#allocation7 + $0x130] sm:$0xff] %vm739, %v6166
        %6295 = vst.msk [vmem:[#allocation7 + $0x138] sm:$0xff] %vm739, %v6167
        %6296 = vst.msk [vmem:[#allocation7 + $0x140] sm:$0xff] %vm739, %v6168
        %6297 = vst.msk [vmem:[#allocation7 + $0x148] sm:$0xff] %vm739, %v6169
        %6298 = vst.msk [vmem:[#allocation7 + $0x150] sm:$0xff] %vm739, %v6170
        %6299 = vst.msk [vmem:[#allocation7 + $0x158] sm:$0xff] %vm739, %v6171
        %6300 = vst.msk [vmem:[#allocation7 + $0x160] sm:$0xff] %vm739, %v6172
        %6301 = vst.msk [vmem:[#allocation7 + $0x168] sm:$0xff] %vm739, %v6173
        %6302 = vst.msk [vmem:[#allocation7 + $0x170] sm:$0xff] %vm739, %v6174
        %6303 = vst.msk [vmem:[#allocation7 + $0x178] sm:$0xff] %vm739, %v6175
        %6304 = vst.msk [vmem:[#allocation7 + $0x180] sm:$0xff] %vm739, %v6176
        %6305 = vst.msk [vmem:[#allocation7 + $0x188] sm:$0xff] %vm739, %v6177
        %6306 = vst.msk [vmem:[#allocation7 + $0x190] sm:$0xff] %vm739, %v6178
        %6307 = vst.msk [vmem:[#allocation7 + $0x198] sm:$0xff] %vm739, %v6179
        %6308 = vst.msk [vmem:[#allocation7 + $0x1a0] sm:$0xff] %vm739, %v6180
        %6309 = vst.msk [vmem:[#allocation7 + $0x1a8] sm:$0xff] %vm739, %v6181
        %6310 = vst.msk [vmem:[#allocation7 + $0x1b0] sm:$0xff] %vm739, %v6182
        %6311 = vst.msk [vmem:[#allocation7 + $0x1b8] sm:$0xff] %vm739, %v6183
        %6312 = vst.msk [vmem:[#allocation7 + $0x1c0] sm:$0xff] %vm739, %v6184
        %6313 = vst.msk [vmem:[#allocation7 + $0x1c8] sm:$0xff] %vm739, %v6185
        %6314 = vst.msk [vmem:[#allocation7 + $0x1d0] sm:$0xff] %vm739, %v6186
        %6315 = vst.msk [vmem:[#allocation7 + $0x1d8] sm:$0xff] %vm739, %v6187
        %6316 = vst.msk [vmem:[#allocation7 + $0x1e0] sm:$0xff] %vm739, %v6188
        %6317 = vst.msk [vmem:[#allocation7 + $0x1e8] sm:$0xff] %vm739, %v6189
        %6318 = vst.msk [vmem:[#allocation7 + $0x1f0] sm:$0xff] %vm739, %v6190
        %6319 = vst.msk [vmem:[#allocation7 + $0x1f8] sm:$0xff] %vm739, %v6191
        %6320 = vst.msk [vmem:[#allocation7 + $0x200] sm:$0xff] %vm739, %v6192
        %6321 = vst.msk [vmem:[#allocation7 + $0x208] sm:$0xff] %vm739, %v6193
        %6322 = vst.msk [vmem:[#allocation7 + $0x210] sm:$0xff] %vm739, %v6194
        %6323 = vst.msk [vmem:[#allocation7 + $0x218] sm:$0xff] %vm739, %v6195
        %6324 = vst.msk [vmem:[#allocation7 + $0x220] sm:$0xff] %vm739, %v6196
        %6325 = vst.msk [vmem:[#allocation7 + $0x228] sm:$0xff] %vm739, %v6197
        %6326 = vst.msk [vmem:[#allocation7 + $0x230] sm:$0xff] %vm739, %v6198
        %6327 = vst.msk [vmem:[#allocation7 + $0x238] sm:$0xff] %vm739, %v6199
        %6328 = vst.msk [vmem:[#allocation7 + $0x240] sm:$0xff] %vm739, %v6200
        %6329 = vst.msk [vmem:[#allocation7 + $0x248] sm:$0xff] %vm739, %v6201
        %6330 = vst.msk [vmem:[#allocation7 + $0x250] sm:$0xff] %vm739, %v6202
        %6331 = vst.msk [vmem:[#allocation7 + $0x258] sm:$0xff] %vm739, %v6203
        %6332 = vst.msk [vmem:[#allocation7 + $0x260] sm:$0xff] %vm739, %v6204
        %6333 = vst.msk [vmem:[#allocation7 + $0x268] sm:$0xff] %vm739, %v6205
        %6334 = vst.msk [vmem:[#allocation7 + $0x270] sm:$0xff] %vm739, %v6206
        %6335 = vst.msk [vmem:[#allocation7 + $0x278] sm:$0xff] %vm739, %v6207
        %6336 = vst.msk [vmem:[#allocation7 + $0x280] sm:$0xff] %vm739, %v6208
        %6337 = vst.msk [vmem:[#allocation7 + $0x288] sm:$0xff] %vm739, %v6209
        %6338 = vst.msk [vmem:[#allocation7 + $0x290] sm:$0xff] %vm739, %v6210
        %6339 = vst.msk [vmem:[#allocation7 + $0x298] sm:$0xff] %vm739, %v6211
        %6340 = vst.msk [vmem:[#allocation7 + $0x2a0] sm:$0xff] %vm739, %v6212
        %6341 = vst.msk [vmem:[#allocation7 + $0x2a8] sm:$0xff] %vm739, %v6213
        %6342 = vst.msk [vmem:[#allocation7 + $0x2b0] sm:$0xff] %vm739, %v6214
        %6343 = vst.msk [vmem:[#allocation7 + $0x2b8] sm:$0xff] %vm739, %v6215
        %6344 = vst.msk [vmem:[#allocation7 + $0x2c0] sm:$0xff] %vm739, %v6216
        %6345 = vst.msk [vmem:[#allocation7 + $0x2c8] sm:$0xff] %vm739, %v6217
        %6346 = vst.msk [vmem:[#allocation7 + $0x2d0] sm:$0xff] %vm739, %v6218
        %6347 = vst.msk [vmem:[#allocation7 + $0x2d8] sm:$0xff] %vm739, %v6219
        %6348 = vst.msk [vmem:[#allocation7 + $0x2e0] sm:$0xff] %vm739, %v6220
        %6349 = vst.msk [vmem:[#allocation7 + $0x2e8] sm:$0xff] %vm739, %v6221
        %6350 = vst.msk [vmem:[#allocation7 + $0x2f0] sm:$0xff] %vm739, %v6222
        %6351 = vst.msk [vmem:[#allocation7 + $0x2f8] sm:$0xff] %vm739, %v6223
        %6352 = vst.msk [vmem:[#allocation7 + $0x300] sm:$0xff] %vm739, %v6224
        %6353 = vst.msk [vmem:[#allocation7 + $0x308] sm:$0xff] %vm739, %v6225
        %6354 = vst.msk [vmem:[#allocation7 + $0x310] sm:$0xff] %vm739, %v6226
        %6355 = vst.msk [vmem:[#allocation7 + $0x318] sm:$0xff] %vm739, %v6227
        %6356 = vst.msk [vmem:[#allocation7 + $0x320] sm:$0xff] %vm739, %v6228
        %6357 = vst.msk [vmem:[#allocation7 + $0x328] sm:$0xff] %vm739, %v6229
        %6358 = vst.msk [vmem:[#allocation7 + $0x330] sm:$0xff] %vm739, %v6230
        %6359 = vst.msk [vmem:[#allocation7 + $0x338] sm:$0xff] %vm739, %v6231
        %6360 = vst.msk [vmem:[#allocation7 + $0x340] sm:$0xff] %vm739, %v6232
        %6361 = vst.msk [vmem:[#allocation7 + $0x348] sm:$0xff] %vm739, %v6233
        %6362 = vst.msk [vmem:[#allocation7 + $0x350] sm:$0xff] %vm739, %v6234
        %6363 = vst.msk [vmem:[#allocation7 + $0x358] sm:$0xff] %vm739, %v6235
        %6364 = vst.msk [vmem:[#allocation7 + $0x360] sm:$0xff] %vm739, %v6236
        %6365 = vst.msk [vmem:[#allocation7 + $0x368] sm:$0xff] %vm739, %v6237
        %6366 = vst.msk [vmem:[#allocation7 + $0x370] sm:$0xff] %vm739, %v6238
        %6367 = vst.msk [vmem:[#allocation7 + $0x378] sm:$0xff] %vm739, %v6239
        %6368 = vst.msk [vmem:[#allocation7 + $0x380] sm:$0xff] %vm739, %v6240
        %6369 = vst.msk [vmem:[#allocation7 + $0x388] sm:$0xff] %vm739, %v6241
        %6370 = vst.msk [vmem:[#allocation7 + $0x390] sm:$0xff] %vm739, %v6242
        %6371 = vst.msk [vmem:[#allocation7 + $0x398] sm:$0xff] %vm739, %v6243
        %6372 = vst.msk [vmem:[#allocation7 + $0x3a0] sm:$0xff] %vm739, %v6244
        %6373 = vst.msk [vmem:[#allocation7 + $0x3a8] sm:$0xff] %vm739, %v6245
        %6374 = vst.msk [vmem:[#allocation7 + $0x3b0] sm:$0xff] %vm739, %v6246
        %6375 = vst.msk [vmem:[#allocation7 + $0x3b8] sm:$0xff] %vm739, %v6247
        %6376 = vst.msk [vmem:[#allocation7 + $0x3c0] sm:$0xff] %vm739, %v6248
        %6377 = vst.msk [vmem:[#allocation7 + $0x3c8] sm:$0xff] %vm739, %v6249
        %6378 = vst.msk [vmem:[#allocation7 + $0x3d0] sm:$0xff] %vm739, %v6250
        %6379 = vst.msk [vmem:[#allocation7 + $0x3d8] sm:$0xff] %vm739, %v6251
        %6380 = vst.msk [vmem:[#allocation7 + $0x3e0] sm:$0xff] %vm739, %v6252
        %6381 = vst.msk [vmem:[#allocation7 + $0x3e8] sm:$0xff] %vm739, %v6253
        %6382 = vst.msk [vmem:[#allocation7 + $0x3f0] sm:$0xff] %vm739, %v6254
        %6383 = vst.msk [vmem:[#allocation7 + $0x3f8] sm:$0xff] %vm739, %v6255
        %v6384 = vld [vmem:[#allocation3] sm:$0xff]
        %v6385 = vld [vmem:[#allocation3 + $0x8] sm:$0xff]
        %v6386 = vld [vmem:[#allocation3 + $0x10] sm:$0xff]
        %v6387 = vld [vmem:[#allocation3 + $0x18] sm:$0xff]
        %v6388 = vld [vmem:[#allocation3 + $0x20] sm:$0xff]
        %v6389 = vld [vmem:[#allocation3 + $0x28] sm:$0xff]
        %v6390 = vld [vmem:[#allocation3 + $0x30] sm:$0xff]
        %v6391 = vld [vmem:[#allocation3 + $0x38] sm:$0xff]
        loop: start=0, step=1, limit=16
        $region69: #{tpu_custom_call.1} parent=55 // loop_pre_header
          _
        $region70: #{tpu_custom_call.1} parent=55 // loop_header
          %s6393 = sphi 0, %s6397
          %p6394 = scmp.ge.s32.totalorder %s6393, 16
          %v6398 = vphi %v6384, %v6434
          %v6399 = vphi %v6385, %v6435
          %v6400 = vphi %v6386, %v6436
          %v6401 = vphi %v6387, %v6437
          %v6402 = vphi %v6388, %v6438
          %v6403 = vphi %v6389, %v6439
          %v6404 = vphi %v6390, %v6440
          %v6405 = vphi %v6391, %v6441
        $region71: #{tpu_custom_call.1} parent=55 // loop_header_branch
          %6396 = sbr.rel (%p6394) target = $region75
        $region72: #{tpu_custom_call.1} parent=55 // loop_body
          %s6406 = smul.u32 %s6393, 8
          %s6407 = smul.u32 %s6406, 8
          %s6408 = scalar_lea.vmem [#allocation6], %s6407
          %v6409 = vld [vmem:[%s6408] sm:$0xff]
          %v6410 = vld [vmem:[%s6408 + $0x8] sm:$0xff]
          %v6411 = vld [vmem:[%s6408 + $0x10] sm:$0xff]
          %v6412 = vld [vmem:[%s6408 + $0x18] sm:$0xff]
          %v6413 = vld [vmem:[%s6408 + $0x20] sm:$0xff]
          %v6414 = vld [vmem:[%s6408 + $0x28] sm:$0xff]
          %v6415 = vld [vmem:[%s6408 + $0x30] sm:$0xff]
          %v6416 = vld [vmem:[%s6408 + $0x38] sm:$0xff]
          %v6417 = vmul.f32 %v6409, %v6398
          %v6418 = vmul.f32 %v6410, %v6399
          %v6419 = vmul.f32 %v6411, %v6400
          %v6420 = vmul.f32 %v6412, %v6401
          %v6421 = vmul.f32 %v6413, %v6402
          %v6422 = vmul.f32 %v6414, %v6403
          %v6423 = vmul.f32 %v6415, %v6404
          %v6424 = vmul.f32 %v6416, %v6405
          %s6425 = scalar_lea.vmem [#allocation7], %s6407
          %v6426 = vld [vmem:[%s6425] sm:$0xff]
          %v6427 = vld [vmem:[%s6425 + $0x8] sm:$0xff]
          %v6428 = vld [vmem:[%s6425 + $0x10] sm:$0xff]
          %v6429 = vld [vmem:[%s6425 + $0x18] sm:$0xff]
          %v6430 = vld [vmem:[%s6425 + $0x20] sm:$0xff]
          %v6431 = vld [vmem:[%s6425 + $0x28] sm:$0xff]
          %v6432 = vld [vmem:[%s6425 + $0x30] sm:$0xff]
          %v6433 = vld [vmem:[%s6425 + $0x38] sm:$0xff]
          %v6434 = vadd.f32 %v6417, %v6426
          %v6435 = vadd.f32 %v6418, %v6427
          %v6436 = vadd.f32 %v6419, %v6428
          %v6437 = vadd.f32 %v6420, %v6429
          %v6438 = vadd.f32 %v6421, %v6430
          %v6439 = vadd.f32 %v6422, %v6431
          %v6440 = vadd.f32 %v6423, %v6432
          %v6441 = vadd.f32 %v6424, %v6433
          %s6442 = scalar_lea.vmem [#allocation8], %s6406
          %v6443 = vld [vmem:[%s6442] sm:$0xff]
          %v6444 = vlaneseq
          %v6445 = vshrl.u32 %v6444, 7
          %v6446 = vsub.s32 0, %v6445
          %v6447 = vrot.slane %v6443, %v6446
          %6449 = vbcast.lane.b32.xlu0 %v6447, 256
          %v6450 = vpop.permute.xlu0 %6449
          %v6451 = vlaneseq
          %v6452 = vshrl.u32 %v6451, 7
          %v6453 = vsub.s32 1, %v6452
          %v6454 = vrot.slane %v6443, %v6453
          %6456 = vbcast.lane.b32.xlu0 %v6454, 256
          %v6457 = vpop.permute.xlu0 %6456
          %v6458 = vlaneseq
          %v6459 = vshrl.u32 %v6458, 7
          %v6460 = vsub.s32 2, %v6459
          %v6461 = vrot.slane %v6443, %v6460
          %6463 = vbcast.lane.b32.xlu0 %v6461, 256
          %v6464 = vpop.permute.xlu0 %6463
          %v6465 = vlaneseq
          %v6466 = vshrl.u32 %v6465, 7
          %v6467 = vsub.s32 3, %v6466
          %v6468 = vrot.slane %v6443, %v6467
          %6470 = vbcast.lane.b32.xlu0 %v6468, 256
          %v6471 = vpop.permute.xlu0 %6470
          %v6472 = vlaneseq
          %v6473 = vshrl.u32 %v6472, 7
          %v6474 = vsub.s32 4, %v6473
          %v6475 = vrot.slane %v6443, %v6474
          %6477 = vbcast.lane.b32.xlu0 %v6475, 256
          %v6478 = vpop.permute.xlu0 %6477
          %v6479 = vlaneseq
          %v6480 = vshrl.u32 %v6479, 7
          %v6481 = vsub.s32 5, %v6480
          %v6482 = vrot.slane %v6443, %v6481
          %6484 = vbcast.lane.b32.xlu0 %v6482, 256
          %v6485 = vpop.permute.xlu0 %6484
          %v6486 = vlaneseq
          %v6487 = vshrl.u32 %v6486, 7
          %v6488 = vsub.s32 6, %v6487
          %v6489 = vrot.slane %v6443, %v6488
          %6491 = vbcast.lane.b32.xlu0 %v6489, 256
          %v6492 = vpop.permute.xlu0 %6491
          %v6493 = vlaneseq
          %v6494 = vshrl.u32 %v6493, 7
          %v6495 = vsub.s32 7, %v6494
          %v6496 = vrot.slane %v6443, %v6495
          %6498 = vbcast.lane.b32.xlu0 %v6496, 256
          %v6499 = vpop.permute.xlu0 %6498
          %v6500 = vmul.f32 %v6434, %v6450
          %v6501 = vmul.f32 %v6435, %v6457
          %v6502 = vmul.f32 %v6436, %v6464
          %v6503 = vmul.f32 %v6437, %v6471
          %v6504 = vmul.f32 %v6438, %v6478
          %v6505 = vmul.f32 %v6439, %v6485
          %v6506 = vmul.f32 %v6440, %v6492
          %v6507 = vmul.f32 %v6441, %v6499
          %v6508 = vsel %vm739, %v6500, 0.0
          %v6509 = vrot.slane %v6508, 4
          %v6510 = vadd.f32 %v6508, %v6509
          %v6511 = vrot.slane %v6510, 2
          %v6512 = vadd.f32 %v6510, %v6511
          %v6513 = vrot.slane %v6512, 1
          %v6514 = vadd.f32 %v6512, %v6513
          %v6515 = vsel %vm739, %v6501, 0.0
          %v6516 = vrot.slane %v6515, 4
          %v6517 = vadd.f32 %v6515, %v6516
          %v6518 = vrot.slane %v6517, 2
          %v6519 = vadd.f32 %v6517, %v6518
          %v6520 = vrot.slane %v6519, 1
          %v6521 = vadd.f32 %v6519, %v6520
          %v6522 = vsel %vm739, %v6502, 0.0
          %v6523 = vrot.slane %v6522, 4
          %v6524 = vadd.f32 %v6522, %v6523
          %v6525 = vrot.slane %v6524, 2
          %v6526 = vadd.f32 %v6524, %v6525
          %v6527 = vrot.slane %v6526, 1
          %v6528 = vadd.f32 %v6526, %v6527
          %v6529 = vsel %vm739, %v6503, 0.0
          %v6530 = vrot.slane %v6529, 4
          %v6531 = vadd.f32 %v6529, %v6530
          %v6532 = vrot.slane %v6531, 2
          %v6533 = vadd.f32 %v6531, %v6532
          %v6534 = vrot.slane %v6533, 1
          %v6535 = vadd.f32 %v6533, %v6534
          %v6536 = vsel %vm739, %v6504, 0.0
          %v6537 = vrot.slane %v6536, 4
          %v6538 = vadd.f32 %v6536, %v6537
          %v6539 = vrot.slane %v6538, 2
          %v6540 = vadd.f32 %v6538, %v6539
          %v6541 = vrot.slane %v6540, 1
          %v6542 = vadd.f32 %v6540, %v6541
          %v6543 = vsel %vm739, %v6505, 0.0
          %v6544 = vrot.slane %v6543, 4
          %v6545 = vadd.f32 %v6543, %v6544
          %v6546 = vrot.slane %v6545, 2
          %v6547 = vadd.f32 %v6545, %v6546
          %v6548 = vrot.slane %v6547, 1
          %v6549 = vadd.f32 %v6547, %v6548
          %v6550 = vsel %vm739, %v6506, 0.0
          %v6551 = vrot.slane %v6550, 4
          %v6552 = vadd.f32 %v6550, %v6551
          %v6553 = vrot.slane %v6552, 2
          %v6554 = vadd.f32 %v6552, %v6553
          %v6555 = vrot.slane %v6554, 1
          %v6556 = vadd.f32 %v6554, %v6555
          %v6557 = vsel %vm739, %v6507, 0.0
          %v6558 = vrot.slane %v6557, 4
          %v6559 = vadd.f32 %v6557, %v6558
          %v6560 = vrot.slane %v6559, 2
          %v6561 = vadd.f32 %v6559, %v6560
          %v6562 = vrot.slane %v6561, 1
          %v6563 = vadd.f32 %v6561, %v6562
          %vm6572 = vcmask 1041409
          %v6573 = vsel %vm6572, %v6521, %v6514
          %vm6574 = vcmask 1042434
          %v6575 = vsel %vm6574, %v6528, %v6573
          %vm6576 = vcmask 1043459
          %v6577 = vsel %vm6576, %v6535, %v6575
          %vm6578 = vcmask 1044484
          %v6579 = vsel %vm6578, %v6542, %v6577
          %vm6580 = vcmask 1045509
          %v6581 = vsel %vm6580, %v6549, %v6579
          %vm6582 = vcmask 1046534
          %v6583 = vsel %vm6582, %v6556, %v6581
          %vm6584 = vcmask 1047559
          %v6585 = vsel %vm6584, %v6563, %v6583
          %s6587 = scalar_lea.vmem [#allocation9], %s6406
          %6588 = vst.msk [vmem:[%s6587] sm:$0xff] %vm739, %v6585
        $region73: #{tpu_custom_call.1} parent=55 // loop_footer
          %s6397 = sadd.s32 1, %s6393
        $region74: #{tpu_custom_call.1} parent=55 // loop_footer_branch
          %6392 = sbr.rel target = $region70
        $region75: #{tpu_custom_call.1} parent=55 // loop_exit
          _
        %6589 = vst.msk [vmem:[#allocation3] sm:$0xff] %vm739, %v6398
        %6590 = vst.msk [vmem:[#allocation3 + $0x8] sm:$0xff] %vm739, %v6399
        %6591 = vst.msk [vmem:[#allocation3 + $0x10] sm:$0xff] %vm739, %v6400
        %6592 = vst.msk [vmem:[#allocation3 + $0x18] sm:$0xff] %vm739, %v6401
        %6593 = vst.msk [vmem:[#allocation3 + $0x20] sm:$0xff] %vm739, %v6402
        %6594 = vst.msk [vmem:[#allocation3 + $0x28] sm:$0xff] %vm739, %v6403
        %6595 = vst.msk [vmem:[#allocation3 + $0x30] sm:$0xff] %vm739, %v6404
        %6596 = vst.msk [vmem:[#allocation3 + $0x38] sm:$0xff] %vm739, %v6405
        %v6597 = vld [vmem:[#allocation9] sm:$0xff]
        %v6598 = vld [vmem:[#allocation9 + $0x8] sm:$0xff]
        %v6599 = vld [vmem:[#allocation9 + $0x10] sm:$0xff]
        %v6600 = vld [vmem:[#allocation9 + $0x18] sm:$0xff]
        %v6601 = vld [vmem:[#allocation9 + $0x20] sm:$0xff]
        %v6602 = vld [vmem:[#allocation9 + $0x28] sm:$0xff]
        %v6603 = vld [vmem:[#allocation9 + $0x30] sm:$0xff]
        %v6604 = vld [vmem:[#allocation9 + $0x38] sm:$0xff]
        %v6605 = vld [vmem:[#allocation9 + $0x40] sm:$0xff]
        %v6606 = vld [vmem:[#allocation9 + $0x48] sm:$0xff]
        %v6607 = vld [vmem:[#allocation9 + $0x50] sm:$0xff]
        %v6608 = vld [vmem:[#allocation9 + $0x58] sm:$0xff]
        %v6609 = vld [vmem:[#allocation9 + $0x60] sm:$0xff]
        %v6610 = vld [vmem:[#allocation9 + $0x68] sm:$0xff]
        %v6611 = vld [vmem:[#allocation9 + $0x70] sm:$0xff]
        %v6612 = vld [vmem:[#allocation9 + $0x78] sm:$0xff]
        %v6613 = vld [vmem:[#allocation4] sm:$0xff]
        %v6614 = vld [vmem:[#allocation4 + $0x8] sm:$0xff]
        %v6615 = vld [vmem:[#allocation4 + $0x10] sm:$0xff]
        %v6616 = vld [vmem:[#allocation4 + $0x18] sm:$0xff]
        %v6617 = vld [vmem:[#allocation4 + $0x20] sm:$0xff]
        %v6618 = vld [vmem:[#allocation4 + $0x28] sm:$0xff]
        %v6619 = vld [vmem:[#allocation4 + $0x30] sm:$0xff]
        %v6620 = vld [vmem:[#allocation4 + $0x38] sm:$0xff]
        %v6621 = vld [vmem:[#allocation4 + $0x40] sm:$0xff]
        %v6622 = vld [vmem:[#allocation4 + $0x48] sm:$0xff]
        %v6623 = vld [vmem:[#allocation4 + $0x50] sm:$0xff]
        %v6624 = vld [vmem:[#allocation4 + $0x58] sm:$0xff]
        %v6625 = vld [vmem:[#allocation4 + $0x60] sm:$0xff]
        %v6626 = vld [vmem:[#allocation4 + $0x68] sm:$0xff]
        %v6627 = vld [vmem:[#allocation4 + $0x70] sm:$0xff]
        %v6628 = vld [vmem:[#allocation4 + $0x78] sm:$0xff]
        %v6629 = vld [vmem:[#allocation13] sm:$0x1]
        %v6631 = vlaneseq
        %v6632 = vshrl.u32 %v6631, 7
        %v6633 = vsub.s32 0, %v6632
        %v6634 = vrot.slane %v6629, %v6633
        %v6636 = vmul.f32 %v6613, %v6634
        %v6637 = vmul.f32 %v6614, %v6634
        %v6638 = vmul.f32 %v6615, %v6634
        %v6639 = vmul.f32 %v6616, %v6634
        %v6640 = vmul.f32 %v6617, %v6634
        %v6641 = vmul.f32 %v6618, %v6634
        %v6642 = vmul.f32 %v6619, %v6634
        %v6643 = vmul.f32 %v6620, %v6634
        %v6644 = vmul.f32 %v6621, %v6634
        %v6645 = vmul.f32 %v6622, %v6634
        %v6646 = vmul.f32 %v6623, %v6634
        %v6647 = vmul.f32 %v6624, %v6634
        %v6648 = vmul.f32 %v6625, %v6634
        %v6649 = vmul.f32 %v6626, %v6634
        %v6650 = vmul.f32 %v6627, %v6634
        %v6651 = vmul.f32 %v6628, %v6634
        %v6652 = vadd.f32 %v6597, %v6636
        %v6653 = vadd.f32 %v6598, %v6637
        %v6654 = vadd.f32 %v6599, %v6638
        %v6655 = vadd.f32 %v6600, %v6639
        %v6656 = vadd.f32 %v6601, %v6640
        %v6657 = vadd.f32 %v6602, %v6641
        %v6658 = vadd.f32 %v6603, %v6642
        %v6659 = vadd.f32 %v6604, %v6643
        %v6660 = vadd.f32 %v6605, %v6644
        %v6661 = vadd.f32 %v6606, %v6645
        %v6662 = vadd.f32 %v6607, %v6646
        %v6663 = vadd.f32 %v6608, %v6647
        %v6664 = vadd.f32 %v6609, %v6648
        %v6665 = vadd.f32 %v6610, %v6649
        %v6666 = vadd.f32 %v6611, %v6650
        %v6667 = vadd.f32 %v6612, %v6651
        %v6668 = vld [vmem:[#allocation5] sm:$0xff]
        %v6669 = vld [vmem:[#allocation5 + $0x8] sm:$0xff]
        %v6670 = vld [vmem:[#allocation5 + $0x10] sm:$0xff]
        %v6671 = vld [vmem:[#allocation5 + $0x18] sm:$0xff]
        %v6672 = vld [vmem:[#allocation5 + $0x20] sm:$0xff]
        %v6673 = vld [vmem:[#allocation5 + $0x28] sm:$0xff]
        %v6674 = vld [vmem:[#allocation5 + $0x30] sm:$0xff]
        %v6675 = vld [vmem:[#allocation5 + $0x38] sm:$0xff]
        %v6676 = vld [vmem:[#allocation5 + $0x40] sm:$0xff]
        %v6677 = vld [vmem:[#allocation5 + $0x48] sm:$0xff]
        %v6678 = vld [vmem:[#allocation5 + $0x50] sm:$0xff]
        %v6679 = vld [vmem:[#allocation5 + $0x58] sm:$0xff]
        %v6680 = vld [vmem:[#allocation5 + $0x60] sm:$0xff]
        %v6681 = vld [vmem:[#allocation5 + $0x68] sm:$0xff]
        %v6682 = vld [vmem:[#allocation5 + $0x70] sm:$0xff]
        %v6683 = vld [vmem:[#allocation5 + $0x78] sm:$0xff]
        %v6684 = vmul.f32 %v6652, %v6668
        %v6685 = vmul.f32 %v6653, %v6669
        %v6686 = vmul.f32 %v6654, %v6670
        %v6687 = vmul.f32 %v6655, %v6671
        %v6688 = vmul.f32 %v6656, %v6672
        %v6689 = vmul.f32 %v6657, %v6673
        %v6690 = vmul.f32 %v6658, %v6674
        %v6691 = vmul.f32 %v6659, %v6675
        %v6692 = vmul.f32 %v6660, %v6676
        %v6693 = vmul.f32 %v6661, %v6677
        %v6694 = vmul.f32 %v6662, %v6678
        %v6695 = vmul.f32 %v6663, %v6679
        %v6696 = vmul.f32 %v6664, %v6680
        %v6697 = vmul.f32 %v6665, %v6681
        %v6698 = vmul.f32 %v6666, %v6682
        %v6699 = vmul.f32 %v6667, %v6683
        %v6700 = vpack.c.bf16 %v6685, %v6684
        %v6701 = vpack.c.bf16 %v6687, %v6686
        %v6702 = vpack.c.bf16 %v6689, %v6688
        %v6703 = vpack.c.bf16 %v6691, %v6690
        %v6704 = vpack.c.bf16 %v6693, %v6692
        %v6705 = vpack.c.bf16 %v6695, %v6694
        %v6706 = vpack.c.bf16 %v6697, %v6696
        %v6707 = vpack.c.bf16 %v6699, %v6698
        %v6708 = vld [vmem:[%s8] sm:$0xf]
        %v6709 = vld [vmem:[%s8 + $0x4] sm:$0xf]
        %v6710 = vld [vmem:[%s8 + $0x8] sm:$0xf]
        %v6711 = vld [vmem:[%s8 + $0xc] sm:$0xf]
        %v6712 = vld [vmem:[%s8 + $0x10] sm:$0xf]
        %v6713 = vld [vmem:[%s8 + $0x14] sm:$0xf]
        %v6714 = vld [vmem:[%s8 + $0x18] sm:$0xf]
        %v6715 = vld [vmem:[%s8 + $0x1c] sm:$0xf]
        %v6724 = vunpack.c.l.b16 %v6708
        %v6725 = vunpack.c.l.b16 %v6709
        %v6726 = vunpack.c.l.b16 %v6710
        %v6727 = vunpack.c.l.b16 %v6711
        %v6728 = vunpack.c.l.b16 %v6712
        %v6729 = vunpack.c.l.b16 %v6713
        %v6730 = vunpack.c.l.b16 %v6714
        %v6731 = vunpack.c.l.b16 %v6715
        %v6732 = vpack.c.b16 %v6725, %v6724
        %v6733 = vpack.c.b16 %v6727, %v6726
        %v6734 = vpack.c.b16 %v6729, %v6728
        %v6735 = vpack.c.b16 %v6731, %v6730
        %v6741 = vsel %vm739, %v6700, 0
        %v6744 = vsel %vm739, %v6701, 0
        %v6747 = vsel %vm739, %v6702, 0
        %v6750 = vsel %vm739, %v6703, 0
        %v6753 = vsel %vm739, %v6704, 0
        %v6756 = vsel %vm739, %v6705, 0
        %v6759 = vsel %vm739, %v6706, 0
        %v6762 = vsel %vm739, %v6707, 0
        %6764 = vmatprep.subr.bf16.mxu0 0
        %6765 = vmatpush1.bf16.msra.mxu0 %v6732
        %6766 = vmatprep.subr.bf16.mxu0 0
        %6767 = vmatpush1.bf16.msra.mxu0 %v6733
        %6768 = vmatprep.subr.bf16.mxu0 0
        %6769 = vmatpush1.bf16.msra.mxu0 %v6734
        %6770 = vmatprep.subr.bf16.mxu0 0
        %6771 = vmatpush1.bf16.msra.mxu0 %v6735
        %6772 = vmatprep.subr.bf16.mxu0 0
        %6773 = vmatpush1.bf16.msra.mxu0 0
        %6774 = vmatprep.subr.bf16.mxu0 0
        %6775 = vmatpush1.bf16.msra.mxu0 0
        %6776 = vmatprep.subr.bf16.mxu0 0
        %6777 = vmatpush1.bf16.msra.mxu0 0
        %6778 = vmatprep.subr.bf16.mxu0 0
        %6779 = vmatpush1.bf16.msra.mxu0 0
        %6780 = vmatprep.subr.bf16.mxu0 0
        %6781 = vmatpush1.bf16.msra.mxu0 0
        %6782 = vmatprep.subr.bf16.mxu0 0
        %6783 = vmatpush1.bf16.msra.mxu0 0
        %6784 = vmatprep.subr.bf16.mxu0 0
        %6785 = vmatpush1.bf16.msra.mxu0 0
        %6786 = vmatprep.subr.bf16.mxu0 0
        %6787 = vmatpush1.bf16.msra.mxu0 0
        %6788 = vmatprep.subr.bf16.mxu0 0
        %6789 = vmatpush1.bf16.msra.mxu0 0
        %6790 = vmatprep.subr.bf16.mxu0 0
        %6791 = vmatpush1.bf16.msra.mxu0 0
        %6792 = vmatprep.subr.bf16.mxu0 0
        %6793 = vmatpush1.bf16.msra.mxu0 0
        %6794 = vmatprep.subr.bf16.mxu0 0
        %6795 = vmatpush1.bf16.msra.mxu0 0
        %6796 = vmatprep.mubr.bf16.mxu0 0
        %6797 = vmatmul.mubr.bf16.gmra.mrb[0].mxu0 %v6741
        %v6798 = vpop.f32.mrb[0].mxu0
        %v6799 = vadd.f32 0.0, %v6798
        %v6800 = vpop.f32.mrb[0].mxu0
        %v6801 = vpop.f32.mrb[0].mxu0
        %v6802 = vadd.f32 0.0, %v6801
        %v6803 = vpop.f32.mrb[0].mxu0
        %6804 = vmatprep.mubr.bf16.mxu0 0
        %6805 = vmatmul.mubr.bf16.gmra.mrb[0].mxu0 %v6744
        %v6806 = vpop.f32.mrb[0].mxu0
        %v6807 = vadd.f32 0.0, %v6806
        %v6808 = vpop.f32.mrb[0].mxu0
        %v6809 = vpop.f32.mrb[0].mxu0
        %v6810 = vadd.f32 0.0, %v6809
        %v6811 = vpop.f32.mrb[0].mxu0
        %6812 = vmatprep.mubr.bf16.mxu0 0
        %6813 = vmatmul.mubr.bf16.gmra.mrb[0].mxu0 %v6747
        %v6814 = vpop.f32.mrb[0].mxu0
        %v6815 = vadd.f32 0.0, %v6814
        %v6816 = vpop.f32.mrb[0].mxu0
        %v6817 = vpop.f32.mrb[0].mxu0
        %v6818 = vadd.f32 0.0, %v6817
        %v6819 = vpop.f32.mrb[0].mxu0
        %6820 = vmatprep.mubr.bf16.mxu0 0
        %6821 = vmatmul.mubr.bf16.gmra.mrb[0].mxu0 %v6750
        %v6822 = vpop.f32.mrb[0].mxu0
        %v6823 = vadd.f32 0.0, %v6822
        %v6824 = vpop.f32.mrb[0].mxu0
        %v6825 = vpop.f32.mrb[0].mxu0
        %v6826 = vadd.f32 0.0, %v6825
        %v6827 = vpop.f32.mrb[0].mxu0
        %6828 = vmatprep.mubr.bf16.mxu0 0
        %6829 = vmatmul.mubr.bf16.gmra.mrb[0].mxu0 %v6753
        %v6830 = vpop.f32.mrb[0].mxu0
        %v6831 = vadd.f32 0.0, %v6830
        %v6832 = vpop.f32.mrb[0].mxu0
        %v6833 = vpop.f32.mrb[0].mxu0
        %v6834 = vadd.f32 0.0, %v6833
        %v6835 = vpop.f32.mrb[0].mxu0
        %6836 = vmatprep.mubr.bf16.mxu0 0
        %6837 = vmatmul.mubr.bf16.gmra.mrb[0].mxu0 %v6756
        %v6838 = vpop.f32.mrb[0].mxu0
        %v6839 = vadd.f32 0.0, %v6838
        %v6840 = vpop.f32.mrb[0].mxu0
        %v6841 = vpop.f32.mrb[0].mxu0
        %v6842 = vadd.f32 0.0, %v6841
        %v6843 = vpop.f32.mrb[0].mxu0
        %6844 = vmatprep.mubr.bf16.mxu0 0
        %6845 = vmatmul.mubr.bf16.gmra.mrb[0].mxu0 %v6759
        %v6846 = vpop.f32.mrb[0].mxu0
        %v6847 = vadd.f32 0.0, %v6846
        %v6848 = vpop.f32.mrb[0].mxu0
        %v6849 = vpop.f32.mrb[0].mxu0
        %v6850 = vadd.f32 0.0, %v6849
        %v6851 = vpop.f32.mrb[0].mxu0
        %6852 = vmatprep.mubr.bf16.mxu0 0
        %6853 = vmatmul.mubr.bf16.gmra.mrb[0].mxu0 %v6762
        %v6854 = vpop.f32.mrb[0].mxu0
        %v6855 = vadd.f32 0.0, %v6854
        %v6856 = vpop.f32.mrb[0].mxu0
        %v6857 = vpop.f32.mrb[0].mxu0
        %v6858 = vadd.f32 0.0, %v6857
        %v6859 = vpop.f32.mrb[0].mxu0
        %6860 = vdwg.mxu0
        %6861 = vst.msk [vmem:[%s381] sm:$0xff] %vm441, %v6799
        %6862 = vst.msk [vmem:[%s381 + $0x8] sm:$0xff] %vm441, %v6802
        %6863 = vst.msk [vmem:[%s381 + $0x10] sm:$0xff] %vm441, %v6807
        %6864 = vst.msk [vmem:[%s381 + $0x18] sm:$0xff] %vm441, %v6810
        %6865 = vst.msk [vmem:[%s381 + $0x20] sm:$0xff] %vm441, %v6815
        %6866 = vst.msk [vmem:[%s381 + $0x28] sm:$0xff] %vm441, %v6818
        %6867 = vst.msk [vmem:[%s381 + $0x30] sm:$0xff] %vm441, %v6823
        %6868 = vst.msk [vmem:[%s381 + $0x38] sm:$0xff] %vm441, %v6826
        %6869 = vst.msk [vmem:[%s381 + $0x40] sm:$0xff] %vm441, %v6831
        %6870 = vst.msk [vmem:[%s381 + $0x48] sm:$0xff] %vm441, %v6834
        %6871 = vst.msk [vmem:[%s381 + $0x50] sm:$0xff] %vm441, %v6839
        %6872 = vst.msk [vmem:[%s381 + $0x58] sm:$0xff] %vm441, %v6842
        %6873 = vst.msk [vmem:[%s381 + $0x60] sm:$0xff] %vm441, %v6847
        %6874 = vst.msk [vmem:[%s381 + $0x68] sm:$0xff] %vm441, %v6850
        %6875 = vst.msk [vmem:[%s381 + $0x70] sm:$0xff] %vm441, %v6855
        %6876 = vst.msk [vmem:[%s381 + $0x78] sm:$0xff] %vm441, %v6858
        %s6877 = sand.u32 %s245, 1
        %s6878 = scalar_lea.sflag [#allocation12], %s6877
        %s6879 = sand.u32 %s245, 1
        %s6880 = smul.addr %s6879, 128
        %s6881 = scalar_lea.vmem [#allocation15], %s6880
        // Predicated region
        $region76: #{tpu_custom_call.1} parent=55 // pred_check
          %p6882 = pneg %p255
        $region77: #{tpu_custom_call.1} parent=55 // pred_check_branch
          %6884 = sbr.rel (%p6882) target = $region79
        $region78: #{tpu_custom_call.1} parent=55 // pred_region
          %s6885 = smul.u32 16, %s32
          %s6887 = ssub.s32 2048, 2048
          %6888 = vsyncadd %s6878, %s6887
          %s6889 = smul.addr %s6885, 2
          %s6890 = sadd.s32 %s31, %s6889
          %s6891 = smul.addr %s6890, 128
          %s6892 = scalar_lea.hbm %s9, %s6891
          %s6893 = sshll.u32 %s6881, 4
          %s6894 = int_to_ptr.vmem [resolvable:$true] %s6893
          %6899 = dma.vmem_to_hbm [thread:$0]  %s6894, 2048, %s6892, %s6878, 128, 256, 8
        $region79: #{tpu_custom_call.1} parent=55 // pred_fallthru
          _
      $region56: #{tpu_custom_call.1} parent=5 // pred_fallthru
        _
      %p6900 = scmp.le.s32.totalorder 2, %s22
      // Predicated region
      $region80: #{tpu_custom_call.1} parent=5 // pred_check
        %p6901 = pneg %p6900
      $region81: #{tpu_custom_call.1} parent=5 // pred_check_branch
        %6903 = sbr.rel (%p6901) target = $region83
      $region82: #{tpu_custom_call.1} parent=5 // pred_region
        %s6904 = ssub.s32 %s22, 2
        // Predicated region
        $region84: #{tpu_custom_call.1} parent=82 // pred_check
          %p6905 = pneg %p261
        $region85: #{tpu_custom_call.1} parent=82 // pred_check_branch
          %6907 = sbr.rel (%p6905) target = $region87
        $region86: #{tpu_custom_call.1} parent=82 // pred_region
          %s6908 = sand.u32 %s246, 1
          %s6909 = scalar_lea.sflag [#allocation12], %s6908
          %s6910 = sand.u32 %s246, 1
          %s6911 = smul.addr %s6910, 128
          %s6912 = scalar_lea.vmem [#allocation15], %s6911
          %6913 = dma.done %s6909, 2048
        $region87: #{tpu_custom_call.1} parent=82 // pred_fallthru
          _
      $region83: #{tpu_custom_call.1} parent=5 // pred_fallthru
        _
    $region6: #{tpu_custom_call.1} parent=1 // loop_footer
      %s26 = sadd.s32 1, %s22
    $region7: #{tpu_custom_call.1} parent=1 // loop_footer_branch
      %21 = sbr.rel target = $region3
    $region8: #{tpu_custom_call.1} parent=1 // loop_exit
      _
    %6914 = vsyncpa [#allocation11], 1
    %s6915 = scalar_lea.sflag [#allocation11], 1
    %6916 = vsyncpa %s6915, 1
    %6917 = vsyncpa [#allocation14], 1
    %6918 = vsyncpa [#allocation12], 1
    %s6919 = scalar_lea.sflag [#allocation12], 1
    %6920 = vsyncpa %s6919, 1

</llo_original>
